<compile_context>
chip_gen: v7x
topology: tpu7x:2x2x1
jax: 0.10.0
libtpu: 0.0.40
codegen_flags: <defaults>
</compile_context>

<pallas_src>
import functools

import jax
import jax.numpy as jnp
from jax.experimental import pallas as pl
from jax.experimental.pallas import tpu as pltpu


def _round_up(x, m):
    return ((x + m - 1) // m) * m


# ----------------------------- Pallas kernel -------------------------------

def wsplin_fused_kernel(x_ref, wb_ref, w1_ref, b1_ref, w2_ref, b2_ref, o_ref):
    """Fused backbone + classifier forward (eval mode), one grid step.

    x_ref : (P * rows, CHW)   bf16, patch-major rows (row = p*rows + b)
    wb_ref: (CHW, NCP)        bf16, backbone Linear weight (classes padded)
    w1_ref: (P, NCP, F_pad)   bf16, per-patch zero-padded classifier Linear1
    b1_ref: (1, F_pad)        f32,  Linear1 bias with backbone bias folded in
    w2_ref: (F_pad, NCP)      bf16, classifier Linear2
    b2_ref: (1, NCP)          f32
    o_ref : (rows, NCP)       f32
    """
    P = w1_ref.shape[0]
    rows = o_ref.shape[0]

    # Backbone: one MXU matmul over all patches (wb weights pushed once).
    feat = jnp.dot(x_ref[...], wb_ref[...],
                   preferred_element_type=jnp.float32)          # (P*rows, NCP)
    featc = feat.astype(w1_ref.dtype)

    # Classifier Linear1, accumulated per patch in f32; bias pre-folded.
    acc = jnp.dot(featc[0:rows, :], w1_ref[0],
                  preferred_element_type=jnp.float32) + b1_ref[...]
    for p in range(1, P):                     # static unroll, P is small (17)
        acc = acc + jnp.dot(featc[p * rows:(p + 1) * rows, :], w1_ref[p],
                            preferred_element_type=jnp.float32)

    h = jnp.maximum(acc, 0.0)            # ReLU; Dropout(p=0.5) = identity (eval)
    out = jnp.dot(h.astype(w2_ref.dtype), w2_ref[...],
                  preferred_element_type=jnp.float32) + b2_ref[...]
    o_ref[...] = out.astype(o_ref.dtype)


# ------------------------------ param prep ---------------------------------

def prepare_fused_params(params, patches, num_classes,
                         compute_dtype=jnp.bfloat16, lane=128):
    """Pad weights to lane-dense shapes; fold the backbone bias into b1."""
    wb, bb = params["wb"], params["bb"]      # (CHW, nc), (1, nc)
    w1, b1 = params["w1"], params["b1"]      # (F, F),    (1, F)
    w2, b2 = params["w2"], params["b2"]      # (F, nc),   (1, nc)
    CHW = wb.shape[0]
    F = num_classes * patches
    nc_pad = _round_up(num_classes, lane)    # 8   -> 128
    F_pad = _round_up(F, lane)               # 136 -> 256

    # Backbone has no nonlinearity, so its bias folds exactly (f32, once):
    #   b1_eff = tile(bb, patches) @ w1 + b1
    b1_eff = jnp.tile(bb, (1, patches)) @ w1 + b1            # (1, F)

    wb_p = jnp.zeros((CHW, nc_pad), compute_dtype).at[:, :num_classes].set(
        wb.astype(compute_dtype))
    w1_3 = w1.reshape(patches, num_classes, F)
    w1_p = jnp.zeros((patches, nc_pad, F_pad), compute_dtype).at[
        :, :num_classes, :F].set(w1_3.astype(compute_dtype))
    b1_p = jnp.zeros((1, F_pad), jnp.float32).at[:, :F].set(b1_eff)
    w2_p = jnp.zeros((F_pad, nc_pad), compute_dtype).at[:F, :num_classes].set(
        w2.astype(compute_dtype))
    b2_p = jnp.zeros((1, nc_pad), jnp.float32).at[:, :num_classes].set(b2)

    return dict(wb=wb_p, w1p=w1_p, b1=b1_p, w2=w2_p, b2=b2_p)


# ------------------------------ forward ------------------------------------

@functools.partial(jax.jit, static_argnames=("num_classes",))
def wsplin_ip_forward(x, wb_p, w1_p, b1_p, w2_p, b2_p, *, num_classes):
    """x: (bs, patches, C, H, W) float32 -> (bs, num_classes) float32."""
    bs = x.shape[0]
    P, nc_pad, F_pad = w1_p.shape
    CHW = wb_p.shape[0]
    cd = wb_p.dtype

    # Patch-major layout (P, bs_pad, CHW) so the backbone runs as one matmul.
    # transpose + pad + cast fuse into a single small XLA copy under jit.
    bs_pad = _round_up(bs, 8)
    x3 = jnp.transpose(x.reshape(bs, P, CHW), (1, 0, 2)).astype(cd)
    if bs_pad != bs:
        x3 = jnp.pad(x3, ((0, 0), (0, bs_pad - bs), (0, 0)))
    x2 = x3.reshape(P * bs_pad, CHW)

    # Everything fits in VMEM (double-buffered ~3.5 MB << 16 MiB scoped default
    # on v5e/v6e/v7x), so a single grid step: no K-reduction loop, no per-step
    # overhead, no accumulator scratch.
    # TODO(synk): for large batches, tile bs_pad into row blocks on a
    # "parallel" grid axis to bound VMEM and engage the second v7x TensorCore.
    out = pl.pallas_call(
        wsplin_fused_kernel,
        out_shape=jax.ShapeDtypeStruct((bs_pad, nc_pad), jnp.float32),
        grid_spec=pltpu.PrefetchScalarGridSpec(
            num_scalar_prefetch=0,
            grid=(1,),
            in_specs=[
                pl.BlockSpec((P * bs_pad, CHW), lambda i: (0, 0)),      # x
                pl.BlockSpec((CHW, nc_pad), lambda i: (0, 0)),          # wb
                pl.BlockSpec((P, nc_pad, F_pad), lambda i: (0, 0, 0)),  # w1p
                pl.BlockSpec((1, F_pad), lambda i: (0, 0)),             # b1_eff
                pl.BlockSpec((F_pad, nc_pad), lambda i: (0, 0)),        # w2
                pl.BlockSpec((1, nc_pad), lambda i: (0, 0)),            # b2
            ],
            out_specs=pl.BlockSpec((bs_pad, nc_pad), lambda i: (0, 0)),
        ),
        compiler_params=pltpu.CompilerParams(
            dimension_semantics=("arbitrary",),
        ),
    )(x2, wb_p, w1_p, b1_p, w2_p, b2_p)

    return out[:bs, :num_classes]


# ------------------------------ param init ---------------------------------

def init_params(key, C, H, W, num_classes, patches):
    F = num_classes * patches
    k_b, k1, k2 = jax.random.split(key, 3)
    # TODO(synk): trunc_normal_(std=0.02) approximated with plain normal*0.02
    # (init fidelity only; forward semantics unaffected).
    wb = 0.02 * jax.random.normal(k_b, (C * H * W, num_classes), jnp.float32)
    bb = jnp.zeros((1, num_classes), jnp.float32)
    w1 = 0.02 * jax.random.normal(k1, (F, F), jnp.float32)
    b1 = jnp.zeros((1, F), jnp.float32)
    w2 = 0.02 * jax.random.normal(k2, (F, num_classes), jnp.float32)
    b2 = jnp.zeros((1, num_classes), jnp.float32)
    return {"wb": wb, "bb": bb, "w1": w1, "b1": b1, "w2": w2, "b2": b2}


# ------------------------------- main ---------------------------------------

if __name__ == "__main__":
    bs, patches, C, H, W = 2, 17, 4, 16, 16
    num_classes = 8

    key = jax.random.PRNGKey(0)
    kx, kp = jax.random.split(key)
    x = jax.random.normal(kx, (bs, patches, C, H, W), jnp.float32)
    params = init_params(kp, C, H, W, num_classes, patches)

    fused = prepare_fused_params(params, patches, num_classes)
    out = wsplin_ip_forward(x, fused["wb"], fused["w1p"], fused["b1"],
                            fused["w2"], fused["b2"], num_classes=num_classes)
    out = jax.block_until_ready(out)

    # Unfused f32 reference (mirrors the PyTorch forward in eval mode).
    xf = x.reshape(bs * patches, C * H * W)
    feat = xf @ params["wb"] + params["bb"]
    feat = feat.reshape(bs, -1)
    h = jnp.maximum(feat @ params["w1"] + params["b1"], 0.0)
    ref = h @ params["w2"] + params["b2"]

    assert out.shape == (bs, num_classes), out.shape
    # bf16 MXU inputs with f32 accumulation -> loosened tolerance vs f32 ref.
    err = float(jnp.max(jnp.abs(out - ref)))
    assert jnp.allclose(out, ref, atol=1e-2, rtol=5e-2), f"mismatch, max err {err}"

    print("KERNEL_OK")
</pallas_src>

<mosaic_0001>
module attributes {stable_mosaic.version = 11 : i64} {
  func.func @wsplin_fused_kernel(%arg0: i32, %arg1: memref<136x1024xbf16, #tpu.memory_space<vmem>>, %arg2: memref<1024x128xbf16, #tpu.memory_space<vmem>>, %arg3: memref<17x128x256xbf16, #tpu.memory_space<vmem>>, %arg4: memref<1x256xf32, #tpu.memory_space<vmem>>, %arg5: memref<256x128xbf16, #tpu.memory_space<vmem>>, %arg6: memref<1x128xf32, #tpu.memory_space<vmem>>, %arg7: memref<8x128xf32, #tpu.memory_space<vmem>>) attributes {dimension_semantics = [#tpu.dimension_semantics<arbitrary>], iteration_bounds = array<i64: 1>, scalar_prefetch = 0 : i64, scratch_operands = 0 : i64, tpu.core_type = #tpu.core_type<tc>, window_params = [{pipeline_mode = #tpu.pipeline_mode<synchronous>, transform_indices = @transform_0, window_bounds = array<i64: 136, 1024>}, {pipeline_mode = #tpu.pipeline_mode<synchronous>, transform_indices = @transform_1, window_bounds = array<i64: 1024, 128>}, {pipeline_mode = #tpu.pipeline_mode<synchronous>, transform_indices = @transform_2, window_bounds = array<i64: 17, 128, 256>}, {pipeline_mode = #tpu.pipeline_mode<synchronous>, transform_indices = @transform_3, window_bounds = array<i64: 1, 256>}, {pipeline_mode = #tpu.pipeline_mode<synchronous>, transform_indices = @transform_4, window_bounds = array<i64: 256, 128>}, {pipeline_mode = #tpu.pipeline_mode<synchronous>, transform_indices = @transform_5, window_bounds = array<i64: 1, 128>}, {pipeline_mode = #tpu.pipeline_mode<synchronous>, transform_indices = @transform_6, window_bounds = array<i64: 8, 128>}]} {
    %c0 = arith.constant 0 : index
    %c0_0 = arith.constant 0 : index
    %0 = vector.load %arg1[%c0, %c0_0] : memref<136x1024xbf16, #tpu.memory_space<vmem>>, vector<136x1024xbf16>
    %c0_1 = arith.constant 0 : index
    %c0_2 = arith.constant 0 : index
    %1 = vector.load %arg2[%c0_1, %c0_2] : memref<1024x128xbf16, #tpu.memory_space<vmem>>, vector<1024x128xbf16>
    %cst = arith.constant dense<0.000000e+00> : vector<136x128xf32>
    %2 = tpu.matmul %0, %1, %cst {dimension_numbers = #tpu.dot_dimension_numbers<[1], [0], [0], [1], [0, 0, 1, 1], [], []>} : vector<136x1024xbf16>, vector<1024x128xbf16>, vector<136x128xf32> -> vector<136x128xf32>
    %3 = arith.truncf %2 : vector<136x128xf32> to vector<136x128xbf16>
    %4 = vector.extract_strided_slice %3 {offsets = [0, 0], sizes = [8, 128], strides = [1, 1]} : vector<136x128xbf16> to vector<8x128xbf16>
    %c0_3 = arith.constant 0 : index
    %c0_4 = arith.constant 0 : index
    %c0_5 = arith.constant 0 : index
    %5 = vector.load %arg3[%c0_3, %c0_4, %c0_5] : memref<17x128x256xbf16, #tpu.memory_space<vmem>>, vector<1x128x256xbf16>
    %6 = vector.shape_cast %5 : vector<1x128x256xbf16> to vector<128x256xbf16>
    %cst_6 = arith.constant dense<0.000000e+00> : vector<8x256xf32>
    %7 = tpu.matmul %4, %6, %cst_6 {dimension_numbers = #tpu.dot_dimension_numbers<[1], [0], [0], [1], [0, 0, 1, 1], [], []>} : vector<8x128xbf16>, vector<128x256xbf16>, vector<8x256xf32> -> vector<8x256xf32>
    %c0_7 = arith.constant 0 : index
    %c0_8 = arith.constant 0 : index
    %8 = vector.load %arg4[%c0_7, %c0_8] : memref<1x256xf32, #tpu.memory_space<vmem>>, vector<1x256xf32>
    %9 = vector.broadcast %8 : vector<1x256xf32> to vector<8x256xf32>
    %10 = arith.addf %7, %9 : vector<8x256xf32>
    %11 = vector.extract_strided_slice %3 {offsets = [8, 0], sizes = [8, 128], strides = [1, 1]} : vector<136x128xbf16> to vector<8x128xbf16>
    %c1 = arith.constant 1 : index
    %c0_9 = arith.constant 0 : index
    %c0_10 = arith.constant 0 : index
    %12 = vector.load %arg3[%c1, %c0_9, %c0_10] : memref<17x128x256xbf16, #tpu.memory_space<vmem>>, vector<1x128x256xbf16>
    %13 = vector.shape_cast %12 : vector<1x128x256xbf16> to vector<128x256xbf16>
    %cst_11 = arith.constant dense<0.000000e+00> : vector<8x256xf32>
    %14 = tpu.matmul %11, %13, %cst_11 {dimension_numbers = #tpu.dot_dimension_numbers<[1], [0], [0], [1], [0, 0, 1, 1], [], []>} : vector<8x128xbf16>, vector<128x256xbf16>, vector<8x256xf32> -> vector<8x256xf32>
    %15 = arith.addf %10, %14 : vector<8x256xf32>
    %16 = vector.extract_strided_slice %3 {offsets = [16, 0], sizes = [8, 128], strides = [1, 1]} : vector<136x128xbf16> to vector<8x128xbf16>
    %c2 = arith.constant 2 : index
    %c0_12 = arith.constant 0 : index
    %c0_13 = arith.constant 0 : index
    %17 = vector.load %arg3[%c2, %c0_12, %c0_13] : memref<17x128x256xbf16, #tpu.memory_space<vmem>>, vector<1x128x256xbf16>
    %18 = vector.shape_cast %17 : vector<1x128x256xbf16> to vector<128x256xbf16>
    %cst_14 = arith.constant dense<0.000000e+00> : vector<8x256xf32>
    %19 = tpu.matmul %16, %18, %cst_14 {dimension_numbers = #tpu.dot_dimension_numbers<[1], [0], [0], [1], [0, 0, 1, 1], [], []>} : vector<8x128xbf16>, vector<128x256xbf16>, vector<8x256xf32> -> vector<8x256xf32>
    %20 = arith.addf %15, %19 : vector<8x256xf32>
    %21 = vector.extract_strided_slice %3 {offsets = [24, 0], sizes = [8, 128], strides = [1, 1]} : vector<136x128xbf16> to vector<8x128xbf16>
    %c3 = arith.constant 3 : index
    %c0_15 = arith.constant 0 : index
    %c0_16 = arith.constant 0 : index
    %22 = vector.load %arg3[%c3, %c0_15, %c0_16] : memref<17x128x256xbf16, #tpu.memory_space<vmem>>, vector<1x128x256xbf16>
    %23 = vector.shape_cast %22 : vector<1x128x256xbf16> to vector<128x256xbf16>
    %cst_17 = arith.constant dense<0.000000e+00> : vector<8x256xf32>
    %24 = tpu.matmul %21, %23, %cst_17 {dimension_numbers = #tpu.dot_dimension_numbers<[1], [0], [0], [1], [0, 0, 1, 1], [], []>} : vector<8x128xbf16>, vector<128x256xbf16>, vector<8x256xf32> -> vector<8x256xf32>
    %25 = arith.addf %20, %24 : vector<8x256xf32>
    %26 = vector.extract_strided_slice %3 {offsets = [32, 0], sizes = [8, 128], strides = [1, 1]} : vector<136x128xbf16> to vector<8x128xbf16>
    %c4 = arith.constant 4 : index
    %c0_18 = arith.constant 0 : index
    %c0_19 = arith.constant 0 : index
    %27 = vector.load %arg3[%c4, %c0_18, %c0_19] : memref<17x128x256xbf16, #tpu.memory_space<vmem>>, vector<1x128x256xbf16>
    %28 = vector.shape_cast %27 : vector<1x128x256xbf16> to vector<128x256xbf16>
    %cst_20 = arith.constant dense<0.000000e+00> : vector<8x256xf32>
    %29 = tpu.matmul %26, %28, %cst_20 {dimension_numbers = #tpu.dot_dimension_numbers<[1], [0], [0], [1], [0, 0, 1, 1], [], []>} : vector<8x128xbf16>, vector<128x256xbf16>, vector<8x256xf32> -> vector<8x256xf32>
    %30 = arith.addf %25, %29 : vector<8x256xf32>
    %31 = vector.extract_strided_slice %3 {offsets = [40, 0], sizes = [8, 128], strides = [1, 1]} : vector<136x128xbf16> to vector<8x128xbf16>
    %c5 = arith.constant 5 : index
    %c0_21 = arith.constant 0 : index
    %c0_22 = arith.constant 0 : index
    %32 = vector.load %arg3[%c5, %c0_21, %c0_22] : memref<17x128x256xbf16, #tpu.memory_space<vmem>>, vector<1x128x256xbf16>
    %33 = vector.shape_cast %32 : vector<1x128x256xbf16> to vector<128x256xbf16>
    %cst_23 = arith.constant dense<0.000000e+00> : vector<8x256xf32>
    %34 = tpu.matmul %31, %33, %cst_23 {dimension_numbers = #tpu.dot_dimension_numbers<[1], [0], [0], [1], [0, 0, 1, 1], [], []>} : vector<8x128xbf16>, vector<128x256xbf16>, vector<8x256xf32> -> vector<8x256xf32>
    %35 = arith.addf %30, %34 : vector<8x256xf32>
    %36 = vector.extract_strided_slice %3 {offsets = [48, 0], sizes = [8, 128], strides = [1, 1]} : vector<136x128xbf16> to vector<8x128xbf16>
    %c6 = arith.constant 6 : index
    %c0_24 = arith.constant 0 : index
    %c0_25 = arith.constant 0 : index
    %37 = vector.load %arg3[%c6, %c0_24, %c0_25] : memref<17x128x256xbf16, #tpu.memory_space<vmem>>, vector<1x128x256xbf16>
    %38 = vector.shape_cast %37 : vector<1x128x256xbf16> to vector<128x256xbf16>
    %cst_26 = arith.constant dense<0.000000e+00> : vector<8x256xf32>
    %39 = tpu.matmul %36, %38, %cst_26 {dimension_numbers = #tpu.dot_dimension_numbers<[1], [0], [0], [1], [0, 0, 1, 1], [], []>} : vector<8x128xbf16>, vector<128x256xbf16>, vector<8x256xf32> -> vector<8x256xf32>
    %40 = arith.addf %35, %39 : vector<8x256xf32>
    %41 = vector.extract_strided_slice %3 {offsets = [56, 0], sizes = [8, 128], strides = [1, 1]} : vector<136x128xbf16> to vector<8x128xbf16>
    %c7 = arith.constant 7 : index
    %c0_27 = arith.constant 0 : index
    %c0_28 = arith.constant 0 : index
    %42 = vector.load %arg3[%c7, %c0_27, %c0_28] : memref<17x128x256xbf16, #tpu.memory_space<vmem>>, vector<1x128x256xbf16>
    %43 = vector.shape_cast %42 : vector<1x128x256xbf16> to vector<128x256xbf16>
    %cst_29 = arith.constant dense<0.000000e+00> : vector<8x256xf32>
    %44 = tpu.matmul %41, %43, %cst_29 {dimension_numbers = #tpu.dot_dimension_numbers<[1], [0], [0], [1], [0, 0, 1, 1], [], []>} : vector<8x128xbf16>, vector<128x256xbf16>, vector<8x256xf32> -> vector<8x256xf32>
    %45 = arith.addf %40, %44 : vector<8x256xf32>
    %46 = vector.extract_strided_slice %3 {offsets = [64, 0], sizes = [8, 128], strides = [1, 1]} : vector<136x128xbf16> to vector<8x128xbf16>
    %c8 = arith.constant 8 : index
    %c0_30 = arith.constant 0 : index
    %c0_31 = arith.constant 0 : index
    %47 = vector.load %arg3[%c8, %c0_30, %c0_31] : memref<17x128x256xbf16, #tpu.memory_space<vmem>>, vector<1x128x256xbf16>
    %48 = vector.shape_cast %47 : vector<1x128x256xbf16> to vector<128x256xbf16>
    %cst_32 = arith.constant dense<0.000000e+00> : vector<8x256xf32>
    %49 = tpu.matmul %46, %48, %cst_32 {dimension_numbers = #tpu.dot_dimension_numbers<[1], [0], [0], [1], [0, 0, 1, 1], [], []>} : vector<8x128xbf16>, vector<128x256xbf16>, vector<8x256xf32> -> vector<8x256xf32>
    %50 = arith.addf %45, %49 : vector<8x256xf32>
    %51 = vector.extract_strided_slice %3 {offsets = [72, 0], sizes = [8, 128], strides = [1, 1]} : vector<136x128xbf16> to vector<8x128xbf16>
    %c9 = arith.constant 9 : index
    %c0_33 = arith.constant 0 : index
    %c0_34 = arith.constant 0 : index
    %52 = vector.load %arg3[%c9, %c0_33, %c0_34] : memref<17x128x256xbf16, #tpu.memory_space<vmem>>, vector<1x128x256xbf16>
    %53 = vector.shape_cast %52 : vector<1x128x256xbf16> to vector<128x256xbf16>
    %cst_35 = arith.constant dense<0.000000e+00> : vector<8x256xf32>
    %54 = tpu.matmul %51, %53, %cst_35 {dimension_numbers = #tpu.dot_dimension_numbers<[1], [0], [0], [1], [0, 0, 1, 1], [], []>} : vector<8x128xbf16>, vector<128x256xbf16>, vector<8x256xf32> -> vector<8x256xf32>
    %55 = arith.addf %50, %54 : vector<8x256xf32>
    %56 = vector.extract_strided_slice %3 {offsets = [80, 0], sizes = [8, 128], strides = [1, 1]} : vector<136x128xbf16> to vector<8x128xbf16>
    %c10 = arith.constant 10 : index
    %c0_36 = arith.constant 0 : index
    %c0_37 = arith.constant 0 : index
    %57 = vector.load %arg3[%c10, %c0_36, %c0_37] : memref<17x128x256xbf16, #tpu.memory_space<vmem>>, vector<1x128x256xbf16>
    %58 = vector.shape_cast %57 : vector<1x128x256xbf16> to vector<128x256xbf16>
    %cst_38 = arith.constant dense<0.000000e+00> : vector<8x256xf32>
    %59 = tpu.matmul %56, %58, %cst_38 {dimension_numbers = #tpu.dot_dimension_numbers<[1], [0], [0], [1], [0, 0, 1, 1], [], []>} : vector<8x128xbf16>, vector<128x256xbf16>, vector<8x256xf32> -> vector<8x256xf32>
    %60 = arith.addf %55, %59 : vector<8x256xf32>
    %61 = vector.extract_strided_slice %3 {offsets = [88, 0], sizes = [8, 128], strides = [1, 1]} : vector<136x128xbf16> to vector<8x128xbf16>
    %c11 = arith.constant 11 : index
    %c0_39 = arith.constant 0 : index
    %c0_40 = arith.constant 0 : index
    %62 = vector.load %arg3[%c11, %c0_39, %c0_40] : memref<17x128x256xbf16, #tpu.memory_space<vmem>>, vector<1x128x256xbf16>
    %63 = vector.shape_cast %62 : vector<1x128x256xbf16> to vector<128x256xbf16>
    %cst_41 = arith.constant dense<0.000000e+00> : vector<8x256xf32>
    %64 = tpu.matmul %61, %63, %cst_41 {dimension_numbers = #tpu.dot_dimension_numbers<[1], [0], [0], [1], [0, 0, 1, 1], [], []>} : vector<8x128xbf16>, vector<128x256xbf16>, vector<8x256xf32> -> vector<8x256xf32>
    %65 = arith.addf %60, %64 : vector<8x256xf32>
    %66 = vector.extract_strided_slice %3 {offsets = [96, 0], sizes = [8, 128], strides = [1, 1]} : vector<136x128xbf16> to vector<8x128xbf16>
    %c12 = arith.constant 12 : index
    %c0_42 = arith.constant 0 : index
    %c0_43 = arith.constant 0 : index
    %67 = vector.load %arg3[%c12, %c0_42, %c0_43] : memref<17x128x256xbf16, #tpu.memory_space<vmem>>, vector<1x128x256xbf16>
    %68 = vector.shape_cast %67 : vector<1x128x256xbf16> to vector<128x256xbf16>
    %cst_44 = arith.constant dense<0.000000e+00> : vector<8x256xf32>
    %69 = tpu.matmul %66, %68, %cst_44 {dimension_numbers = #tpu.dot_dimension_numbers<[1], [0], [0], [1], [0, 0, 1, 1], [], []>} : vector<8x128xbf16>, vector<128x256xbf16>, vector<8x256xf32> -> vector<8x256xf32>
    %70 = arith.addf %65, %69 : vector<8x256xf32>
    %71 = vector.extract_strided_slice %3 {offsets = [104, 0], sizes = [8, 128], strides = [1, 1]} : vector<136x128xbf16> to vector<8x128xbf16>
    %c13 = arith.constant 13 : index
    %c0_45 = arith.constant 0 : index
    %c0_46 = arith.constant 0 : index
    %72 = vector.load %arg3[%c13, %c0_45, %c0_46] : memref<17x128x256xbf16, #tpu.memory_space<vmem>>, vector<1x128x256xbf16>
    %73 = vector.shape_cast %72 : vector<1x128x256xbf16> to vector<128x256xbf16>
    %cst_47 = arith.constant dense<0.000000e+00> : vector<8x256xf32>
    %74 = tpu.matmul %71, %73, %cst_47 {dimension_numbers = #tpu.dot_dimension_numbers<[1], [0], [0], [1], [0, 0, 1, 1], [], []>} : vector<8x128xbf16>, vector<128x256xbf16>, vector<8x256xf32> -> vector<8x256xf32>
    %75 = arith.addf %70, %74 : vector<8x256xf32>
    %76 = vector.extract_strided_slice %3 {offsets = [112, 0], sizes = [8, 128], strides = [1, 1]} : vector<136x128xbf16> to vector<8x128xbf16>
    %c14 = arith.constant 14 : index
    %c0_48 = arith.constant 0 : index
    %c0_49 = arith.constant 0 : index
    %77 = vector.load %arg3[%c14, %c0_48, %c0_49] : memref<17x128x256xbf16, #tpu.memory_space<vmem>>, vector<1x128x256xbf16>
    %78 = vector.shape_cast %77 : vector<1x128x256xbf16> to vector<128x256xbf16>
    %cst_50 = arith.constant dense<0.000000e+00> : vector<8x256xf32>
    %79 = tpu.matmul %76, %78, %cst_50 {dimension_numbers = #tpu.dot_dimension_numbers<[1], [0], [0], [1], [0, 0, 1, 1], [], []>} : vector<8x128xbf16>, vector<128x256xbf16>, vector<8x256xf32> -> vector<8x256xf32>
    %80 = arith.addf %75, %79 : vector<8x256xf32>
    %81 = vector.extract_strided_slice %3 {offsets = [120, 0], sizes = [8, 128], strides = [1, 1]} : vector<136x128xbf16> to vector<8x128xbf16>
    %c15 = arith.constant 15 : index
    %c0_51 = arith.constant 0 : index
    %c0_52 = arith.constant 0 : index
    %82 = vector.load %arg3[%c15, %c0_51, %c0_52] : memref<17x128x256xbf16, #tpu.memory_space<vmem>>, vector<1x128x256xbf16>
    %83 = vector.shape_cast %82 : vector<1x128x256xbf16> to vector<128x256xbf16>
    %cst_53 = arith.constant dense<0.000000e+00> : vector<8x256xf32>
    %84 = tpu.matmul %81, %83, %cst_53 {dimension_numbers = #tpu.dot_dimension_numbers<[1], [0], [0], [1], [0, 0, 1, 1], [], []>} : vector<8x128xbf16>, vector<128x256xbf16>, vector<8x256xf32> -> vector<8x256xf32>
    %85 = arith.addf %80, %84 : vector<8x256xf32>
    %86 = vector.extract_strided_slice %3 {offsets = [128, 0], sizes = [8, 128], strides = [1, 1]} : vector<136x128xbf16> to vector<8x128xbf16>
    %c16 = arith.constant 16 : index
    %c0_54 = arith.constant 0 : index
    %c0_55 = arith.constant 0 : index
    %87 = vector.load %arg3[%c16, %c0_54, %c0_55] : memref<17x128x256xbf16, #tpu.memory_space<vmem>>, vector<1x128x256xbf16>
    %88 = vector.shape_cast %87 : vector<1x128x256xbf16> to vector<128x256xbf16>
    %cst_56 = arith.constant dense<0.000000e+00> : vector<8x256xf32>
    %89 = tpu.matmul %86, %88, %cst_56 {dimension_numbers = #tpu.dot_dimension_numbers<[1], [0], [0], [1], [0, 0, 1, 1], [], []>} : vector<8x128xbf16>, vector<128x256xbf16>, vector<8x256xf32> -> vector<8x256xf32>
    %90 = arith.addf %85, %89 : vector<8x256xf32>
    %cst_57 = arith.constant 0.000000e+00 : f32
    %91 = vector.broadcast %cst_57 : f32 to vector<8x256xf32>
    %92 = arith.maximumf %90, %91 : vector<8x256xf32>
    %93 = arith.truncf %92 : vector<8x256xf32> to vector<8x256xbf16>
    %c0_58 = arith.constant 0 : index
    %c0_59 = arith.constant 0 : index
    %94 = vector.load %arg5[%c0_58, %c0_59] : memref<256x128xbf16, #tpu.memory_space<vmem>>, vector<256x128xbf16>
    %cst_60 = arith.constant dense<0.000000e+00> : vector<8x128xf32>
    %95 = tpu.matmul %93, %94, %cst_60 {dimension_numbers = #tpu.dot_dimension_numbers<[1], [0], [0], [1], [0, 0, 1, 1], [], []>} : vector<8x256xbf16>, vector<256x128xbf16>, vector<8x128xf32> -> vector<8x128xf32>
    %c0_61 = arith.constant 0 : index
    %c0_62 = arith.constant 0 : index
    %96 = vector.load %arg6[%c0_61, %c0_62] : memref<1x128xf32, #tpu.memory_space<vmem>>, vector<1x128xf32>
    %97 = vector.broadcast %96 : vector<1x128xf32> to vector<8x128xf32>
    %98 = arith.addf %95, %97 : vector<8x128xf32>
    %c0_63 = arith.constant 0 : index
    %c0_64 = arith.constant 0 : index
    %99 = vector.load %arg7[%c0_63, %c0_64] : memref<8x128xf32, #tpu.memory_space<vmem>>, vector<8x128xf32>
    tpu.vector_store %arg7[%c0_63, %c0_64], %98 {strides = array<i32>} : memref<8x128xf32, #tpu.memory_space<vmem>>, vector<8x128xf32>,
    return
  }
  func.func @transform_0(%arg0: i32) -> (i32, i32) {
    %c0_i32 = arith.constant 0 : i32
    %c0_i32_0 = arith.constant 0 : i32
    %c0_i32_1 = arith.constant 0 : i32
    return %c0_i32, %c0_i32_0 : i32, i32
  }
  func.func @transform_1(%arg0: i32) -> (i32, i32) {
    %c0_i32 = arith.constant 0 : i32
    %c0_i32_0 = arith.constant 0 : i32
    %c0_i32_1 = arith.constant 0 : i32
    return %c0_i32, %c0_i32_0 : i32, i32
  }
  func.func @transform_2(%arg0: i32) -> (i32, i32, i32) {
    %c0_i32 = arith.constant 0 : i32
    %c0_i32_0 = arith.constant 0 : i32
    %c0_i32_1 = arith.constant 0 : i32
    %c0_i32_2 = arith.constant 0 : i32
    return %c0_i32, %c0_i32_0, %c0_i32_1 : i32, i32, i32
  }
  func.func @transform_3(%arg0: i32) -> (i32, i32) {
    %c0_i32 = arith.constant 0 : i32
    %c0_i32_0 = arith.constant 0 : i32
    %c0_i32_1 = arith.constant 0 : i32
    return %c0_i32, %c0_i32_0 : i32, i32
  }
  func.func @transform_4(%arg0: i32) -> (i32, i32) {
    %c0_i32 = arith.constant 0 : i32
    %c0_i32_0 = arith.constant 0 : i32
    %c0_i32_1 = arith.constant 0 : i32
    return %c0_i32, %c0_i32_0 : i32, i32
  }
  func.func @transform_5(%arg0: i32) -> (i32, i32) {
    %c0_i32 = arith.constant 0 : i32
    %c0_i32_0 = arith.constant 0 : i32
    %c0_i32_1 = arith.constant 0 : i32
    return %c0_i32, %c0_i32_0 : i32, i32
  }
  func.func @transform_6(%arg0: i32) -> (i32, i32) {
    %c0_i32 = arith.constant 0 : i32
    %c0_i32_0 = arith.constant 0 : i32
    %c0_i32_1 = arith.constant 0 : i32
    return %c0_i32, %c0_i32_0 : i32, i32
  }
}

</mosaic_0001>

<llo_original>
// kernel: wsplin_ip_forward.1
$region0: #{wsplin_ip_forward.1}
  #allocation0 [shape = 'u32[]', space=smem, size = 0x4, offset = 0x4, fixed_abs, tag = 'smem constant byte address 0x4 - core index']
  #allocation1 [shape = 'u32[144,128]{1,0:T(1,128)}', space=vmem, size = 0x12000, scoped, tag = 'internal scratch']
  %s0 = inlined_call_operand.vmem [shape: bf16[136,1024], index: 0, kind: input, shape index: {}]
  %s1 = inlined_call_operand.vmem [shape: bf16[1024,128], index: 1, kind: input, shape index: {}]
  %s2 = inlined_call_operand.vmem [shape: bf16[17,128,256], index: 2, kind: input, shape index: {}]
  %s3 = inlined_call_operand.vmem [shape: f32[1,256], index: 3, kind: input, shape index: {}]
  %s4 = inlined_call_operand.vmem [shape: bf16[256,128], index: 4, kind: input, shape index: {}]
  %s5 = inlined_call_operand.vmem [shape: f32[1,128], index: 5, kind: input, shape index: {}]
  %s6 = inlined_call_operand.vmem [shape: f32[8,128], index: 6, kind: output, shape index: {}]
  %s7 = sld [smem:[#allocation0]]
  $region34: #{wsplin_ip_forward.1} parent=0
    _
  %s9 = ssub.s32 1, %s7
  %s10 = scalar_select 0, %s9, %s7
  // Predicated region
  $region2: #{wsplin_ip_forward.1} parent=0 // pred_check
    _
  $region3: #{wsplin_ip_forward.1} parent=0 // pred_check_branch
    %12 = sbr.rel (0) target = $region5
  $region4: #{wsplin_ip_forward.1} parent=0 // pred_region
    _
  $region5: #{wsplin_ip_forward.1} parent=0 // pred_fallthru
    _
  // Predicated region
  $region6: #{wsplin_ip_forward.1} parent=0 // pred_check
    _
  $region7: #{wsplin_ip_forward.1} parent=0 // pred_check_branch
    %14 = sbr.rel (0) target = $region9
  $region8: #{wsplin_ip_forward.1} parent=0 // pred_region
    _
  $region9: #{wsplin_ip_forward.1} parent=0 // pred_fallthru
    _
  // Predicated region
  $region10: #{wsplin_ip_forward.1} parent=0 // pred_check
    _
  $region11: #{wsplin_ip_forward.1} parent=0 // pred_check_branch
    %16 = sbr.rel (0) target = $region13
  $region12: #{wsplin_ip_forward.1} parent=0 // pred_region
    _
  $region13: #{wsplin_ip_forward.1} parent=0 // pred_fallthru
    _
  // Predicated region
  $region14: #{wsplin_ip_forward.1} parent=0 // pred_check
    _
  $region15: #{wsplin_ip_forward.1} parent=0 // pred_check_branch
    %18 = sbr.rel (0) target = $region17
  $region16: #{wsplin_ip_forward.1} parent=0 // pred_region
    _
  $region17: #{wsplin_ip_forward.1} parent=0 // pred_fallthru
    _
  // Predicated region
  $region18: #{wsplin_ip_forward.1} parent=0 // pred_check
    _
  $region19: #{wsplin_ip_forward.1} parent=0 // pred_check_branch
    %20 = sbr.rel (0) target = $region21
  $region20: #{wsplin_ip_forward.1} parent=0 // pred_region
    _
  $region21: #{wsplin_ip_forward.1} parent=0 // pred_fallthru
    _
  // Predicated region
  $region22: #{wsplin_ip_forward.1} parent=0 // pred_check
    _
  $region23: #{wsplin_ip_forward.1} parent=0 // pred_check_branch
    %22 = sbr.rel (0) target = $region25
  $region24: #{wsplin_ip_forward.1} parent=0 // pred_region
    _
  $region25: #{wsplin_ip_forward.1} parent=0 // pred_fallthru
    _
  %v24 = vld [vmem:[%s0] sm:$0xff]
  %v25 = vld [vmem:[%s0 + $0x8] sm:$0xff]
  %v26 = vld [vmem:[%s0 + $0x10] sm:$0xff]
  %v27 = vld [vmem:[%s0 + $0x18] sm:$0xff]
  %v28 = vld [vmem:[%s0 + $0x20] sm:$0xff]
  %v29 = vld [vmem:[%s0 + $0x28] sm:$0xff]
  %v30 = vld [vmem:[%s0 + $0x30] sm:$0xff]
  %v31 = vld [vmem:[%s0 + $0x38] sm:$0xff]
  %v32 = vld [vmem:[%s0 + $0x40] sm:$0xff]
  %v33 = vld [vmem:[%s0 + $0x48] sm:$0xff]
  %v34 = vld [vmem:[%s0 + $0x50] sm:$0xff]
  %v35 = vld [vmem:[%s0 + $0x58] sm:$0xff]
  %v36 = vld [vmem:[%s0 + $0x60] sm:$0xff]
  %v37 = vld [vmem:[%s0 + $0x68] sm:$0xff]
  %v38 = vld [vmem:[%s0 + $0x70] sm:$0xff]
  %v39 = vld [vmem:[%s0 + $0x78] sm:$0xff]
  %v40 = vld [vmem:[%s0 + $0x80] sm:$0xff]
  %v41 = vld [vmem:[%s0 + $0x88] sm:$0xff]
  %v42 = vld [vmem:[%s0 + $0x90] sm:$0xff]
  %v43 = vld [vmem:[%s0 + $0x98] sm:$0xff]
  %v44 = vld [vmem:[%s0 + $0xa0] sm:$0xff]
  %v45 = vld [vmem:[%s0 + $0xa8] sm:$0xff]
  %v46 = vld [vmem:[%s0 + $0xb0] sm:$0xff]
  %v47 = vld [vmem:[%s0 + $0xb8] sm:$0xff]
  %v48 = vld [vmem:[%s0 + $0xc0] sm:$0xff]
  %v49 = vld [vmem:[%s0 + $0xc8] sm:$0xff]
  %v50 = vld [vmem:[%s0 + $0xd0] sm:$0xff]
  %v51 = vld [vmem:[%s0 + $0xd8] sm:$0xff]
  %v52 = vld [vmem:[%s0 + $0xe0] sm:$0xff]
  %v53 = vld [vmem:[%s0 + $0xe8] sm:$0xff]
  %v54 = vld [vmem:[%s0 + $0xf0] sm:$0xff]
  %v55 = vld [vmem:[%s0 + $0xf8] sm:$0xff]
  %v56 = vld [vmem:[%s0 + $0x100] sm:$0xff]
  %v57 = vld [vmem:[%s0 + $0x108] sm:$0xff]
  %v58 = vld [vmem:[%s0 + $0x110] sm:$0xff]
  %v59 = vld [vmem:[%s0 + $0x118] sm:$0xff]
  %v60 = vld [vmem:[%s0 + $0x120] sm:$0xff]
  %v61 = vld [vmem:[%s0 + $0x128] sm:$0xff]
  %v62 = vld [vmem:[%s0 + $0x130] sm:$0xff]
  %v63 = vld [vmem:[%s0 + $0x138] sm:$0xff]
  %v64 = vld [vmem:[%s0 + $0x140] sm:$0xff]
  %v65 = vld [vmem:[%s0 + $0x148] sm:$0xff]
  %v66 = vld [vmem:[%s0 + $0x150] sm:$0xff]
  %v67 = vld [vmem:[%s0 + $0x158] sm:$0xff]
  %v68 = vld [vmem:[%s0 + $0x160] sm:$0xff]
  %v69 = vld [vmem:[%s0 + $0x168] sm:$0xff]
  %v70 = vld [vmem:[%s0 + $0x170] sm:$0xff]
  %v71 = vld [vmem:[%s0 + $0x178] sm:$0xff]
  %v72 = vld [vmem:[%s0 + $0x180] sm:$0xff]
  %v73 = vld [vmem:[%s0 + $0x188] sm:$0xff]
  %v74 = vld [vmem:[%s0 + $0x190] sm:$0xff]
  %v75 = vld [vmem:[%s0 + $0x198] sm:$0xff]
  %v76 = vld [vmem:[%s0 + $0x1a0] sm:$0xff]
  %v77 = vld [vmem:[%s0 + $0x1a8] sm:$0xff]
  %v78 = vld [vmem:[%s0 + $0x1b0] sm:$0xff]
  %v79 = vld [vmem:[%s0 + $0x1b8] sm:$0xff]
  %v80 = vld [vmem:[%s0 + $0x1c0] sm:$0xff]
  %v81 = vld [vmem:[%s0 + $0x1c8] sm:$0xff]
  %v82 = vld [vmem:[%s0 + $0x1d0] sm:$0xff]
  %v83 = vld [vmem:[%s0 + $0x1d8] sm:$0xff]
  %v84 = vld [vmem:[%s0 + $0x1e0] sm:$0xff]
  %v85 = vld [vmem:[%s0 + $0x1e8] sm:$0xff]
  %v86 = vld [vmem:[%s0 + $0x1f0] sm:$0xff]
  %v87 = vld [vmem:[%s0 + $0x1f8] sm:$0xff]
  %v88 = vld [vmem:[%s0 + $0x200] sm:$0xff]
  %v89 = vld [vmem:[%s0 + $0x208] sm:$0xff]
  %v90 = vld [vmem:[%s0 + $0x210] sm:$0xff]
  %v91 = vld [vmem:[%s0 + $0x218] sm:$0xff]
  %v92 = vld [vmem:[%s1] sm:$0xf]
  %v93 = vld [vmem:[%s1 + $0x4] sm:$0xf]
  %v94 = vld [vmem:[%s1 + $0x8] sm:$0xf]
  %v95 = vld [vmem:[%s1 + $0xc] sm:$0xf]
  %v96 = vld [vmem:[%s1 + $0x10] sm:$0xf]
  %v97 = vld [vmem:[%s1 + $0x14] sm:$0xf]
  %v98 = vld [vmem:[%s1 + $0x18] sm:$0xf]
  %v99 = vld [vmem:[%s1 + $0x1c] sm:$0xf]
  %v100 = vld [vmem:[%s1 + $0x20] sm:$0xf]
  %v101 = vld [vmem:[%s1 + $0x24] sm:$0xf]
  %v102 = vld [vmem:[%s1 + $0x28] sm:$0xf]
  %v103 = vld [vmem:[%s1 + $0x2c] sm:$0xf]
  %v104 = vld [vmem:[%s1 + $0x30] sm:$0xf]
  %v105 = vld [vmem:[%s1 + $0x34] sm:$0xf]
  %v106 = vld [vmem:[%s1 + $0x38] sm:$0xf]
  %v107 = vld [vmem:[%s1 + $0x3c] sm:$0xf]
  %v108 = vld [vmem:[%s1 + $0x40] sm:$0xf]
  %v109 = vld [vmem:[%s1 + $0x44] sm:$0xf]
  %v110 = vld [vmem:[%s1 + $0x48] sm:$0xf]
  %v111 = vld [vmem:[%s1 + $0x4c] sm:$0xf]
  %v112 = vld [vmem:[%s1 + $0x50] sm:$0xf]
  %v113 = vld [vmem:[%s1 + $0x54] sm:$0xf]
  %v114 = vld [vmem:[%s1 + $0x58] sm:$0xf]
  %v115 = vld [vmem:[%s1 + $0x5c] sm:$0xf]
  %v116 = vld [vmem:[%s1 + $0x60] sm:$0xf]
  %v117 = vld [vmem:[%s1 + $0x64] sm:$0xf]
  %v118 = vld [vmem:[%s1 + $0x68] sm:$0xf]
  %v119 = vld [vmem:[%s1 + $0x6c] sm:$0xf]
  %v120 = vld [vmem:[%s1 + $0x70] sm:$0xf]
  %v121 = vld [vmem:[%s1 + $0x74] sm:$0xf]
  %v122 = vld [vmem:[%s1 + $0x78] sm:$0xf]
  %v123 = vld [vmem:[%s1 + $0x7c] sm:$0xf]
  %v124 = vld [vmem:[%s1 + $0x80] sm:$0xf]
  %v125 = vld [vmem:[%s1 + $0x84] sm:$0xf]
  %v126 = vld [vmem:[%s1 + $0x88] sm:$0xf]
  %v127 = vld [vmem:[%s1 + $0x8c] sm:$0xf]
  %v128 = vld [vmem:[%s1 + $0x90] sm:$0xf]
  %v129 = vld [vmem:[%s1 + $0x94] sm:$0xf]
  %v130 = vld [vmem:[%s1 + $0x98] sm:$0xf]
  %v131 = vld [vmem:[%s1 + $0x9c] sm:$0xf]
  %v132 = vld [vmem:[%s1 + $0xa0] sm:$0xf]
  %v133 = vld [vmem:[%s1 + $0xa4] sm:$0xf]
  %v134 = vld [vmem:[%s1 + $0xa8] sm:$0xf]
  %v135 = vld [vmem:[%s1 + $0xac] sm:$0xf]
  %v136 = vld [vmem:[%s1 + $0xb0] sm:$0xf]
  %v137 = vld [vmem:[%s1 + $0xb4] sm:$0xf]
  %v138 = vld [vmem:[%s1 + $0xb8] sm:$0xf]
  %v139 = vld [vmem:[%s1 + $0xbc] sm:$0xf]
  %v140 = vld [vmem:[%s1 + $0xc0] sm:$0xf]
  %v141 = vld [vmem:[%s1 + $0xc4] sm:$0xf]
  %v142 = vld [vmem:[%s1 + $0xc8] sm:$0xf]
  %v143 = vld [vmem:[%s1 + $0xcc] sm:$0xf]
  %v144 = vld [vmem:[%s1 + $0xd0] sm:$0xf]
  %v145 = vld [vmem:[%s1 + $0xd4] sm:$0xf]
  %v146 = vld [vmem:[%s1 + $0xd8] sm:$0xf]
  %v147 = vld [vmem:[%s1 + $0xdc] sm:$0xf]
  %v148 = vld [vmem:[%s1 + $0xe0] sm:$0xf]
  %v149 = vld [vmem:[%s1 + $0xe4] sm:$0xf]
  %v150 = vld [vmem:[%s1 + $0xe8] sm:$0xf]
  %v151 = vld [vmem:[%s1 + $0xec] sm:$0xf]
  %v152 = vld [vmem:[%s1 + $0xf0] sm:$0xf]
  %v153 = vld [vmem:[%s1 + $0xf4] sm:$0xf]
  %v154 = vld [vmem:[%s1 + $0xf8] sm:$0xf]
  %v155 = vld [vmem:[%s1 + $0xfc] sm:$0xf]
  %v156 = vld [vmem:[%s1 + $0x100] sm:$0xf]
  %v157 = vld [vmem:[%s1 + $0x104] sm:$0xf]
  %v158 = vld [vmem:[%s1 + $0x108] sm:$0xf]
  %v159 = vld [vmem:[%s1 + $0x10c] sm:$0xf]
  %v160 = vld [vmem:[%s1 + $0x110] sm:$0xf]
  %v161 = vld [vmem:[%s1 + $0x114] sm:$0xf]
  %v162 = vld [vmem:[%s1 + $0x118] sm:$0xf]
  %v163 = vld [vmem:[%s1 + $0x11c] sm:$0xf]
  %v164 = vld [vmem:[%s1 + $0x120] sm:$0xf]
  %v165 = vld [vmem:[%s1 + $0x124] sm:$0xf]
  %v166 = vld [vmem:[%s1 + $0x128] sm:$0xf]
  %v167 = vld [vmem:[%s1 + $0x12c] sm:$0xf]
  %v168 = vld [vmem:[%s1 + $0x130] sm:$0xf]
  %v169 = vld [vmem:[%s1 + $0x134] sm:$0xf]
  %v170 = vld [vmem:[%s1 + $0x138] sm:$0xf]
  %v171 = vld [vmem:[%s1 + $0x13c] sm:$0xf]
  %v172 = vld [vmem:[%s1 + $0x140] sm:$0xf]
  %v173 = vld [vmem:[%s1 + $0x144] sm:$0xf]
  %v174 = vld [vmem:[%s1 + $0x148] sm:$0xf]
  %v175 = vld [vmem:[%s1 + $0x14c] sm:$0xf]
  %v176 = vld [vmem:[%s1 + $0x150] sm:$0xf]
  %v177 = vld [vmem:[%s1 + $0x154] sm:$0xf]
  %v178 = vld [vmem:[%s1 + $0x158] sm:$0xf]
  %v179 = vld [vmem:[%s1 + $0x15c] sm:$0xf]
  %v180 = vld [vmem:[%s1 + $0x160] sm:$0xf]
  %v181 = vld [vmem:[%s1 + $0x164] sm:$0xf]
  %v182 = vld [vmem:[%s1 + $0x168] sm:$0xf]
  %v183 = vld [vmem:[%s1 + $0x16c] sm:$0xf]
  %v184 = vld [vmem:[%s1 + $0x170] sm:$0xf]
  %v185 = vld [vmem:[%s1 + $0x174] sm:$0xf]
  %v186 = vld [vmem:[%s1 + $0x178] sm:$0xf]
  %v187 = vld [vmem:[%s1 + $0x17c] sm:$0xf]
  %v188 = vld [vmem:[%s1 + $0x180] sm:$0xf]
  %v189 = vld [vmem:[%s1 + $0x184] sm:$0xf]
  %v190 = vld [vmem:[%s1 + $0x188] sm:$0xf]
  %v191 = vld [vmem:[%s1 + $0x18c] sm:$0xf]
  %v192 = vld [vmem:[%s1 + $0x190] sm:$0xf]
  %v193 = vld [vmem:[%s1 + $0x194] sm:$0xf]
  %v194 = vld [vmem:[%s1 + $0x198] sm:$0xf]
  %v195 = vld [vmem:[%s1 + $0x19c] sm:$0xf]
  %v196 = vld [vmem:[%s1 + $0x1a0] sm:$0xf]
  %v197 = vld [vmem:[%s1 + $0x1a4] sm:$0xf]
  %v198 = vld [vmem:[%s1 + $0x1a8] sm:$0xf]
  %v199 = vld [vmem:[%s1 + $0x1ac] sm:$0xf]
  %v200 = vld [vmem:[%s1 + $0x1b0] sm:$0xf]
  %v201 = vld [vmem:[%s1 + $0x1b4] sm:$0xf]
  %v202 = vld [vmem:[%s1 + $0x1b8] sm:$0xf]
  %v203 = vld [vmem:[%s1 + $0x1bc] sm:$0xf]
  %v204 = vld [vmem:[%s1 + $0x1c0] sm:$0xf]
  %v205 = vld [vmem:[%s1 + $0x1c4] sm:$0xf]
  %v206 = vld [vmem:[%s1 + $0x1c8] sm:$0xf]
  %v207 = vld [vmem:[%s1 + $0x1cc] sm:$0xf]
  %v208 = vld [vmem:[%s1 + $0x1d0] sm:$0xf]
  %v209 = vld [vmem:[%s1 + $0x1d4] sm:$0xf]
  %v210 = vld [vmem:[%s1 + $0x1d8] sm:$0xf]
  %v211 = vld [vmem:[%s1 + $0x1dc] sm:$0xf]
  %v212 = vld [vmem:[%s1 + $0x1e0] sm:$0xf]
  %v213 = vld [vmem:[%s1 + $0x1e4] sm:$0xf]
  %v214 = vld [vmem:[%s1 + $0x1e8] sm:$0xf]
  %v215 = vld [vmem:[%s1 + $0x1ec] sm:$0xf]
  %v216 = vld [vmem:[%s1 + $0x1f0] sm:$0xf]
  %v217 = vld [vmem:[%s1 + $0x1f4] sm:$0xf]
  %v218 = vld [vmem:[%s1 + $0x1f8] sm:$0xf]
  %v219 = vld [vmem:[%s1 + $0x1fc] sm:$0xf]
  %v288 = vunpack.c.l.b16 %v24
  %v289 = vunpack.c.h.b16 %v24
  %v290 = vunpack.c.l.b16 %v25
  %v291 = vunpack.c.h.b16 %v25
  %v292 = vunpack.c.l.b16 %v26
  %v293 = vunpack.c.h.b16 %v26
  %v294 = vunpack.c.l.b16 %v27
  %v295 = vunpack.c.h.b16 %v27
  %v296 = vunpack.c.l.b16 %v28
  %v297 = vunpack.c.h.b16 %v28
  %v298 = vunpack.c.l.b16 %v29
  %v299 = vunpack.c.h.b16 %v29
  %v300 = vunpack.c.l.b16 %v30
  %v301 = vunpack.c.h.b16 %v30
  %v302 = vunpack.c.l.b16 %v31
  %v303 = vunpack.c.h.b16 %v31
  %v304 = vunpack.c.l.b16 %v32
  %v305 = vunpack.c.h.b16 %v32
  %v306 = vunpack.c.l.b16 %v33
  %v307 = vunpack.c.h.b16 %v33
  %v308 = vunpack.c.l.b16 %v34
  %v309 = vunpack.c.h.b16 %v34
  %v310 = vunpack.c.l.b16 %v35
  %v311 = vunpack.c.h.b16 %v35
  %v312 = vunpack.c.l.b16 %v36
  %v313 = vunpack.c.h.b16 %v36
  %v314 = vunpack.c.l.b16 %v37
  %v315 = vunpack.c.h.b16 %v37
  %v316 = vunpack.c.l.b16 %v38
  %v317 = vunpack.c.h.b16 %v38
  %v318 = vunpack.c.l.b16 %v39
  %v319 = vunpack.c.h.b16 %v39
  %v320 = vunpack.c.l.b16 %v40
  %v321 = vunpack.c.h.b16 %v40
  %v322 = vunpack.c.l.b16 %v41
  %v323 = vunpack.c.h.b16 %v41
  %v324 = vunpack.c.l.b16 %v42
  %v325 = vunpack.c.h.b16 %v42
  %v326 = vunpack.c.l.b16 %v43
  %v327 = vunpack.c.h.b16 %v43
  %v328 = vunpack.c.l.b16 %v44
  %v329 = vunpack.c.h.b16 %v44
  %v330 = vunpack.c.l.b16 %v45
  %v331 = vunpack.c.h.b16 %v45
  %v332 = vunpack.c.l.b16 %v46
  %v333 = vunpack.c.h.b16 %v46
  %v334 = vunpack.c.l.b16 %v47
  %v335 = vunpack.c.h.b16 %v47
  %v336 = vunpack.c.l.b16 %v48
  %v337 = vunpack.c.h.b16 %v48
  %v338 = vunpack.c.l.b16 %v49
  %v339 = vunpack.c.h.b16 %v49
  %v340 = vunpack.c.l.b16 %v50
  %v341 = vunpack.c.h.b16 %v50
  %v342 = vunpack.c.l.b16 %v51
  %v343 = vunpack.c.h.b16 %v51
  %v344 = vunpack.c.l.b16 %v52
  %v345 = vunpack.c.h.b16 %v52
  %v346 = vunpack.c.l.b16 %v53
  %v347 = vunpack.c.h.b16 %v53
  %v348 = vunpack.c.l.b16 %v54
  %v349 = vunpack.c.h.b16 %v54
  %v350 = vunpack.c.l.b16 %v55
  %v351 = vunpack.c.h.b16 %v55
  %v352 = vunpack.c.l.b16 %v56
  %v353 = vunpack.c.h.b16 %v56
  %v354 = vunpack.c.l.b16 %v57
  %v355 = vunpack.c.h.b16 %v57
  %v356 = vunpack.c.l.b16 %v58
  %v357 = vunpack.c.h.b16 %v58
  %v358 = vunpack.c.l.b16 %v59
  %v359 = vunpack.c.h.b16 %v59
  %v360 = vunpack.c.l.b16 %v60
  %v361 = vunpack.c.h.b16 %v60
  %v362 = vunpack.c.l.b16 %v61
  %v363 = vunpack.c.h.b16 %v61
  %v364 = vunpack.c.l.b16 %v62
  %v365 = vunpack.c.h.b16 %v62
  %v366 = vunpack.c.l.b16 %v63
  %v367 = vunpack.c.h.b16 %v63
  %v368 = vunpack.c.l.b16 %v64
  %v369 = vunpack.c.h.b16 %v64
  %v370 = vunpack.c.l.b16 %v65
  %v371 = vunpack.c.h.b16 %v65
  %v372 = vunpack.c.l.b16 %v66
  %v373 = vunpack.c.h.b16 %v66
  %v374 = vunpack.c.l.b16 %v67
  %v375 = vunpack.c.h.b16 %v67
  %v376 = vunpack.c.l.b16 %v68
  %v377 = vunpack.c.h.b16 %v68
  %v378 = vunpack.c.l.b16 %v69
  %v379 = vunpack.c.h.b16 %v69
  %v380 = vunpack.c.l.b16 %v70
  %v381 = vunpack.c.h.b16 %v70
  %v382 = vunpack.c.l.b16 %v71
  %v383 = vunpack.c.h.b16 %v71
  %v384 = vunpack.c.l.b16 %v72
  %v385 = vunpack.c.h.b16 %v72
  %v386 = vunpack.c.l.b16 %v73
  %v387 = vunpack.c.h.b16 %v73
  %v388 = vunpack.c.l.b16 %v74
  %v389 = vunpack.c.h.b16 %v74
  %v390 = vunpack.c.l.b16 %v75
  %v391 = vunpack.c.h.b16 %v75
  %v392 = vunpack.c.l.b16 %v76
  %v393 = vunpack.c.h.b16 %v76
  %v394 = vunpack.c.l.b16 %v77
  %v395 = vunpack.c.h.b16 %v77
  %v396 = vunpack.c.l.b16 %v78
  %v397 = vunpack.c.h.b16 %v78
  %v398 = vunpack.c.l.b16 %v79
  %v399 = vunpack.c.h.b16 %v79
  %v400 = vunpack.c.l.b16 %v80
  %v401 = vunpack.c.h.b16 %v80
  %v402 = vunpack.c.l.b16 %v81
  %v403 = vunpack.c.h.b16 %v81
  %v404 = vunpack.c.l.b16 %v82
  %v405 = vunpack.c.h.b16 %v82
  %v406 = vunpack.c.l.b16 %v83
  %v407 = vunpack.c.h.b16 %v83
  %v408 = vunpack.c.l.b16 %v84
  %v409 = vunpack.c.h.b16 %v84
  %v410 = vunpack.c.l.b16 %v85
  %v411 = vunpack.c.h.b16 %v85
  %v412 = vunpack.c.l.b16 %v86
  %v413 = vunpack.c.h.b16 %v86
  %v414 = vunpack.c.l.b16 %v87
  %v415 = vunpack.c.h.b16 %v87
  %v416 = vunpack.c.l.b16 %v88
  %v417 = vunpack.c.h.b16 %v88
  %v418 = vunpack.c.l.b16 %v89
  %v419 = vunpack.c.h.b16 %v89
  %v420 = vunpack.c.l.b16 %v90
  %v421 = vunpack.c.h.b16 %v90
  %v422 = vunpack.c.l.b16 %v91
  %v423 = vunpack.c.h.b16 %v91
  %v424 = vpack.c.b16 %v296, %v288
  %v425 = vpack.c.b16 %v297, %v289
  %v426 = vpack.c.b16 %v298, %v290
  %v427 = vpack.c.b16 %v299, %v291
  %v428 = vpack.c.b16 %v300, %v292
  %v429 = vpack.c.b16 %v301, %v293
  %v430 = vpack.c.b16 %v302, %v294
  %v431 = vpack.c.b16 %v303, %v295
  %v432 = vpack.c.b16 %v312, %v304
  %v433 = vpack.c.b16 %v313, %v305
  %v434 = vpack.c.b16 %v314, %v306
  %v435 = vpack.c.b16 %v315, %v307
  %v436 = vpack.c.b16 %v316, %v308
  %v437 = vpack.c.b16 %v317, %v309
  %v438 = vpack.c.b16 %v318, %v310
  %v439 = vpack.c.b16 %v319, %v311
  %v440 = vpack.c.b16 %v328, %v320
  %v441 = vpack.c.b16 %v329, %v321
  %v442 = vpack.c.b16 %v330, %v322
  %v443 = vpack.c.b16 %v331, %v323
  %v444 = vpack.c.b16 %v332, %v324
  %v445 = vpack.c.b16 %v333, %v325
  %v446 = vpack.c.b16 %v334, %v326
  %v447 = vpack.c.b16 %v335, %v327
  %v448 = vpack.c.b16 %v344, %v336
  %v449 = vpack.c.b16 %v345, %v337
  %v450 = vpack.c.b16 %v346, %v338
  %v451 = vpack.c.b16 %v347, %v339
  %v452 = vpack.c.b16 %v348, %v340
  %v453 = vpack.c.b16 %v349, %v341
  %v454 = vpack.c.b16 %v350, %v342
  %v455 = vpack.c.b16 %v351, %v343
  %v456 = vpack.c.b16 %v360, %v352
  %v457 = vpack.c.b16 %v361, %v353
  %v458 = vpack.c.b16 %v362, %v354
  %v459 = vpack.c.b16 %v363, %v355
  %v460 = vpack.c.b16 %v364, %v356
  %v461 = vpack.c.b16 %v365, %v357
  %v462 = vpack.c.b16 %v366, %v358
  %v463 = vpack.c.b16 %v367, %v359
  %v464 = vpack.c.b16 %v376, %v368
  %v465 = vpack.c.b16 %v377, %v369
  %v466 = vpack.c.b16 %v378, %v370
  %v467 = vpack.c.b16 %v379, %v371
  %v468 = vpack.c.b16 %v380, %v372
  %v469 = vpack.c.b16 %v381, %v373
  %v470 = vpack.c.b16 %v382, %v374
  %v471 = vpack.c.b16 %v383, %v375
  %v472 = vpack.c.b16 %v392, %v384
  %v473 = vpack.c.b16 %v393, %v385
  %v474 = vpack.c.b16 %v394, %v386
  %v475 = vpack.c.b16 %v395, %v387
  %v476 = vpack.c.b16 %v396, %v388
  %v477 = vpack.c.b16 %v397, %v389
  %v478 = vpack.c.b16 %v398, %v390
  %v479 = vpack.c.b16 %v399, %v391
  %v480 = vpack.c.b16 %v408, %v400
  %v481 = vpack.c.b16 %v409, %v401
  %v482 = vpack.c.b16 %v410, %v402
  %v483 = vpack.c.b16 %v411, %v403
  %v484 = vpack.c.b16 %v412, %v404
  %v485 = vpack.c.b16 %v413, %v405
  %v486 = vpack.c.b16 %v414, %v406
  %v487 = vpack.c.b16 %v415, %v407
  %v488 = vpack.c.b16 %v416, %v416
  %v489 = vpack.c.b16 %v417, %v417
  %v490 = vpack.c.b16 %v418, %v418
  %v491 = vpack.c.b16 %v419, %v419
  %v492 = vpack.c.b16 %v420, %v420
  %v493 = vpack.c.b16 %v421, %v421
  %v494 = vpack.c.b16 %v422, %v422
  %v495 = vpack.c.b16 %v423, %v423
  %v696 = vunpack.c.l.b16 %v92
  %v697 = vunpack.c.l.b16 %v93
  %v698 = vunpack.c.l.b16 %v94
  %v699 = vunpack.c.l.b16 %v95
  %v700 = vunpack.c.l.b16 %v96
  %v701 = vunpack.c.l.b16 %v97
  %v702 = vunpack.c.l.b16 %v98
  %v703 = vunpack.c.l.b16 %v99
  %v704 = vunpack.c.l.b16 %v100
  %v705 = vunpack.c.l.b16 %v101
  %v706 = vunpack.c.l.b16 %v102
  %v707 = vunpack.c.l.b16 %v103
  %v708 = vunpack.c.l.b16 %v104
  %v709 = vunpack.c.l.b16 %v105
  %v710 = vunpack.c.l.b16 %v106
  %v711 = vunpack.c.l.b16 %v107
  %v712 = vunpack.c.l.b16 %v108
  %v713 = vunpack.c.l.b16 %v109
  %v714 = vunpack.c.l.b16 %v110
  %v715 = vunpack.c.l.b16 %v111
  %v716 = vunpack.c.l.b16 %v112
  %v717 = vunpack.c.l.b16 %v113
  %v718 = vunpack.c.l.b16 %v114
  %v719 = vunpack.c.l.b16 %v115
  %v720 = vunpack.c.l.b16 %v116
  %v721 = vunpack.c.l.b16 %v117
  %v722 = vunpack.c.l.b16 %v118
  %v723 = vunpack.c.l.b16 %v119
  %v724 = vunpack.c.l.b16 %v120
  %v725 = vunpack.c.l.b16 %v121
  %v726 = vunpack.c.l.b16 %v122
  %v727 = vunpack.c.l.b16 %v123
  %v728 = vunpack.c.l.b16 %v124
  %v729 = vunpack.c.l.b16 %v125
  %v730 = vunpack.c.l.b16 %v126
  %v731 = vunpack.c.l.b16 %v127
  %v732 = vunpack.c.l.b16 %v128
  %v733 = vunpack.c.l.b16 %v129
  %v734 = vunpack.c.l.b16 %v130
  %v735 = vunpack.c.l.b16 %v131
  %v736 = vunpack.c.l.b16 %v132
  %v737 = vunpack.c.l.b16 %v133
  %v738 = vunpack.c.l.b16 %v134
  %v739 = vunpack.c.l.b16 %v135
  %v740 = vunpack.c.l.b16 %v136
  %v741 = vunpack.c.l.b16 %v137
  %v742 = vunpack.c.l.b16 %v138
  %v743 = vunpack.c.l.b16 %v139
  %v744 = vunpack.c.l.b16 %v140
  %v745 = vunpack.c.l.b16 %v141
  %v746 = vunpack.c.l.b16 %v142
  %v747 = vunpack.c.l.b16 %v143
  %v748 = vunpack.c.l.b16 %v144
  %v749 = vunpack.c.l.b16 %v145
  %v750 = vunpack.c.l.b16 %v146
  %v751 = vunpack.c.l.b16 %v147
  %v752 = vunpack.c.l.b16 %v148
  %v753 = vunpack.c.l.b16 %v149
  %v754 = vunpack.c.l.b16 %v150
  %v755 = vunpack.c.l.b16 %v151
  %v756 = vunpack.c.l.b16 %v152
  %v757 = vunpack.c.l.b16 %v153
  %v758 = vunpack.c.l.b16 %v154
  %v759 = vunpack.c.l.b16 %v155
  %v760 = vunpack.c.l.b16 %v156
  %v761 = vunpack.c.l.b16 %v157
  %v762 = vunpack.c.l.b16 %v158
  %v763 = vunpack.c.l.b16 %v159
  %v764 = vunpack.c.l.b16 %v160
  %v765 = vunpack.c.l.b16 %v161
  %v766 = vunpack.c.l.b16 %v162
  %v767 = vunpack.c.l.b16 %v163
  %v768 = vunpack.c.l.b16 %v164
  %v769 = vunpack.c.l.b16 %v165
  %v770 = vunpack.c.l.b16 %v166
  %v771 = vunpack.c.l.b16 %v167
  %v772 = vunpack.c.l.b16 %v168
  %v773 = vunpack.c.l.b16 %v169
  %v774 = vunpack.c.l.b16 %v170
  %v775 = vunpack.c.l.b16 %v171
  %v776 = vunpack.c.l.b16 %v172
  %v777 = vunpack.c.l.b16 %v173
  %v778 = vunpack.c.l.b16 %v174
  %v779 = vunpack.c.l.b16 %v175
  %v780 = vunpack.c.l.b16 %v176
  %v781 = vunpack.c.l.b16 %v177
  %v782 = vunpack.c.l.b16 %v178
  %v783 = vunpack.c.l.b16 %v179
  %v784 = vunpack.c.l.b16 %v180
  %v785 = vunpack.c.l.b16 %v181
  %v786 = vunpack.c.l.b16 %v182
  %v787 = vunpack.c.l.b16 %v183
  %v788 = vunpack.c.l.b16 %v184
  %v789 = vunpack.c.l.b16 %v185
  %v790 = vunpack.c.l.b16 %v186
  %v791 = vunpack.c.l.b16 %v187
  %v792 = vunpack.c.l.b16 %v188
  %v793 = vunpack.c.l.b16 %v189
  %v794 = vunpack.c.l.b16 %v190
  %v795 = vunpack.c.l.b16 %v191
  %v796 = vunpack.c.l.b16 %v192
  %v797 = vunpack.c.l.b16 %v193
  %v798 = vunpack.c.l.b16 %v194
  %v799 = vunpack.c.l.b16 %v195
  %v800 = vunpack.c.l.b16 %v196
  %v801 = vunpack.c.l.b16 %v197
  %v802 = vunpack.c.l.b16 %v198
  %v803 = vunpack.c.l.b16 %v199
  %v804 = vunpack.c.l.b16 %v200
  %v805 = vunpack.c.l.b16 %v201
  %v806 = vunpack.c.l.b16 %v202
  %v807 = vunpack.c.l.b16 %v203
  %v808 = vunpack.c.l.b16 %v204
  %v809 = vunpack.c.l.b16 %v205
  %v810 = vunpack.c.l.b16 %v206
  %v811 = vunpack.c.l.b16 %v207
  %v812 = vunpack.c.l.b16 %v208
  %v813 = vunpack.c.l.b16 %v209
  %v814 = vunpack.c.l.b16 %v210
  %v815 = vunpack.c.l.b16 %v211
  %v816 = vunpack.c.l.b16 %v212
  %v817 = vunpack.c.l.b16 %v213
  %v818 = vunpack.c.l.b16 %v214
  %v819 = vunpack.c.l.b16 %v215
  %v820 = vunpack.c.l.b16 %v216
  %v821 = vunpack.c.l.b16 %v217
  %v822 = vunpack.c.l.b16 %v218
  %v823 = vunpack.c.l.b16 %v219
  %v824 = vpack.c.b16 %v697, %v696
  %v825 = vpack.c.b16 %v699, %v698
  %v826 = vpack.c.b16 %v701, %v700
  %v827 = vpack.c.b16 %v703, %v702
  %v828 = vpack.c.b16 %v705, %v704
  %v829 = vpack.c.b16 %v707, %v706
  %v830 = vpack.c.b16 %v709, %v708
  %v831 = vpack.c.b16 %v711, %v710
  %v832 = vpack.c.b16 %v713, %v712
  %v833 = vpack.c.b16 %v715, %v714
  %v834 = vpack.c.b16 %v717, %v716
  %v835 = vpack.c.b16 %v719, %v718
  %v836 = vpack.c.b16 %v721, %v720
  %v837 = vpack.c.b16 %v723, %v722
  %v838 = vpack.c.b16 %v725, %v724
  %v839 = vpack.c.b16 %v727, %v726
  %v840 = vpack.c.b16 %v729, %v728
  %v841 = vpack.c.b16 %v731, %v730
  %v842 = vpack.c.b16 %v733, %v732
  %v843 = vpack.c.b16 %v735, %v734
  %v844 = vpack.c.b16 %v737, %v736
  %v845 = vpack.c.b16 %v739, %v738
  %v846 = vpack.c.b16 %v741, %v740
  %v847 = vpack.c.b16 %v743, %v742
  %v848 = vpack.c.b16 %v745, %v744
  %v849 = vpack.c.b16 %v747, %v746
  %v850 = vpack.c.b16 %v749, %v748
  %v851 = vpack.c.b16 %v751, %v750
  %v852 = vpack.c.b16 %v753, %v752
  %v853 = vpack.c.b16 %v755, %v754
  %v854 = vpack.c.b16 %v757, %v756
  %v855 = vpack.c.b16 %v759, %v758
  %v856 = vpack.c.b16 %v761, %v760
  %v857 = vpack.c.b16 %v763, %v762
  %v858 = vpack.c.b16 %v765, %v764
  %v859 = vpack.c.b16 %v767, %v766
  %v860 = vpack.c.b16 %v769, %v768
  %v861 = vpack.c.b16 %v771, %v770
  %v862 = vpack.c.b16 %v773, %v772
  %v863 = vpack.c.b16 %v775, %v774
  %v864 = vpack.c.b16 %v777, %v776
  %v865 = vpack.c.b16 %v779, %v778
  %v866 = vpack.c.b16 %v781, %v780
  %v867 = vpack.c.b16 %v783, %v782
  %v868 = vpack.c.b16 %v785, %v784
  %v869 = vpack.c.b16 %v787, %v786
  %v870 = vpack.c.b16 %v789, %v788
  %v871 = vpack.c.b16 %v791, %v790
  %v872 = vpack.c.b16 %v793, %v792
  %v873 = vpack.c.b16 %v795, %v794
  %v874 = vpack.c.b16 %v797, %v796
  %v875 = vpack.c.b16 %v799, %v798
  %v876 = vpack.c.b16 %v801, %v800
  %v877 = vpack.c.b16 %v803, %v802
  %v878 = vpack.c.b16 %v805, %v804
  %v879 = vpack.c.b16 %v807, %v806
  %v880 = vpack.c.b16 %v809, %v808
  %v881 = vpack.c.b16 %v811, %v810
  %v882 = vpack.c.b16 %v813, %v812
  %v883 = vpack.c.b16 %v815, %v814
  %v884 = vpack.c.b16 %v817, %v816
  %v885 = vpack.c.b16 %v819, %v818
  %v886 = vpack.c.b16 %v821, %v820
  %v887 = vpack.c.b16 %v823, %v822
  %952 = vmatprep.subr.bf16.mxu0 0
  %953 = vmatpush1.bf16.msra.mxu0 %v824
  %954 = vmatprep.subr.bf16.mxu0 0
  %955 = vmatpush1.bf16.msra.mxu0 %v825
  %956 = vmatprep.subr.bf16.mxu0 0
  %957 = vmatpush1.bf16.msra.mxu0 %v826
  %958 = vmatprep.subr.bf16.mxu0 0
  %959 = vmatpush1.bf16.msra.mxu0 %v827
  %960 = vmatprep.subr.bf16.mxu0 0
  %961 = vmatpush1.bf16.msra.mxu0 %v828
  %962 = vmatprep.subr.bf16.mxu0 0
  %963 = vmatpush1.bf16.msra.mxu0 %v829
  %964 = vmatprep.subr.bf16.mxu0 0
  %965 = vmatpush1.bf16.msra.mxu0 %v830
  %966 = vmatprep.subr.bf16.mxu0 0
  %967 = vmatpush1.bf16.msra.mxu0 %v831
  %968 = vmatprep.subr.bf16.mxu0 0
  %969 = vmatpush1.bf16.msra.mxu0 %v832
  %970 = vmatprep.subr.bf16.mxu0 0
  %971 = vmatpush1.bf16.msra.mxu0 %v833
  %972 = vmatprep.subr.bf16.mxu0 0
  %973 = vmatpush1.bf16.msra.mxu0 %v834
  %974 = vmatprep.subr.bf16.mxu0 0
  %975 = vmatpush1.bf16.msra.mxu0 %v835
  %976 = vmatprep.subr.bf16.mxu0 0
  %977 = vmatpush1.bf16.msra.mxu0 %v836
  %978 = vmatprep.subr.bf16.mxu0 0
  %979 = vmatpush1.bf16.msra.mxu0 %v837
  %980 = vmatprep.subr.bf16.mxu0 0
  %981 = vmatpush1.bf16.msra.mxu0 %v838
  %982 = vmatprep.subr.bf16.mxu0 0
  %983 = vmatpush1.bf16.msra.mxu0 %v839
  %984 = vmatprep.mubr.bf16.mxu0 %v425
  %985 = vmatmul.mubr.bf16.gmra.mrb[0].mxu0 %v424
  %v986 = vpop.f32.mrb[0].mxu0
  %v987 = vadd.f32 0.0, %v986
  %v988 = vpop.f32.mrb[0].mxu0
  %v989 = vpop.f32.mrb[0].mxu0
  %v990 = vadd.f32 0.0, %v989
  %v991 = vpop.f32.mrb[0].mxu0
  %992 = vmatprep.mubr.bf16.mxu0 %v433
  %993 = vmatmul.mubr.bf16.gmra.mrb[0].mxu0 %v432
  %v994 = vpop.f32.mrb[0].mxu0
  %v995 = vadd.f32 0.0, %v994
  %v996 = vpop.f32.mrb[0].mxu0
  %v997 = vpop.f32.mrb[0].mxu0
  %v998 = vadd.f32 0.0, %v997
  %v999 = vpop.f32.mrb[0].mxu0
  %1000 = vmatprep.mubr.bf16.mxu0 %v441
  %1001 = vmatmul.mubr.bf16.gmra.mrb[0].mxu0 %v440
  %v1002 = vpop.f32.mrb[0].mxu0
  %v1003 = vadd.f32 0.0, %v1002
  %v1004 = vpop.f32.mrb[0].mxu0
  %v1005 = vpop.f32.mrb[0].mxu0
  %v1006 = vadd.f32 0.0, %v1005
  %v1007 = vpop.f32.mrb[0].mxu0
  %1008 = vmatprep.mubr.bf16.mxu0 %v449
  %1009 = vmatmul.mubr.bf16.gmra.mrb[0].mxu0 %v448
  %v1010 = vpop.f32.mrb[0].mxu0
  %v1011 = vadd.f32 0.0, %v1010
  %v1012 = vpop.f32.mrb[0].mxu0
  %v1013 = vpop.f32.mrb[0].mxu0
  %v1014 = vadd.f32 0.0, %v1013
  %v1015 = vpop.f32.mrb[0].mxu0
  %1016 = vmatprep.mubr.bf16.mxu0 %v457
  %1017 = vmatmul.mubr.bf16.gmra.mrb[0].mxu0 %v456
  %v1018 = vpop.f32.mrb[0].mxu0
  %v1019 = vadd.f32 0.0, %v1018
  %v1020 = vpop.f32.mrb[0].mxu0
  %v1021 = vpop.f32.mrb[0].mxu0
  %v1022 = vadd.f32 0.0, %v1021
  %v1023 = vpop.f32.mrb[0].mxu0
  %1024 = vmatprep.mubr.bf16.mxu0 %v465
  %1025 = vmatmul.mubr.bf16.gmra.mrb[0].mxu0 %v464
  %v1026 = vpop.f32.mrb[0].mxu0
  %v1027 = vadd.f32 0.0, %v1026
  %v1028 = vpop.f32.mrb[0].mxu0
  %v1029 = vpop.f32.mrb[0].mxu0
  %v1030 = vadd.f32 0.0, %v1029
  %v1031 = vpop.f32.mrb[0].mxu0
  %1032 = vmatprep.mubr.bf16.mxu0 %v473
  %1033 = vmatmul.mubr.bf16.gmra.mrb[0].mxu0 %v472
  %v1034 = vpop.f32.mrb[0].mxu0
  %v1035 = vadd.f32 0.0, %v1034
  %v1036 = vpop.f32.mrb[0].mxu0
  %v1037 = vpop.f32.mrb[0].mxu0
  %v1038 = vadd.f32 0.0, %v1037
  %v1039 = vpop.f32.mrb[0].mxu0
  %1040 = vmatprep.mubr.bf16.mxu0 %v481
  %1041 = vmatmul.mubr.bf16.gmra.mrb[0].mxu0 %v480
  %v1042 = vpop.f32.mrb[0].mxu0
  %v1043 = vadd.f32 0.0, %v1042
  %v1044 = vpop.f32.mrb[0].mxu0
  %v1045 = vpop.f32.mrb[0].mxu0
  %v1046 = vadd.f32 0.0, %v1045
  %v1047 = vpop.f32.mrb[0].mxu0
  %1048 = vmatprep.mubr.bf16.mxu0 %v489
  %1049 = vmatmul.mubr.bf16.gmra.mrb[0].mxu0 %v488
  %v1050 = vpop.f32.mrb[0].mxu0
  %v1051 = vadd.f32 0.0, %v1050
  %v1052 = vpop.f32.mrb[0].mxu0
  %v1053 = vpop.f32.mrb[0].mxu0
  %v1054 = vpop.f32.mrb[0].mxu0
  %1055 = vdwg.mxu0
  %1056 = vmatprep.subr.bf16.mxu0 0
  %1057 = vmatpush1.bf16.msra.mxu0 %v840
  %1058 = vmatprep.subr.bf16.mxu0 0
  %1059 = vmatpush1.bf16.msra.mxu0 %v841
  %1060 = vmatprep.subr.bf16.mxu0 0
  %1061 = vmatpush1.bf16.msra.mxu0 %v842
  %1062 = vmatprep.subr.bf16.mxu0 0
  %1063 = vmatpush1.bf16.msra.mxu0 %v843
  %1064 = vmatprep.subr.bf16.mxu0 0
  %1065 = vmatpush1.bf16.msra.mxu0 %v844
  %1066 = vmatprep.subr.bf16.mxu0 0
  %1067 = vmatpush1.bf16.msra.mxu0 %v845
  %1068 = vmatprep.subr.bf16.mxu0 0
  %1069 = vmatpush1.bf16.msra.mxu0 %v846
  %1070 = vmatprep.subr.bf16.mxu0 0
  %1071 = vmatpush1.bf16.msra.mxu0 %v847
  %1072 = vmatprep.subr.bf16.mxu0 0
  %1073 = vmatpush1.bf16.msra.mxu0 %v848
  %1074 = vmatprep.subr.bf16.mxu0 0
  %1075 = vmatpush1.bf16.msra.mxu0 %v849
  %1076 = vmatprep.subr.bf16.mxu0 0
  %1077 = vmatpush1.bf16.msra.mxu0 %v850
  %1078 = vmatprep.subr.bf16.mxu0 0
  %1079 = vmatpush1.bf16.msra.mxu0 %v851
  %1080 = vmatprep.subr.bf16.mxu0 0
  %1081 = vmatpush1.bf16.msra.mxu0 %v852
  %1082 = vmatprep.subr.bf16.mxu0 0
  %1083 = vmatpush1.bf16.msra.mxu0 %v853
  %1084 = vmatprep.subr.bf16.mxu0 0
  %1085 = vmatpush1.bf16.msra.mxu0 %v854
  %1086 = vmatprep.subr.bf16.mxu0 0
  %1087 = vmatpush1.bf16.msra.mxu0 %v855
  %1088 = vmatprep.mubr.bf16.mxu0 %v427
  %1089 = vmatmul.mubr.bf16.gmra.mrb[0].mxu0 %v426
  %v1090 = vpop.f32.mrb[0].mxu0
  %v1091 = vadd.f32 %v987, %v1090
  %v1092 = vpop.f32.mrb[0].mxu0
  %v1093 = vpop.f32.mrb[0].mxu0
  %v1094 = vadd.f32 %v990, %v1093
  %v1095 = vpop.f32.mrb[0].mxu0
  %1096 = vmatprep.mubr.bf16.mxu0 %v435
  %1097 = vmatmul.mubr.bf16.gmra.mrb[0].mxu0 %v434
  %v1098 = vpop.f32.mrb[0].mxu0
  %v1099 = vadd.f32 %v995, %v1098
  %v1100 = vpop.f32.mrb[0].mxu0
  %v1101 = vpop.f32.mrb[0].mxu0
  %v1102 = vadd.f32 %v998, %v1101
  %v1103 = vpop.f32.mrb[0].mxu0
  %1104 = vmatprep.mubr.bf16.mxu0 %v443
  %1105 = vmatmul.mubr.bf16.gmra.mrb[0].mxu0 %v442
  %v1106 = vpop.f32.mrb[0].mxu0
  %v1107 = vadd.f32 %v1003, %v1106
  %v1108 = vpop.f32.mrb[0].mxu0
  %v1109 = vpop.f32.mrb[0].mxu0
  %v1110 = vadd.f32 %v1006, %v1109
  %v1111 = vpop.f32.mrb[0].mxu0
  %1112 = vmatprep.mubr.bf16.mxu0 %v451
  %1113 = vmatmul.mubr.bf16.gmra.mrb[0].mxu0 %v450
  %v1114 = vpop.f32.mrb[0].mxu0
  %v1115 = vadd.f32 %v1011, %v1114
  %v1116 = vpop.f32.mrb[0].mxu0
  %v1117 = vpop.f32.mrb[0].mxu0
  %v1118 = vadd.f32 %v1014, %v1117
  %v1119 = vpop.f32.mrb[0].mxu0
  %1120 = vmatprep.mubr.bf16.mxu0 %v459
  %1121 = vmatmul.mubr.bf16.gmra.mrb[0].mxu0 %v458
  %v1122 = vpop.f32.mrb[0].mxu0
  %v1123 = vadd.f32 %v1019, %v1122
  %v1124 = vpop.f32.mrb[0].mxu0
  %v1125 = vpop.f32.mrb[0].mxu0
  %v1126 = vadd.f32 %v1022, %v1125
  %v1127 = vpop.f32.mrb[0].mxu0
  %1128 = vmatprep.mubr.bf16.mxu0 %v467
  %1129 = vmatmul.mubr.bf16.gmra.mrb[0].mxu0 %v466
  %v1130 = vpop.f32.mrb[0].mxu0
  %v1131 = vadd.f32 %v1027, %v1130
  %v1132 = vpop.f32.mrb[0].mxu0
  %v1133 = vpop.f32.mrb[0].mxu0
  %v1134 = vadd.f32 %v1030, %v1133
  %v1135 = vpop.f32.mrb[0].mxu0
  %1136 = vmatprep.mubr.bf16.mxu0 %v475
  %1137 = vmatmul.mubr.bf16.gmra.mrb[0].mxu0 %v474
  %v1138 = vpop.f32.mrb[0].mxu0
  %v1139 = vadd.f32 %v1035, %v1138
  %v1140 = vpop.f32.mrb[0].mxu0
  %v1141 = vpop.f32.mrb[0].mxu0
  %v1142 = vadd.f32 %v1038, %v1141
  %v1143 = vpop.f32.mrb[0].mxu0
  %1144 = vmatprep.mubr.bf16.mxu0 %v483
  %1145 = vmatmul.mubr.bf16.gmra.mrb[0].mxu0 %v482
  %v1146 = vpop.f32.mrb[0].mxu0
  %v1147 = vadd.f32 %v1043, %v1146
  %v1148 = vpop.f32.mrb[0].mxu0
  %v1149 = vpop.f32.mrb[0].mxu0
  %v1150 = vadd.f32 %v1046, %v1149
  %v1151 = vpop.f32.mrb[0].mxu0
  %1152 = vmatprep.mubr.bf16.mxu0 %v491
  %1153 = vmatmul.mubr.bf16.gmra.mrb[0].mxu0 %v490
  %v1154 = vpop.f32.mrb[0].mxu0
  %v1155 = vadd.f32 %v1051, %v1154
  %v1156 = vpop.f32.mrb[0].mxu0
  %v1157 = vpop.f32.mrb[0].mxu0
  %v1158 = vpop.f32.mrb[0].mxu0
  %1159 = vdwg.mxu0
  %1160 = vmatprep.subr.bf16.mxu0 0
  %1161 = vmatpush1.bf16.msra.mxu0 %v856
  %1162 = vmatprep.subr.bf16.mxu0 0
  %1163 = vmatpush1.bf16.msra.mxu0 %v857
  %1164 = vmatprep.subr.bf16.mxu0 0
  %1165 = vmatpush1.bf16.msra.mxu0 %v858
  %1166 = vmatprep.subr.bf16.mxu0 0
  %1167 = vmatpush1.bf16.msra.mxu0 %v859
  %1168 = vmatprep.subr.bf16.mxu0 0
  %1169 = vmatpush1.bf16.msra.mxu0 %v860
  %1170 = vmatprep.subr.bf16.mxu0 0
  %1171 = vmatpush1.bf16.msra.mxu0 %v861
  %1172 = vmatprep.subr.bf16.mxu0 0
  %1173 = vmatpush1.bf16.msra.mxu0 %v862
  %1174 = vmatprep.subr.bf16.mxu0 0
  %1175 = vmatpush1.bf16.msra.mxu0 %v863
  %1176 = vmatprep.subr.bf16.mxu0 0
  %1177 = vmatpush1.bf16.msra.mxu0 %v864
  %1178 = vmatprep.subr.bf16.mxu0 0
  %1179 = vmatpush1.bf16.msra.mxu0 %v865
  %1180 = vmatprep.subr.bf16.mxu0 0
  %1181 = vmatpush1.bf16.msra.mxu0 %v866
  %1182 = vmatprep.subr.bf16.mxu0 0
  %1183 = vmatpush1.bf16.msra.mxu0 %v867
  %1184 = vmatprep.subr.bf16.mxu0 0
  %1185 = vmatpush1.bf16.msra.mxu0 %v868
  %1186 = vmatprep.subr.bf16.mxu0 0
  %1187 = vmatpush1.bf16.msra.mxu0 %v869
  %1188 = vmatprep.subr.bf16.mxu0 0
  %1189 = vmatpush1.bf16.msra.mxu0 %v870
  %1190 = vmatprep.subr.bf16.mxu0 0
  %1191 = vmatpush1.bf16.msra.mxu0 %v871
  %1192 = vmatprep.mubr.bf16.mxu0 %v429
  %1193 = vmatmul.mubr.bf16.gmra.mrb[0].mxu0 %v428
  %v1194 = vpop.f32.mrb[0].mxu0
  %v1195 = vadd.f32 %v1091, %v1194
  %v1196 = vpop.f32.mrb[0].mxu0
  %v1197 = vpop.f32.mrb[0].mxu0
  %v1198 = vadd.f32 %v1094, %v1197
  %v1199 = vpop.f32.mrb[0].mxu0
  %1200 = vmatprep.mubr.bf16.mxu0 %v437
  %1201 = vmatmul.mubr.bf16.gmra.mrb[0].mxu0 %v436
  %v1202 = vpop.f32.mrb[0].mxu0
  %v1203 = vadd.f32 %v1099, %v1202
  %v1204 = vpop.f32.mrb[0].mxu0
  %v1205 = vpop.f32.mrb[0].mxu0
  %v1206 = vadd.f32 %v1102, %v1205
  %v1207 = vpop.f32.mrb[0].mxu0
  %1208 = vmatprep.mubr.bf16.mxu0 %v445
  %1209 = vmatmul.mubr.bf16.gmra.mrb[0].mxu0 %v444
  %v1210 = vpop.f32.mrb[0].mxu0
  %v1211 = vadd.f32 %v1107, %v1210
  %v1212 = vpop.f32.mrb[0].mxu0
  %v1213 = vpop.f32.mrb[0].mxu0
  %v1214 = vadd.f32 %v1110, %v1213
  %v1215 = vpop.f32.mrb[0].mxu0
  %1216 = vmatprep.mubr.bf16.mxu0 %v453
  %1217 = vmatmul.mubr.bf16.gmra.mrb[0].mxu0 %v452
  %v1218 = vpop.f32.mrb[0].mxu0
  %v1219 = vadd.f32 %v1115, %v1218
  %v1220 = vpop.f32.mrb[0].mxu0
  %v1221 = vpop.f32.mrb[0].mxu0
  %v1222 = vadd.f32 %v1118, %v1221
  %v1223 = vpop.f32.mrb[0].mxu0
  %1224 = vmatprep.mubr.bf16.mxu0 %v461
  %1225 = vmatmul.mubr.bf16.gmra.mrb[0].mxu0 %v460
  %v1226 = vpop.f32.mrb[0].mxu0
  %v1227 = vadd.f32 %v1123, %v1226
  %v1228 = vpop.f32.mrb[0].mxu0
  %v1229 = vpop.f32.mrb[0].mxu0
  %v1230 = vadd.f32 %v1126, %v1229
  %v1231 = vpop.f32.mrb[0].mxu0
  %1232 = vmatprep.mubr.bf16.mxu0 %v469
  %1233 = vmatmul.mubr.bf16.gmra.mrb[0].mxu0 %v468
  %v1234 = vpop.f32.mrb[0].mxu0
  %v1235 = vadd.f32 %v1131, %v1234
  %v1236 = vpop.f32.mrb[0].mxu0
  %v1237 = vpop.f32.mrb[0].mxu0
  %v1238 = vadd.f32 %v1134, %v1237
  %v1239 = vpop.f32.mrb[0].mxu0
  %1240 = vmatprep.mubr.bf16.mxu0 %v477
  %1241 = vmatmul.mubr.bf16.gmra.mrb[0].mxu0 %v476
  %v1242 = vpop.f32.mrb[0].mxu0
  %v1243 = vadd.f32 %v1139, %v1242
  %v1244 = vpop.f32.mrb[0].mxu0
  %v1245 = vpop.f32.mrb[0].mxu0
  %v1246 = vadd.f32 %v1142, %v1245
  %v1247 = vpop.f32.mrb[0].mxu0
  %1248 = vmatprep.mubr.bf16.mxu0 %v485
  %1249 = vmatmul.mubr.bf16.gmra.mrb[0].mxu0 %v484
  %v1250 = vpop.f32.mrb[0].mxu0
  %v1251 = vadd.f32 %v1147, %v1250
  %v1252 = vpop.f32.mrb[0].mxu0
  %v1253 = vpop.f32.mrb[0].mxu0
  %v1254 = vadd.f32 %v1150, %v1253
  %v1255 = vpop.f32.mrb[0].mxu0
  %1256 = vmatprep.mubr.bf16.mxu0 %v493
  %1257 = vmatmul.mubr.bf16.gmra.mrb[0].mxu0 %v492
  %v1258 = vpop.f32.mrb[0].mxu0
  %v1259 = vadd.f32 %v1155, %v1258
  %v1260 = vpop.f32.mrb[0].mxu0
  %v1261 = vpop.f32.mrb[0].mxu0
  %v1262 = vpop.f32.mrb[0].mxu0
  %1263 = vdwg.mxu0
  %1264 = vmatprep.subr.bf16.mxu0 0
  %1265 = vmatpush1.bf16.msra.mxu0 %v872
  %1266 = vmatprep.subr.bf16.mxu0 0
  %1267 = vmatpush1.bf16.msra.mxu0 %v873
  %1268 = vmatprep.subr.bf16.mxu0 0
  %1269 = vmatpush1.bf16.msra.mxu0 %v874
  %1270 = vmatprep.subr.bf16.mxu0 0
  %1271 = vmatpush1.bf16.msra.mxu0 %v875
  %1272 = vmatprep.subr.bf16.mxu0 0
  %1273 = vmatpush1.bf16.msra.mxu0 %v876
  %1274 = vmatprep.subr.bf16.mxu0 0
  %1275 = vmatpush1.bf16.msra.mxu0 %v877
  %1276 = vmatprep.subr.bf16.mxu0 0
  %1277 = vmatpush1.bf16.msra.mxu0 %v878
  %1278 = vmatprep.subr.bf16.mxu0 0
  %1279 = vmatpush1.bf16.msra.mxu0 %v879
  %1280 = vmatprep.subr.bf16.mxu0 0
  %1281 = vmatpush1.bf16.msra.mxu0 %v880
  %1282 = vmatprep.subr.bf16.mxu0 0
  %1283 = vmatpush1.bf16.msra.mxu0 %v881
  %1284 = vmatprep.subr.bf16.mxu0 0
  %1285 = vmatpush1.bf16.msra.mxu0 %v882
  %1286 = vmatprep.subr.bf16.mxu0 0
  %1287 = vmatpush1.bf16.msra.mxu0 %v883
  %1288 = vmatprep.subr.bf16.mxu0 0
  %1289 = vmatpush1.bf16.msra.mxu0 %v884
  %1290 = vmatprep.subr.bf16.mxu0 0
  %1291 = vmatpush1.bf16.msra.mxu0 %v885
  %1292 = vmatprep.subr.bf16.mxu0 0
  %1293 = vmatpush1.bf16.msra.mxu0 %v886
  %1294 = vmatprep.subr.bf16.mxu0 0
  %1295 = vmatpush1.bf16.msra.mxu0 %v887
  %1296 = vmatprep.mubr.bf16.mxu0 %v431
  %1297 = vmatmul.mubr.bf16.gmra.mrb[0].mxu0 %v430
  %v1298 = vpop.f32.mrb[0].mxu0
  %v1299 = vadd.f32 %v1195, %v1298
  %v1300 = vpop.f32.mrb[0].mxu0
  %v1301 = vpop.f32.mrb[0].mxu0
  %v1302 = vadd.f32 %v1198, %v1301
  %v1303 = vpop.f32.mrb[0].mxu0
  %1304 = vmatprep.mubr.bf16.mxu0 %v439
  %1305 = vmatmul.mubr.bf16.gmra.mrb[0].mxu0 %v438
  %v1306 = vpop.f32.mrb[0].mxu0
  %v1307 = vadd.f32 %v1203, %v1306
  %v1308 = vpop.f32.mrb[0].mxu0
  %v1309 = vpop.f32.mrb[0].mxu0
  %v1310 = vadd.f32 %v1206, %v1309
  %v1311 = vpop.f32.mrb[0].mxu0
  %1312 = vmatprep.mubr.bf16.mxu0 %v447
  %1313 = vmatmul.mubr.bf16.gmra.mrb[0].mxu0 %v446
  %v1314 = vpop.f32.mrb[0].mxu0
  %v1315 = vadd.f32 %v1211, %v1314
  %v1316 = vpop.f32.mrb[0].mxu0
  %v1317 = vpop.f32.mrb[0].mxu0
  %v1318 = vadd.f32 %v1214, %v1317
  %v1319 = vpop.f32.mrb[0].mxu0
  %1320 = vmatprep.mubr.bf16.mxu0 %v455
  %1321 = vmatmul.mubr.bf16.gmra.mrb[0].mxu0 %v454
  %v1322 = vpop.f32.mrb[0].mxu0
  %v1323 = vadd.f32 %v1219, %v1322
  %v1324 = vpop.f32.mrb[0].mxu0
  %v1325 = vpop.f32.mrb[0].mxu0
  %v1326 = vadd.f32 %v1222, %v1325
  %v1327 = vpop.f32.mrb[0].mxu0
  %1328 = vmatprep.mubr.bf16.mxu0 %v463
  %1329 = vmatmul.mubr.bf16.gmra.mrb[0].mxu0 %v462
  %v1330 = vpop.f32.mrb[0].mxu0
  %v1331 = vadd.f32 %v1227, %v1330
  %v1332 = vpop.f32.mrb[0].mxu0
  %v1333 = vpop.f32.mrb[0].mxu0
  %v1334 = vadd.f32 %v1230, %v1333
  %v1335 = vpop.f32.mrb[0].mxu0
  %1336 = vmatprep.mubr.bf16.mxu0 %v471
  %1337 = vmatmul.mubr.bf16.gmra.mrb[0].mxu0 %v470
  %v1338 = vpop.f32.mrb[0].mxu0
  %v1339 = vadd.f32 %v1235, %v1338
  %v1340 = vpop.f32.mrb[0].mxu0
  %v1341 = vpop.f32.mrb[0].mxu0
  %v1342 = vadd.f32 %v1238, %v1341
  %v1343 = vpop.f32.mrb[0].mxu0
  %1344 = vmatprep.mubr.bf16.mxu0 %v479
  %1345 = vmatmul.mubr.bf16.gmra.mrb[0].mxu0 %v478
  %v1346 = vpop.f32.mrb[0].mxu0
  %v1347 = vadd.f32 %v1243, %v1346
  %v1348 = vpop.f32.mrb[0].mxu0
  %v1349 = vpop.f32.mrb[0].mxu0
  %v1350 = vadd.f32 %v1246, %v1349
  %v1351 = vpop.f32.mrb[0].mxu0
  %1352 = vmatprep.mubr.bf16.mxu0 %v487
  %1353 = vmatmul.mubr.bf16.gmra.mrb[0].mxu0 %v486
  %v1354 = vpop.f32.mrb[0].mxu0
  %v1355 = vadd.f32 %v1251, %v1354
  %v1356 = vpop.f32.mrb[0].mxu0
  %v1357 = vpop.f32.mrb[0].mxu0
  %v1358 = vadd.f32 %v1254, %v1357
  %v1359 = vpop.f32.mrb[0].mxu0
  %1360 = vmatprep.mubr.bf16.mxu0 %v495
  %1361 = vmatmul.mubr.bf16.gmra.mrb[0].mxu0 %v494
  %v1362 = vpop.f32.mrb[0].mxu0
  %v1363 = vadd.f32 %v1259, %v1362
  %v1364 = vpop.f32.mrb[0].mxu0
  %v1365 = vpop.f32.mrb[0].mxu0
  %v1366 = vpop.f32.mrb[0].mxu0
  %1367 = vdwg.mxu0
  %v1368 = vpack.c.bf16 %v1302, %v1299
  %v1369 = vpack.c.bf16 %v1310, %v1307
  %v1370 = vpack.c.bf16 %v1318, %v1315
  %v1371 = vpack.c.bf16 %v1326, %v1323
  %v1372 = vpack.c.bf16 %v1334, %v1331
  %v1373 = vpack.c.bf16 %v1342, %v1339
  %v1374 = vpack.c.bf16 %v1350, %v1347
  %v1375 = vpack.c.bf16 %v1358, %v1355
  %v1376 = vpack.c.bf16 %v1363, %v1363
  %v1377 = vld [vmem:[%s2] sm:$0xff]
  %v1378 = vld [vmem:[%s2 + $0x8] sm:$0xff]
  %v1379 = vld [vmem:[%s2 + $0x10] sm:$0xff]
  %v1380 = vld [vmem:[%s2 + $0x18] sm:$0xff]
  %v1381 = vld [vmem:[%s2 + $0x20] sm:$0xff]
  %v1382 = vld [vmem:[%s2 + $0x28] sm:$0xff]
  %v1383 = vld [vmem:[%s2 + $0x30] sm:$0xff]
  %v1384 = vld [vmem:[%s2 + $0x38] sm:$0xff]
  %v1385 = vld [vmem:[%s2 + $0x40] sm:$0xff]
  %v1386 = vld [vmem:[%s2 + $0x48] sm:$0xff]
  %v1387 = vld [vmem:[%s2 + $0x50] sm:$0xff]
  %v1388 = vld [vmem:[%s2 + $0x58] sm:$0xff]
  %v1389 = vld [vmem:[%s2 + $0x60] sm:$0xff]
  %v1390 = vld [vmem:[%s2 + $0x68] sm:$0xff]
  %v1391 = vld [vmem:[%s2 + $0x70] sm:$0xff]
  %v1392 = vld [vmem:[%s2 + $0x78] sm:$0xff]
  %v1393 = vld [vmem:[%s3] sm:$0x3]
  %v1395 = vlaneseq
  %v1396 = vshrl.u32 %v1395, 7
  %v1397 = vsub.s32 0, %v1396
  %v1398 = vrot.slane %v1393, %v1397
  %v1399 = vlaneseq
  %v1400 = vshrl.u32 %v1399, 7
  %v1401 = vsub.s32 1, %v1400
  %v1402 = vrot.slane %v1393, %v1401
  %v1421 = vunpack.c.l.b16 %v1377
  %v1422 = vunpack.c.h.b16 %v1377
  %v1423 = vunpack.c.l.b16 %v1378
  %v1424 = vunpack.c.h.b16 %v1378
  %v1425 = vunpack.c.l.b16 %v1379
  %v1426 = vunpack.c.h.b16 %v1379
  %v1427 = vunpack.c.l.b16 %v1380
  %v1428 = vunpack.c.h.b16 %v1380
  %v1429 = vunpack.c.l.b16 %v1381
  %v1430 = vunpack.c.h.b16 %v1381
  %v1431 = vunpack.c.l.b16 %v1382
  %v1432 = vunpack.c.h.b16 %v1382
  %v1433 = vunpack.c.l.b16 %v1383
  %v1434 = vunpack.c.h.b16 %v1383
  %v1435 = vunpack.c.l.b16 %v1384
  %v1436 = vunpack.c.h.b16 %v1384
  %v1437 = vunpack.c.l.b16 %v1385
  %v1438 = vunpack.c.h.b16 %v1385
  %v1439 = vunpack.c.l.b16 %v1386
  %v1440 = vunpack.c.h.b16 %v1386
  %v1441 = vunpack.c.l.b16 %v1387
  %v1442 = vunpack.c.h.b16 %v1387
  %v1443 = vunpack.c.l.b16 %v1388
  %v1444 = vunpack.c.h.b16 %v1388
  %v1445 = vunpack.c.l.b16 %v1389
  %v1446 = vunpack.c.h.b16 %v1389
  %v1447 = vunpack.c.l.b16 %v1390
  %v1448 = vunpack.c.h.b16 %v1390
  %v1449 = vunpack.c.l.b16 %v1391
  %v1450 = vunpack.c.h.b16 %v1391
  %v1451 = vunpack.c.l.b16 %v1392
  %v1452 = vunpack.c.h.b16 %v1392
  %v1453 = vpack.c.b16 %v1423, %v1421
  %v1454 = vpack.c.b16 %v1424, %v1422
  %v1455 = vpack.c.b16 %v1427, %v1425
  %v1456 = vpack.c.b16 %v1428, %v1426
  %v1457 = vpack.c.b16 %v1431, %v1429
  %v1458 = vpack.c.b16 %v1432, %v1430
  %v1459 = vpack.c.b16 %v1435, %v1433
  %v1460 = vpack.c.b16 %v1436, %v1434
  %v1461 = vpack.c.b16 %v1439, %v1437
  %v1462 = vpack.c.b16 %v1440, %v1438
  %v1463 = vpack.c.b16 %v1443, %v1441
  %v1464 = vpack.c.b16 %v1444, %v1442
  %v1465 = vpack.c.b16 %v1447, %v1445
  %v1466 = vpack.c.b16 %v1448, %v1446
  %v1467 = vpack.c.b16 %v1451, %v1449
  %v1468 = vpack.c.b16 %v1452, %v1450
  %1485 = vmatprep.subr.bf16.mxu0 %v1454
  %1486 = vmatpush1.bf16.msra.mxu0 %v1453
  %1487 = vmatprep.subr.bf16.mxu0 %v1456
  %1488 = vmatpush1.bf16.msra.mxu0 %v1455
  %1489 = vmatprep.subr.bf16.mxu0 %v1458
  %1490 = vmatpush1.bf16.msra.mxu0 %v1457
  %1491 = vmatprep.subr.bf16.mxu0 %v1460
  %1492 = vmatpush1.bf16.msra.mxu0 %v1459
  %1493 = vmatprep.subr.bf16.mxu0 %v1462
  %1494 = vmatpush1.bf16.msra.mxu0 %v1461
  %1495 = vmatprep.subr.bf16.mxu0 %v1464
  %1496 = vmatpush1.bf16.msra.mxu0 %v1463
  %1497 = vmatprep.subr.bf16.mxu0 %v1466
  %1498 = vmatpush1.bf16.msra.mxu0 %v1465
  %1499 = vmatprep.subr.bf16.mxu0 %v1468
  %1500 = vmatpush1.bf16.msra.mxu0 %v1467
  %1501 = vmatprep.subr.bf16.mxu0 0
  %1502 = vmatpush1.bf16.msra.mxu0 0
  %1503 = vmatprep.subr.bf16.mxu0 0
  %1504 = vmatpush1.bf16.msra.mxu0 0
  %1505 = vmatprep.subr.bf16.mxu0 0
  %1506 = vmatpush1.bf16.msra.mxu0 0
  %1507 = vmatprep.subr.bf16.mxu0 0
  %1508 = vmatpush1.bf16.msra.mxu0 0
  %1509 = vmatprep.subr.bf16.mxu0 0
  %1510 = vmatpush1.bf16.msra.mxu0 0
  %1511 = vmatprep.subr.bf16.mxu0 0
  %1512 = vmatpush1.bf16.msra.mxu0 0
  %1513 = vmatprep.subr.bf16.mxu0 0
  %1514 = vmatpush1.bf16.msra.mxu0 0
  %1515 = vmatprep.subr.bf16.mxu0 0
  %1516 = vmatpush1.bf16.msra.mxu0 0
  %1517 = vmatprep.mubr.bf16.mxu0 0
  %1518 = vmatmul.mubr.bf16.gmra.mrb[0].mxu0 %v1368
  %v1519 = vpop.f32.mrb[0].mxu0
  %v1520 = vadd.f32 %v1398, %v1519
  %v1521 = vpop.f32.mrb[0].mxu0
  %v1522 = vadd.f32 %v1402, %v1521
  %v1523 = vpop.f32.mrb[0].mxu0
  %v1524 = vpop.f32.mrb[0].mxu0
  %1525 = vdwg.mxu0
  %s1526 = scalar_lea.vmem %s2, 128
  %v1527 = vld [vmem:[%s1526] sm:$0xff]
  %v1528 = vld [vmem:[%s1526 + $0x8] sm:$0xff]
  %v1529 = vld [vmem:[%s1526 + $0x10] sm:$0xff]
  %v1530 = vld [vmem:[%s1526 + $0x18] sm:$0xff]
  %v1531 = vld [vmem:[%s1526 + $0x20] sm:$0xff]
  %v1532 = vld [vmem:[%s1526 + $0x28] sm:$0xff]
  %v1533 = vld [vmem:[%s1526 + $0x30] sm:$0xff]
  %v1534 = vld [vmem:[%s1526 + $0x38] sm:$0xff]
  %v1535 = vld [vmem:[%s1526 + $0x40] sm:$0xff]
  %v1536 = vld [vmem:[%s1526 + $0x48] sm:$0xff]
  %v1537 = vld [vmem:[%s1526 + $0x50] sm:$0xff]
  %v1538 = vld [vmem:[%s1526 + $0x58] sm:$0xff]
  %v1539 = vld [vmem:[%s1526 + $0x60] sm:$0xff]
  %v1540 = vld [vmem:[%s1526 + $0x68] sm:$0xff]
  %v1541 = vld [vmem:[%s1526 + $0x70] sm:$0xff]
  %v1542 = vld [vmem:[%s1526 + $0x78] sm:$0xff]
  %v1544 = vrot.slane %v1368, 4
  %v1562 = vunpack.c.l.b16 %v1527
  %v1563 = vunpack.c.h.b16 %v1527
  %v1564 = vunpack.c.l.b16 %v1528
  %v1565 = vunpack.c.h.b16 %v1528
  %v1566 = vunpack.c.l.b16 %v1529
  %v1567 = vunpack.c.h.b16 %v1529
  %v1568 = vunpack.c.l.b16 %v1530
  %v1569 = vunpack.c.h.b16 %v1530
  %v1570 = vunpack.c.l.b16 %v1531
  %v1571 = vunpack.c.h.b16 %v1531
  %v1572 = vunpack.c.l.b16 %v1532
  %v1573 = vunpack.c.h.b16 %v1532
  %v1574 = vunpack.c.l.b16 %v1533
  %v1575 = vunpack.c.h.b16 %v1533
  %v1576 = vunpack.c.l.b16 %v1534
  %v1577 = vunpack.c.h.b16 %v1534
  %v1578 = vunpack.c.l.b16 %v1535
  %v1579 = vunpack.c.h.b16 %v1535
  %v1580 = vunpack.c.l.b16 %v1536
  %v1581 = vunpack.c.h.b16 %v1536
  %v1582 = vunpack.c.l.b16 %v1537
  %v1583 = vunpack.c.h.b16 %v1537
  %v1584 = vunpack.c.l.b16 %v1538
  %v1585 = vunpack.c.h.b16 %v1538
  %v1586 = vunpack.c.l.b16 %v1539
  %v1587 = vunpack.c.h.b16 %v1539
  %v1588 = vunpack.c.l.b16 %v1540
  %v1589 = vunpack.c.h.b16 %v1540
  %v1590 = vunpack.c.l.b16 %v1541
  %v1591 = vunpack.c.h.b16 %v1541
  %v1592 = vunpack.c.l.b16 %v1542
  %v1593 = vunpack.c.h.b16 %v1542
  %v1594 = vpack.c.b16 %v1564, %v1562
  %v1595 = vpack.c.b16 %v1565, %v1563
  %v1596 = vpack.c.b16 %v1568, %v1566
  %v1597 = vpack.c.b16 %v1569, %v1567
  %v1598 = vpack.c.b16 %v1572, %v1570
  %v1599 = vpack.c.b16 %v1573, %v1571
  %v1600 = vpack.c.b16 %v1576, %v1574
  %v1601 = vpack.c.b16 %v1577, %v1575
  %v1602 = vpack.c.b16 %v1580, %v1578
  %v1603 = vpack.c.b16 %v1581, %v1579
  %v1604 = vpack.c.b16 %v1584, %v1582
  %v1605 = vpack.c.b16 %v1585, %v1583
  %v1606 = vpack.c.b16 %v1588, %v1586
  %v1607 = vpack.c.b16 %v1589, %v1587
  %v1608 = vpack.c.b16 %v1592, %v1590
  %v1609 = vpack.c.b16 %v1593, %v1591
  %1626 = vmatprep.subr.bf16.mxu0 %v1595
  %1627 = vmatpush1.bf16.msra.mxu0 %v1594
  %1628 = vmatprep.subr.bf16.mxu0 %v1597
  %1629 = vmatpush1.bf16.msra.mxu0 %v1596
  %1630 = vmatprep.subr.bf16.mxu0 %v1599
  %1631 = vmatpush1.bf16.msra.mxu0 %v1598
  %1632 = vmatprep.subr.bf16.mxu0 %v1601
  %1633 = vmatpush1.bf16.msra.mxu0 %v1600
  %1634 = vmatprep.subr.bf16.mxu0 %v1603
  %1635 = vmatpush1.bf16.msra.mxu0 %v1602
  %1636 = vmatprep.subr.bf16.mxu0 %v1605
  %1637 = vmatpush1.bf16.msra.mxu0 %v1604
  %1638 = vmatprep.subr.bf16.mxu0 %v1607
  %1639 = vmatpush1.bf16.msra.mxu0 %v1606
  %1640 = vmatprep.subr.bf16.mxu0 %v1609
  %1641 = vmatpush1.bf16.msra.mxu0 %v1608
  %1642 = vmatprep.subr.bf16.mxu0 0
  %1643 = vmatpush1.bf16.msra.mxu0 0
  %1644 = vmatprep.subr.bf16.mxu0 0
  %1645 = vmatpush1.bf16.msra.mxu0 0
  %1646 = vmatprep.subr.bf16.mxu0 0
  %1647 = vmatpush1.bf16.msra.mxu0 0
  %1648 = vmatprep.subr.bf16.mxu0 0
  %1649 = vmatpush1.bf16.msra.mxu0 0
  %1650 = vmatprep.subr.bf16.mxu0 0
  %1651 = vmatpush1.bf16.msra.mxu0 0
  %1652 = vmatprep.subr.bf16.mxu0 0
  %1653 = vmatpush1.bf16.msra.mxu0 0
  %1654 = vmatprep.subr.bf16.mxu0 0
  %1655 = vmatpush1.bf16.msra.mxu0 0
  %1656 = vmatprep.subr.bf16.mxu0 0
  %1657 = vmatpush1.bf16.msra.mxu0 0
  %1658 = vmatprep.mubr.bf16.mxu0 0
  %1659 = vmatmul.mubr.bf16.gmra.mrb[0].mxu0 %v1544
  %v1660 = vpop.f32.mrb[0].mxu0
  %v1661 = vadd.f32 0.0, %v1660
  %v1662 = vpop.f32.mrb[0].mxu0
  %v1663 = vadd.f32 0.0, %v1662
  %v1664 = vpop.f32.mrb[0].mxu0
  %v1665 = vpop.f32.mrb[0].mxu0
  %1666 = vdwg.mxu0
  %v1667 = vadd.f32 %v1520, %v1661
  %v1668 = vadd.f32 %v1522, %v1663
  %s1669 = scalar_lea.vmem %s2, 256
  %v1670 = vld [vmem:[%s1669] sm:$0xff]
  %v1671 = vld [vmem:[%s1669 + $0x8] sm:$0xff]
  %v1672 = vld [vmem:[%s1669 + $0x10] sm:$0xff]
  %v1673 = vld [vmem:[%s1669 + $0x18] sm:$0xff]
  %v1674 = vld [vmem:[%s1669 + $0x20] sm:$0xff]
  %v1675 = vld [vmem:[%s1669 + $0x28] sm:$0xff]
  %v1676 = vld [vmem:[%s1669 + $0x30] sm:$0xff]
  %v1677 = vld [vmem:[%s1669 + $0x38] sm:$0xff]
  %v1678 = vld [vmem:[%s1669 + $0x40] sm:$0xff]
  %v1679 = vld [vmem:[%s1669 + $0x48] sm:$0xff]
  %v1680 = vld [vmem:[%s1669 + $0x50] sm:$0xff]
  %v1681 = vld [vmem:[%s1669 + $0x58] sm:$0xff]
  %v1682 = vld [vmem:[%s1669 + $0x60] sm:$0xff]
  %v1683 = vld [vmem:[%s1669 + $0x68] sm:$0xff]
  %v1684 = vld [vmem:[%s1669 + $0x70] sm:$0xff]
  %v1685 = vld [vmem:[%s1669 + $0x78] sm:$0xff]
  %v1702 = vunpack.c.l.b16 %v1670
  %v1703 = vunpack.c.h.b16 %v1670
  %v1704 = vunpack.c.l.b16 %v1671
  %v1705 = vunpack.c.h.b16 %v1671
  %v1706 = vunpack.c.l.b16 %v1672
  %v1707 = vunpack.c.h.b16 %v1672
  %v1708 = vunpack.c.l.b16 %v1673
  %v1709 = vunpack.c.h.b16 %v1673
  %v1710 = vunpack.c.l.b16 %v1674
  %v1711 = vunpack.c.h.b16 %v1674
  %v1712 = vunpack.c.l.b16 %v1675
  %v1713 = vunpack.c.h.b16 %v1675
  %v1714 = vunpack.c.l.b16 %v1676
  %v1715 = vunpack.c.h.b16 %v1676
  %v1716 = vunpack.c.l.b16 %v1677
  %v1717 = vunpack.c.h.b16 %v1677
  %v1718 = vunpack.c.l.b16 %v1678
  %v1719 = vunpack.c.h.b16 %v1678
  %v1720 = vunpack.c.l.b16 %v1679
  %v1721 = vunpack.c.h.b16 %v1679
  %v1722 = vunpack.c.l.b16 %v1680
  %v1723 = vunpack.c.h.b16 %v1680
  %v1724 = vunpack.c.l.b16 %v1681
  %v1725 = vunpack.c.h.b16 %v1681
  %v1726 = vunpack.c.l.b16 %v1682
  %v1727 = vunpack.c.h.b16 %v1682
  %v1728 = vunpack.c.l.b16 %v1683
  %v1729 = vunpack.c.h.b16 %v1683
  %v1730 = vunpack.c.l.b16 %v1684
  %v1731 = vunpack.c.h.b16 %v1684
  %v1732 = vunpack.c.l.b16 %v1685
  %v1733 = vunpack.c.h.b16 %v1685
  %v1734 = vpack.c.b16 %v1704, %v1702
  %v1735 = vpack.c.b16 %v1705, %v1703
  %v1736 = vpack.c.b16 %v1708, %v1706
  %v1737 = vpack.c.b16 %v1709, %v1707
  %v1738 = vpack.c.b16 %v1712, %v1710
  %v1739 = vpack.c.b16 %v1713, %v1711
  %v1740 = vpack.c.b16 %v1716, %v1714
  %v1741 = vpack.c.b16 %v1717, %v1715
  %v1742 = vpack.c.b16 %v1720, %v1718
  %v1743 = vpack.c.b16 %v1721, %v1719
  %v1744 = vpack.c.b16 %v1724, %v1722
  %v1745 = vpack.c.b16 %v1725, %v1723
  %v1746 = vpack.c.b16 %v1728, %v1726
  %v1747 = vpack.c.b16 %v1729, %v1727
  %v1748 = vpack.c.b16 %v1732, %v1730
  %v1749 = vpack.c.b16 %v1733, %v1731
  %1766 = vmatprep.subr.bf16.mxu0 %v1735
  %1767 = vmatpush1.bf16.msra.mxu0 %v1734
  %1768 = vmatprep.subr.bf16.mxu0 %v1737
  %1769 = vmatpush1.bf16.msra.mxu0 %v1736
  %1770 = vmatprep.subr.bf16.mxu0 %v1739
  %1771 = vmatpush1.bf16.msra.mxu0 %v1738
  %1772 = vmatprep.subr.bf16.mxu0 %v1741
  %1773 = vmatpush1.bf16.msra.mxu0 %v1740
  %1774 = vmatprep.subr.bf16.mxu0 %v1743
  %1775 = vmatpush1.bf16.msra.mxu0 %v1742
  %1776 = vmatprep.subr.bf16.mxu0 %v1745
  %1777 = vmatpush1.bf16.msra.mxu0 %v1744
  %1778 = vmatprep.subr.bf16.mxu0 %v1747
  %1779 = vmatpush1.bf16.msra.mxu0 %v1746
  %1780 = vmatprep.subr.bf16.mxu0 %v1749
  %1781 = vmatpush1.bf16.msra.mxu0 %v1748
  %1782 = vmatprep.subr.bf16.mxu0 0
  %1783 = vmatpush1.bf16.msra.mxu0 0
  %1784 = vmatprep.subr.bf16.mxu0 0
  %1785 = vmatpush1.bf16.msra.mxu0 0
  %1786 = vmatprep.subr.bf16.mxu0 0
  %1787 = vmatpush1.bf16.msra.mxu0 0
  %1788 = vmatprep.subr.bf16.mxu0 0
  %1789 = vmatpush1.bf16.msra.mxu0 0
  %1790 = vmatprep.subr.bf16.mxu0 0
  %1791 = vmatpush1.bf16.msra.mxu0 0
  %1792 = vmatprep.subr.bf16.mxu0 0
  %1793 = vmatpush1.bf16.msra.mxu0 0
  %1794 = vmatprep.subr.bf16.mxu0 0
  %1795 = vmatpush1.bf16.msra.mxu0 0
  %1796 = vmatprep.subr.bf16.mxu0 0
  %1797 = vmatpush1.bf16.msra.mxu0 0
  %1798 = vmatprep.mubr.bf16.mxu0 0
  %1799 = vmatmul.mubr.bf16.gmra.mrb[0].mxu0 %v1369
  %v1800 = vpop.f32.mrb[0].mxu0
  %v1801 = vadd.f32 0.0, %v1800
  %v1802 = vpop.f32.mrb[0].mxu0
  %v1803 = vadd.f32 0.0, %v1802
  %v1804 = vpop.f32.mrb[0].mxu0
  %v1805 = vpop.f32.mrb[0].mxu0
  %1806 = vdwg.mxu0
  %v1807 = vadd.f32 %v1667, %v1801
  %v1808 = vadd.f32 %v1668, %v1803
  %s1809 = scalar_lea.vmem %s2, 384
  %v1810 = vld [vmem:[%s1809] sm:$0xff]
  %v1811 = vld [vmem:[%s1809 + $0x8] sm:$0xff]
  %v1812 = vld [vmem:[%s1809 + $0x10] sm:$0xff]
  %v1813 = vld [vmem:[%s1809 + $0x18] sm:$0xff]
  %v1814 = vld [vmem:[%s1809 + $0x20] sm:$0xff]
  %v1815 = vld [vmem:[%s1809 + $0x28] sm:$0xff]
  %v1816 = vld [vmem:[%s1809 + $0x30] sm:$0xff]
  %v1817 = vld [vmem:[%s1809 + $0x38] sm:$0xff]
  %v1818 = vld [vmem:[%s1809 + $0x40] sm:$0xff]
  %v1819 = vld [vmem:[%s1809 + $0x48] sm:$0xff]
  %v1820 = vld [vmem:[%s1809 + $0x50] sm:$0xff]
  %v1821 = vld [vmem:[%s1809 + $0x58] sm:$0xff]
  %v1822 = vld [vmem:[%s1809 + $0x60] sm:$0xff]
  %v1823 = vld [vmem:[%s1809 + $0x68] sm:$0xff]
  %v1824 = vld [vmem:[%s1809 + $0x70] sm:$0xff]
  %v1825 = vld [vmem:[%s1809 + $0x78] sm:$0xff]
  %v1827 = vrot.slane %v1369, 4
  %v1845 = vunpack.c.l.b16 %v1810
  %v1846 = vunpack.c.h.b16 %v1810
  %v1847 = vunpack.c.l.b16 %v1811
  %v1848 = vunpack.c.h.b16 %v1811
  %v1849 = vunpack.c.l.b16 %v1812
  %v1850 = vunpack.c.h.b16 %v1812
  %v1851 = vunpack.c.l.b16 %v1813
  %v1852 = vunpack.c.h.b16 %v1813
  %v1853 = vunpack.c.l.b16 %v1814
  %v1854 = vunpack.c.h.b16 %v1814
  %v1855 = vunpack.c.l.b16 %v1815
  %v1856 = vunpack.c.h.b16 %v1815
  %v1857 = vunpack.c.l.b16 %v1816
  %v1858 = vunpack.c.h.b16 %v1816
  %v1859 = vunpack.c.l.b16 %v1817
  %v1860 = vunpack.c.h.b16 %v1817
  %v1861 = vunpack.c.l.b16 %v1818
  %v1862 = vunpack.c.h.b16 %v1818
  %v1863 = vunpack.c.l.b16 %v1819
  %v1864 = vunpack.c.h.b16 %v1819
  %v1865 = vunpack.c.l.b16 %v1820
  %v1866 = vunpack.c.h.b16 %v1820
  %v1867 = vunpack.c.l.b16 %v1821
  %v1868 = vunpack.c.h.b16 %v1821
  %v1869 = vunpack.c.l.b16 %v1822
  %v1870 = vunpack.c.h.b16 %v1822
  %v1871 = vunpack.c.l.b16 %v1823
  %v1872 = vunpack.c.h.b16 %v1823
  %v1873 = vunpack.c.l.b16 %v1824
  %v1874 = vunpack.c.h.b16 %v1824
  %v1875 = vunpack.c.l.b16 %v1825
  %v1876 = vunpack.c.h.b16 %v1825
  %v1877 = vpack.c.b16 %v1847, %v1845
  %v1878 = vpack.c.b16 %v1848, %v1846
  %v1879 = vpack.c.b16 %v1851, %v1849
  %v1880 = vpack.c.b16 %v1852, %v1850
  %v1881 = vpack.c.b16 %v1855, %v1853
  %v1882 = vpack.c.b16 %v1856, %v1854
  %v1883 = vpack.c.b16 %v1859, %v1857
  %v1884 = vpack.c.b16 %v1860, %v1858
  %v1885 = vpack.c.b16 %v1863, %v1861
  %v1886 = vpack.c.b16 %v1864, %v1862
  %v1887 = vpack.c.b16 %v1867, %v1865
  %v1888 = vpack.c.b16 %v1868, %v1866
  %v1889 = vpack.c.b16 %v1871, %v1869
  %v1890 = vpack.c.b16 %v1872, %v1870
  %v1891 = vpack.c.b16 %v1875, %v1873
  %v1892 = vpack.c.b16 %v1876, %v1874
  %1909 = vmatprep.subr.bf16.mxu0 %v1878
  %1910 = vmatpush1.bf16.msra.mxu0 %v1877
  %1911 = vmatprep.subr.bf16.mxu0 %v1880
  %1912 = vmatpush1.bf16.msra.mxu0 %v1879
  %1913 = vmatprep.subr.bf16.mxu0 %v1882
  %1914 = vmatpush1.bf16.msra.mxu0 %v1881
  %1915 = vmatprep.subr.bf16.mxu0 %v1884
  %1916 = vmatpush1.bf16.msra.mxu0 %v1883
  %1917 = vmatprep.subr.bf16.mxu0 %v1886
  %1918 = vmatpush1.bf16.msra.mxu0 %v1885
  %1919 = vmatprep.subr.bf16.mxu0 %v1888
  %1920 = vmatpush1.bf16.msra.mxu0 %v1887
  %1921 = vmatprep.subr.bf16.mxu0 %v1890
  %1922 = vmatpush1.bf16.msra.mxu0 %v1889
  %1923 = vmatprep.subr.bf16.mxu0 %v1892
  %1924 = vmatpush1.bf16.msra.mxu0 %v1891
  %1925 = vmatprep.subr.bf16.mxu0 0
  %1926 = vmatpush1.bf16.msra.mxu0 0
  %1927 = vmatprep.subr.bf16.mxu0 0
  %1928 = vmatpush1.bf16.msra.mxu0 0
  %1929 = vmatprep.subr.bf16.mxu0 0
  %1930 = vmatpush1.bf16.msra.mxu0 0
  %1931 = vmatprep.subr.bf16.mxu0 0
  %1932 = vmatpush1.bf16.msra.mxu0 0
  %1933 = vmatprep.subr.bf16.mxu0 0
  %1934 = vmatpush1.bf16.msra.mxu0 0
  %1935 = vmatprep.subr.bf16.mxu0 0
  %1936 = vmatpush1.bf16.msra.mxu0 0
  %1937 = vmatprep.subr.bf16.mxu0 0
  %1938 = vmatpush1.bf16.msra.mxu0 0
  %1939 = vmatprep.subr.bf16.mxu0 0
  %1940 = vmatpush1.bf16.msra.mxu0 0
  %1941 = vmatprep.mubr.bf16.mxu0 0
  %1942 = vmatmul.mubr.bf16.gmra.mrb[0].mxu0 %v1827
  %v1943 = vpop.f32.mrb[0].mxu0
  %v1944 = vadd.f32 0.0, %v1943
  %v1945 = vpop.f32.mrb[0].mxu0
  %v1946 = vadd.f32 0.0, %v1945
  %v1947 = vpop.f32.mrb[0].mxu0
  %v1948 = vpop.f32.mrb[0].mxu0
  %1949 = vdwg.mxu0
  %v1950 = vadd.f32 %v1807, %v1944
  %v1951 = vadd.f32 %v1808, %v1946
  %s1952 = scalar_lea.vmem %s2, 512
  %v1953 = vld [vmem:[%s1952] sm:$0xff]
  %v1954 = vld [vmem:[%s1952 + $0x8] sm:$0xff]
  %v1955 = vld [vmem:[%s1952 + $0x10] sm:$0xff]
  %v1956 = vld [vmem:[%s1952 + $0x18] sm:$0xff]
  %v1957 = vld [vmem:[%s1952 + $0x20] sm:$0xff]
  %v1958 = vld [vmem:[%s1952 + $0x28] sm:$0xff]
  %v1959 = vld [vmem:[%s1952 + $0x30] sm:$0xff]
  %v1960 = vld [vmem:[%s1952 + $0x38] sm:$0xff]
  %v1961 = vld [vmem:[%s1952 + $0x40] sm:$0xff]
  %v1962 = vld [vmem:[%s1952 + $0x48] sm:$0xff]
  %v1963 = vld [vmem:[%s1952 + $0x50] sm:$0xff]
  %v1964 = vld [vmem:[%s1952 + $0x58] sm:$0xff]
  %v1965 = vld [vmem:[%s1952 + $0x60] sm:$0xff]
  %v1966 = vld [vmem:[%s1952 + $0x68] sm:$0xff]
  %v1967 = vld [vmem:[%s1952 + $0x70] sm:$0xff]
  %v1968 = vld [vmem:[%s1952 + $0x78] sm:$0xff]
  %v1985 = vunpack.c.l.b16 %v1953
  %v1986 = vunpack.c.h.b16 %v1953
  %v1987 = vunpack.c.l.b16 %v1954
  %v1988 = vunpack.c.h.b16 %v1954
  %v1989 = vunpack.c.l.b16 %v1955
  %v1990 = vunpack.c.h.b16 %v1955
  %v1991 = vunpack.c.l.b16 %v1956
  %v1992 = vunpack.c.h.b16 %v1956
  %v1993 = vunpack.c.l.b16 %v1957
  %v1994 = vunpack.c.h.b16 %v1957
  %v1995 = vunpack.c.l.b16 %v1958
  %v1996 = vunpack.c.h.b16 %v1958
  %v1997 = vunpack.c.l.b16 %v1959
  %v1998 = vunpack.c.h.b16 %v1959
  %v1999 = vunpack.c.l.b16 %v1960
  %v2000 = vunpack.c.h.b16 %v1960
  %v2001 = vunpack.c.l.b16 %v1961
  %v2002 = vunpack.c.h.b16 %v1961
  %v2003 = vunpack.c.l.b16 %v1962
  %v2004 = vunpack.c.h.b16 %v1962
  %v2005 = vunpack.c.l.b16 %v1963
  %v2006 = vunpack.c.h.b16 %v1963
  %v2007 = vunpack.c.l.b16 %v1964
  %v2008 = vunpack.c.h.b16 %v1964
  %v2009 = vunpack.c.l.b16 %v1965
  %v2010 = vunpack.c.h.b16 %v1965
  %v2011 = vunpack.c.l.b16 %v1966
  %v2012 = vunpack.c.h.b16 %v1966
  %v2013 = vunpack.c.l.b16 %v1967
  %v2014 = vunpack.c.h.b16 %v1967
  %v2015 = vunpack.c.l.b16 %v1968
  %v2016 = vunpack.c.h.b16 %v1968
  %v2017 = vpack.c.b16 %v1987, %v1985
  %v2018 = vpack.c.b16 %v1988, %v1986
  %v2019 = vpack.c.b16 %v1991, %v1989
  %v2020 = vpack.c.b16 %v1992, %v1990
  %v2021 = vpack.c.b16 %v1995, %v1993
  %v2022 = vpack.c.b16 %v1996, %v1994
  %v2023 = vpack.c.b16 %v1999, %v1997
  %v2024 = vpack.c.b16 %v2000, %v1998
  %v2025 = vpack.c.b16 %v2003, %v2001
  %v2026 = vpack.c.b16 %v2004, %v2002
  %v2027 = vpack.c.b16 %v2007, %v2005
  %v2028 = vpack.c.b16 %v2008, %v2006
  %v2029 = vpack.c.b16 %v2011, %v2009
  %v2030 = vpack.c.b16 %v2012, %v2010
  %v2031 = vpack.c.b16 %v2015, %v2013
  %v2032 = vpack.c.b16 %v2016, %v2014
  %2049 = vmatprep.subr.bf16.mxu0 %v2018
  %2050 = vmatpush1.bf16.msra.mxu0 %v2017
  %2051 = vmatprep.subr.bf16.mxu0 %v2020
  %2052 = vmatpush1.bf16.msra.mxu0 %v2019
  %2053 = vmatprep.subr.bf16.mxu0 %v2022
  %2054 = vmatpush1.bf16.msra.mxu0 %v2021
  %2055 = vmatprep.subr.bf16.mxu0 %v2024
  %2056 = vmatpush1.bf16.msra.mxu0 %v2023
  %2057 = vmatprep.subr.bf16.mxu0 %v2026
  %2058 = vmatpush1.bf16.msra.mxu0 %v2025
  %2059 = vmatprep.subr.bf16.mxu0 %v2028
  %2060 = vmatpush1.bf16.msra.mxu0 %v2027
  %2061 = vmatprep.subr.bf16.mxu0 %v2030
  %2062 = vmatpush1.bf16.msra.mxu0 %v2029
  %2063 = vmatprep.subr.bf16.mxu0 %v2032
  %2064 = vmatpush1.bf16.msra.mxu0 %v2031
  %2065 = vmatprep.subr.bf16.mxu0 0
  %2066 = vmatpush1.bf16.msra.mxu0 0
  %2067 = vmatprep.subr.bf16.mxu0 0
  %2068 = vmatpush1.bf16.msra.mxu0 0
  %2069 = vmatprep.subr.bf16.mxu0 0
  %2070 = vmatpush1.bf16.msra.mxu0 0
  %2071 = vmatprep.subr.bf16.mxu0 0
  %2072 = vmatpush1.bf16.msra.mxu0 0
  %2073 = vmatprep.subr.bf16.mxu0 0
  %2074 = vmatpush1.bf16.msra.mxu0 0
  %2075 = vmatprep.subr.bf16.mxu0 0
  %2076 = vmatpush1.bf16.msra.mxu0 0
  %2077 = vmatprep.subr.bf16.mxu0 0
  %2078 = vmatpush1.bf16.msra.mxu0 0
  %2079 = vmatprep.subr.bf16.mxu0 0
  %2080 = vmatpush1.bf16.msra.mxu0 0
  %2081 = vmatprep.mubr.bf16.mxu0 0
  %2082 = vmatmul.mubr.bf16.gmra.mrb[0].mxu0 %v1370
  %v2083 = vpop.f32.mrb[0].mxu0
  %v2084 = vadd.f32 0.0, %v2083
  %v2085 = vpop.f32.mrb[0].mxu0
  %v2086 = vadd.f32 0.0, %v2085
  %v2087 = vpop.f32.mrb[0].mxu0
  %v2088 = vpop.f32.mrb[0].mxu0
  %2089 = vdwg.mxu0
  %v2090 = vadd.f32 %v1950, %v2084
  %v2091 = vadd.f32 %v1951, %v2086
  %s2092 = scalar_lea.vmem %s2, 640
  %v2093 = vld [vmem:[%s2092] sm:$0xff]
  %v2094 = vld [vmem:[%s2092 + $0x8] sm:$0xff]
  %v2095 = vld [vmem:[%s2092 + $0x10] sm:$0xff]
  %v2096 = vld [vmem:[%s2092 + $0x18] sm:$0xff]
  %v2097 = vld [vmem:[%s2092 + $0x20] sm:$0xff]
  %v2098 = vld [vmem:[%s2092 + $0x28] sm:$0xff]
  %v2099 = vld [vmem:[%s2092 + $0x30] sm:$0xff]
  %v2100 = vld [vmem:[%s2092 + $0x38] sm:$0xff]
  %v2101 = vld [vmem:[%s2092 + $0x40] sm:$0xff]
  %v2102 = vld [vmem:[%s2092 + $0x48] sm:$0xff]
  %v2103 = vld [vmem:[%s2092 + $0x50] sm:$0xff]
  %v2104 = vld [vmem:[%s2092 + $0x58] sm:$0xff]
  %v2105 = vld [vmem:[%s2092 + $0x60] sm:$0xff]
  %v2106 = vld [vmem:[%s2092 + $0x68] sm:$0xff]
  %v2107 = vld [vmem:[%s2092 + $0x70] sm:$0xff]
  %v2108 = vld [vmem:[%s2092 + $0x78] sm:$0xff]
  %v2110 = vrot.slane %v1370, 4
  %v2128 = vunpack.c.l.b16 %v2093
  %v2129 = vunpack.c.h.b16 %v2093
  %v2130 = vunpack.c.l.b16 %v2094
  %v2131 = vunpack.c.h.b16 %v2094
  %v2132 = vunpack.c.l.b16 %v2095
  %v2133 = vunpack.c.h.b16 %v2095
  %v2134 = vunpack.c.l.b16 %v2096
  %v2135 = vunpack.c.h.b16 %v2096
  %v2136 = vunpack.c.l.b16 %v2097
  %v2137 = vunpack.c.h.b16 %v2097
  %v2138 = vunpack.c.l.b16 %v2098
  %v2139 = vunpack.c.h.b16 %v2098
  %v2140 = vunpack.c.l.b16 %v2099
  %v2141 = vunpack.c.h.b16 %v2099
  %v2142 = vunpack.c.l.b16 %v2100
  %v2143 = vunpack.c.h.b16 %v2100
  %v2144 = vunpack.c.l.b16 %v2101
  %v2145 = vunpack.c.h.b16 %v2101
  %v2146 = vunpack.c.l.b16 %v2102
  %v2147 = vunpack.c.h.b16 %v2102
  %v2148 = vunpack.c.l.b16 %v2103
  %v2149 = vunpack.c.h.b16 %v2103
  %v2150 = vunpack.c.l.b16 %v2104
  %v2151 = vunpack.c.h.b16 %v2104
  %v2152 = vunpack.c.l.b16 %v2105
  %v2153 = vunpack.c.h.b16 %v2105
  %v2154 = vunpack.c.l.b16 %v2106
  %v2155 = vunpack.c.h.b16 %v2106
  %v2156 = vunpack.c.l.b16 %v2107
  %v2157 = vunpack.c.h.b16 %v2107
  %v2158 = vunpack.c.l.b16 %v2108
  %v2159 = vunpack.c.h.b16 %v2108
  %v2160 = vpack.c.b16 %v2130, %v2128
  %v2161 = vpack.c.b16 %v2131, %v2129
  %v2162 = vpack.c.b16 %v2134, %v2132
  %v2163 = vpack.c.b16 %v2135, %v2133
  %v2164 = vpack.c.b16 %v2138, %v2136
  %v2165 = vpack.c.b16 %v2139, %v2137
  %v2166 = vpack.c.b16 %v2142, %v2140
  %v2167 = vpack.c.b16 %v2143, %v2141
  %v2168 = vpack.c.b16 %v2146, %v2144
  %v2169 = vpack.c.b16 %v2147, %v2145
  %v2170 = vpack.c.b16 %v2150, %v2148
  %v2171 = vpack.c.b16 %v2151, %v2149
  %v2172 = vpack.c.b16 %v2154, %v2152
  %v2173 = vpack.c.b16 %v2155, %v2153
  %v2174 = vpack.c.b16 %v2158, %v2156
  %v2175 = vpack.c.b16 %v2159, %v2157
  %2192 = vmatprep.subr.bf16.mxu0 %v2161
  %2193 = vmatpush1.bf16.msra.mxu0 %v2160
  %2194 = vmatprep.subr.bf16.mxu0 %v2163
  %2195 = vmatpush1.bf16.msra.mxu0 %v2162
  %2196 = vmatprep.subr.bf16.mxu0 %v2165
  %2197 = vmatpush1.bf16.msra.mxu0 %v2164
  %2198 = vmatprep.subr.bf16.mxu0 %v2167
  %2199 = vmatpush1.bf16.msra.mxu0 %v2166
  %2200 = vmatprep.subr.bf16.mxu0 %v2169
  %2201 = vmatpush1.bf16.msra.mxu0 %v2168
  %2202 = vmatprep.subr.bf16.mxu0 %v2171
  %2203 = vmatpush1.bf16.msra.mxu0 %v2170
  %2204 = vmatprep.subr.bf16.mxu0 %v2173
  %2205 = vmatpush1.bf16.msra.mxu0 %v2172
  %2206 = vmatprep.subr.bf16.mxu0 %v2175
  %2207 = vmatpush1.bf16.msra.mxu0 %v2174
  %2208 = vmatprep.subr.bf16.mxu0 0
  %2209 = vmatpush1.bf16.msra.mxu0 0
  %2210 = vmatprep.subr.bf16.mxu0 0
  %2211 = vmatpush1.bf16.msra.mxu0 0
  %2212 = vmatprep.subr.bf16.mxu0 0
  %2213 = vmatpush1.bf16.msra.mxu0 0
  %2214 = vmatprep.subr.bf16.mxu0 0
  %2215 = vmatpush1.bf16.msra.mxu0 0
  %2216 = vmatprep.subr.bf16.mxu0 0
  %2217 = vmatpush1.bf16.msra.mxu0 0
  %2218 = vmatprep.subr.bf16.mxu0 0
  %2219 = vmatpush1.bf16.msra.mxu0 0
  %2220 = vmatprep.subr.bf16.mxu0 0
  %2221 = vmatpush1.bf16.msra.mxu0 0
  %2222 = vmatprep.subr.bf16.mxu0 0
  %2223 = vmatpush1.bf16.msra.mxu0 0
  %2224 = vmatprep.mubr.bf16.mxu0 0
  %2225 = vmatmul.mubr.bf16.gmra.mrb[0].mxu0 %v2110
  %v2226 = vpop.f32.mrb[0].mxu0
  %v2227 = vadd.f32 0.0, %v2226
  %v2228 = vpop.f32.mrb[0].mxu0
  %v2229 = vadd.f32 0.0, %v2228
  %v2230 = vpop.f32.mrb[0].mxu0
  %v2231 = vpop.f32.mrb[0].mxu0
  %2232 = vdwg.mxu0
  %v2233 = vadd.f32 %v2090, %v2227
  %v2234 = vadd.f32 %v2091, %v2229
  %s2235 = scalar_lea.vmem %s2, 768
  %v2236 = vld [vmem:[%s2235] sm:$0xff]
  %v2237 = vld [vmem:[%s2235 + $0x8] sm:$0xff]
  %v2238 = vld [vmem:[%s2235 + $0x10] sm:$0xff]
  %v2239 = vld [vmem:[%s2235 + $0x18] sm:$0xff]
  %v2240 = vld [vmem:[%s2235 + $0x20] sm:$0xff]
  %v2241 = vld [vmem:[%s2235 + $0x28] sm:$0xff]
  %v2242 = vld [vmem:[%s2235 + $0x30] sm:$0xff]
  %v2243 = vld [vmem:[%s2235 + $0x38] sm:$0xff]
  %v2244 = vld [vmem:[%s2235 + $0x40] sm:$0xff]
  %v2245 = vld [vmem:[%s2235 + $0x48] sm:$0xff]
  %v2246 = vld [vmem:[%s2235 + $0x50] sm:$0xff]
  %v2247 = vld [vmem:[%s2235 + $0x58] sm:$0xff]
  %v2248 = vld [vmem:[%s2235 + $0x60] sm:$0xff]
  %v2249 = vld [vmem:[%s2235 + $0x68] sm:$0xff]
  %v2250 = vld [vmem:[%s2235 + $0x70] sm:$0xff]
  %v2251 = vld [vmem:[%s2235 + $0x78] sm:$0xff]
  %v2268 = vunpack.c.l.b16 %v2236
  %v2269 = vunpack.c.h.b16 %v2236
  %v2270 = vunpack.c.l.b16 %v2237
  %v2271 = vunpack.c.h.b16 %v2237
  %v2272 = vunpack.c.l.b16 %v2238
  %v2273 = vunpack.c.h.b16 %v2238
  %v2274 = vunpack.c.l.b16 %v2239
  %v2275 = vunpack.c.h.b16 %v2239
  %v2276 = vunpack.c.l.b16 %v2240
  %v2277 = vunpack.c.h.b16 %v2240
  %v2278 = vunpack.c.l.b16 %v2241
  %v2279 = vunpack.c.h.b16 %v2241
  %v2280 = vunpack.c.l.b16 %v2242
  %v2281 = vunpack.c.h.b16 %v2242
  %v2282 = vunpack.c.l.b16 %v2243
  %v2283 = vunpack.c.h.b16 %v2243
  %v2284 = vunpack.c.l.b16 %v2244
  %v2285 = vunpack.c.h.b16 %v2244
  %v2286 = vunpack.c.l.b16 %v2245
  %v2287 = vunpack.c.h.b16 %v2245
  %v2288 = vunpack.c.l.b16 %v2246
  %v2289 = vunpack.c.h.b16 %v2246
  %v2290 = vunpack.c.l.b16 %v2247
  %v2291 = vunpack.c.h.b16 %v2247
  %v2292 = vunpack.c.l.b16 %v2248
  %v2293 = vunpack.c.h.b16 %v2248
  %v2294 = vunpack.c.l.b16 %v2249
  %v2295 = vunpack.c.h.b16 %v2249
  %v2296 = vunpack.c.l.b16 %v2250
  %v2297 = vunpack.c.h.b16 %v2250
  %v2298 = vunpack.c.l.b16 %v2251
  %v2299 = vunpack.c.h.b16 %v2251
  %v2300 = vpack.c.b16 %v2270, %v2268
  %v2301 = vpack.c.b16 %v2271, %v2269
  %v2302 = vpack.c.b16 %v2274, %v2272
  %v2303 = vpack.c.b16 %v2275, %v2273
  %v2304 = vpack.c.b16 %v2278, %v2276
  %v2305 = vpack.c.b16 %v2279, %v2277
  %v2306 = vpack.c.b16 %v2282, %v2280
  %v2307 = vpack.c.b16 %v2283, %v2281
  %v2308 = vpack.c.b16 %v2286, %v2284
  %v2309 = vpack.c.b16 %v2287, %v2285
  %v2310 = vpack.c.b16 %v2290, %v2288
  %v2311 = vpack.c.b16 %v2291, %v2289
  %v2312 = vpack.c.b16 %v2294, %v2292
  %v2313 = vpack.c.b16 %v2295, %v2293
  %v2314 = vpack.c.b16 %v2298, %v2296
  %v2315 = vpack.c.b16 %v2299, %v2297
  %2332 = vmatprep.subr.bf16.mxu0 %v2301
  %2333 = vmatpush1.bf16.msra.mxu0 %v2300
  %2334 = vmatprep.subr.bf16.mxu0 %v2303
  %2335 = vmatpush1.bf16.msra.mxu0 %v2302
  %2336 = vmatprep.subr.bf16.mxu0 %v2305
  %2337 = vmatpush1.bf16.msra.mxu0 %v2304
  %2338 = vmatprep.subr.bf16.mxu0 %v2307
  %2339 = vmatpush1.bf16.msra.mxu0 %v2306
  %2340 = vmatprep.subr.bf16.mxu0 %v2309
  %2341 = vmatpush1.bf16.msra.mxu0 %v2308
  %2342 = vmatprep.subr.bf16.mxu0 %v2311
  %2343 = vmatpush1.bf16.msra.mxu0 %v2310
  %2344 = vmatprep.subr.bf16.mxu0 %v2313
  %2345 = vmatpush1.bf16.msra.mxu0 %v2312
  %2346 = vmatprep.subr.bf16.mxu0 %v2315
  %2347 = vmatpush1.bf16.msra.mxu0 %v2314
  %2348 = vmatprep.subr.bf16.mxu0 0
  %2349 = vmatpush1.bf16.msra.mxu0 0
  %2350 = vmatprep.subr.bf16.mxu0 0
  %2351 = vmatpush1.bf16.msra.mxu0 0
  %2352 = vmatprep.subr.bf16.mxu0 0
  %2353 = vmatpush1.bf16.msra.mxu0 0
  %2354 = vmatprep.subr.bf16.mxu0 0
  %2355 = vmatpush1.bf16.msra.mxu0 0
  %2356 = vmatprep.subr.bf16.mxu0 0
  %2357 = vmatpush1.bf16.msra.mxu0 0
  %2358 = vmatprep.subr.bf16.mxu0 0
  %2359 = vmatpush1.bf16.msra.mxu0 0
  %2360 = vmatprep.subr.bf16.mxu0 0
  %2361 = vmatpush1.bf16.msra.mxu0 0
  %2362 = vmatprep.subr.bf16.mxu0 0
  %2363 = vmatpush1.bf16.msra.mxu0 0
  %2364 = vmatprep.mubr.bf16.mxu0 0
  %2365 = vmatmul.mubr.bf16.gmra.mrb[0].mxu0 %v1371
  %v2366 = vpop.f32.mrb[0].mxu0
  %v2367 = vadd.f32 0.0, %v2366
  %v2368 = vpop.f32.mrb[0].mxu0
  %v2369 = vadd.f32 0.0, %v2368
  %v2370 = vpop.f32.mrb[0].mxu0
  %v2371 = vpop.f32.mrb[0].mxu0
  %2372 = vdwg.mxu0
  %v2373 = vadd.f32 %v2233, %v2367
  %v2374 = vadd.f32 %v2234, %v2369
  %s2375 = scalar_lea.vmem %s2, 896
  %v2376 = vld [vmem:[%s2375] sm:$0xff]
  %v2377 = vld [vmem:[%s2375 + $0x8] sm:$0xff]
  %v2378 = vld [vmem:[%s2375 + $0x10] sm:$0xff]
  %v2379 = vld [vmem:[%s2375 + $0x18] sm:$0xff]
  %v2380 = vld [vmem:[%s2375 + $0x20] sm:$0xff]
  %v2381 = vld [vmem:[%s2375 + $0x28] sm:$0xff]
  %v2382 = vld [vmem:[%s2375 + $0x30] sm:$0xff]
  %v2383 = vld [vmem:[%s2375 + $0x38] sm:$0xff]
  %v2384 = vld [vmem:[%s2375 + $0x40] sm:$0xff]
  %v2385 = vld [vmem:[%s2375 + $0x48] sm:$0xff]
  %v2386 = vld [vmem:[%s2375 + $0x50] sm:$0xff]
  %v2387 = vld [vmem:[%s2375 + $0x58] sm:$0xff]
  %v2388 = vld [vmem:[%s2375 + $0x60] sm:$0xff]
  %v2389 = vld [vmem:[%s2375 + $0x68] sm:$0xff]
  %v2390 = vld [vmem:[%s2375 + $0x70] sm:$0xff]
  %v2391 = vld [vmem:[%s2375 + $0x78] sm:$0xff]
  %v2393 = vrot.slane %v1371, 4
  %v2411 = vunpack.c.l.b16 %v2376
  %v2412 = vunpack.c.h.b16 %v2376
  %v2413 = vunpack.c.l.b16 %v2377
  %v2414 = vunpack.c.h.b16 %v2377
  %v2415 = vunpack.c.l.b16 %v2378
  %v2416 = vunpack.c.h.b16 %v2378
  %v2417 = vunpack.c.l.b16 %v2379
  %v2418 = vunpack.c.h.b16 %v2379
  %v2419 = vunpack.c.l.b16 %v2380
  %v2420 = vunpack.c.h.b16 %v2380
  %v2421 = vunpack.c.l.b16 %v2381
  %v2422 = vunpack.c.h.b16 %v2381
  %v2423 = vunpack.c.l.b16 %v2382
  %v2424 = vunpack.c.h.b16 %v2382
  %v2425 = vunpack.c.l.b16 %v2383
  %v2426 = vunpack.c.h.b16 %v2383
  %v2427 = vunpack.c.l.b16 %v2384
  %v2428 = vunpack.c.h.b16 %v2384
  %v2429 = vunpack.c.l.b16 %v2385
  %v2430 = vunpack.c.h.b16 %v2385
  %v2431 = vunpack.c.l.b16 %v2386
  %v2432 = vunpack.c.h.b16 %v2386
  %v2433 = vunpack.c.l.b16 %v2387
  %v2434 = vunpack.c.h.b16 %v2387
  %v2435 = vunpack.c.l.b16 %v2388
  %v2436 = vunpack.c.h.b16 %v2388
  %v2437 = vunpack.c.l.b16 %v2389
  %v2438 = vunpack.c.h.b16 %v2389
  %v2439 = vunpack.c.l.b16 %v2390
  %v2440 = vunpack.c.h.b16 %v2390
  %v2441 = vunpack.c.l.b16 %v2391
  %v2442 = vunpack.c.h.b16 %v2391
  %v2443 = vpack.c.b16 %v2413, %v2411
  %v2444 = vpack.c.b16 %v2414, %v2412
  %v2445 = vpack.c.b16 %v2417, %v2415
  %v2446 = vpack.c.b16 %v2418, %v2416
  %v2447 = vpack.c.b16 %v2421, %v2419
  %v2448 = vpack.c.b16 %v2422, %v2420
  %v2449 = vpack.c.b16 %v2425, %v2423
  %v2450 = vpack.c.b16 %v2426, %v2424
  %v2451 = vpack.c.b16 %v2429, %v2427
  %v2452 = vpack.c.b16 %v2430, %v2428
  %v2453 = vpack.c.b16 %v2433, %v2431
  %v2454 = vpack.c.b16 %v2434, %v2432
  %v2455 = vpack.c.b16 %v2437, %v2435
  %v2456 = vpack.c.b16 %v2438, %v2436
  %v2457 = vpack.c.b16 %v2441, %v2439
  %v2458 = vpack.c.b16 %v2442, %v2440
  %2475 = vmatprep.subr.bf16.mxu0 %v2444
  %2476 = vmatpush1.bf16.msra.mxu0 %v2443
  %2477 = vmatprep.subr.bf16.mxu0 %v2446
  %2478 = vmatpush1.bf16.msra.mxu0 %v2445
  %2479 = vmatprep.subr.bf16.mxu0 %v2448
  %2480 = vmatpush1.bf16.msra.mxu0 %v2447
  %2481 = vmatprep.subr.bf16.mxu0 %v2450
  %2482 = vmatpush1.bf16.msra.mxu0 %v2449
  %2483 = vmatprep.subr.bf16.mxu0 %v2452
  %2484 = vmatpush1.bf16.msra.mxu0 %v2451
  %2485 = vmatprep.subr.bf16.mxu0 %v2454
  %2486 = vmatpush1.bf16.msra.mxu0 %v2453
  %2487 = vmatprep.subr.bf16.mxu0 %v2456
  %2488 = vmatpush1.bf16.msra.mxu0 %v2455
  %2489 = vmatprep.subr.bf16.mxu0 %v2458
  %2490 = vmatpush1.bf16.msra.mxu0 %v2457
  %2491 = vmatprep.subr.bf16.mxu0 0
  %2492 = vmatpush1.bf16.msra.mxu0 0
  %2493 = vmatprep.subr.bf16.mxu0 0
  %2494 = vmatpush1.bf16.msra.mxu0 0
  %2495 = vmatprep.subr.bf16.mxu0 0
  %2496 = vmatpush1.bf16.msra.mxu0 0
  %2497 = vmatprep.subr.bf16.mxu0 0
  %2498 = vmatpush1.bf16.msra.mxu0 0
  %2499 = vmatprep.subr.bf16.mxu0 0
  %2500 = vmatpush1.bf16.msra.mxu0 0
  %2501 = vmatprep.subr.bf16.mxu0 0
  %2502 = vmatpush1.bf16.msra.mxu0 0
  %2503 = vmatprep.subr.bf16.mxu0 0
  %2504 = vmatpush1.bf16.msra.mxu0 0
  %2505 = vmatprep.subr.bf16.mxu0 0
  %2506 = vmatpush1.bf16.msra.mxu0 0
  %2507 = vmatprep.mubr.bf16.mxu0 0
  %2508 = vmatmul.mubr.bf16.gmra.mrb[0].mxu0 %v2393
  %v2509 = vpop.f32.mrb[0].mxu0
  %v2510 = vadd.f32 0.0, %v2509
  %v2511 = vpop.f32.mrb[0].mxu0
  %v2512 = vadd.f32 0.0, %v2511
  %v2513 = vpop.f32.mrb[0].mxu0
  %v2514 = vpop.f32.mrb[0].mxu0
  %2515 = vdwg.mxu0
  %v2516 = vadd.f32 %v2373, %v2510
  %v2517 = vadd.f32 %v2374, %v2512
  %s2518 = scalar_lea.vmem %s2, 1024
  %v2519 = vld [vmem:[%s2518] sm:$0xff]
  %v2520 = vld [vmem:[%s2518 + $0x8] sm:$0xff]
  %v2521 = vld [vmem:[%s2518 + $0x10] sm:$0xff]
  %v2522 = vld [vmem:[%s2518 + $0x18] sm:$0xff]
  %v2523 = vld [vmem:[%s2518 + $0x20] sm:$0xff]
  %v2524 = vld [vmem:[%s2518 + $0x28] sm:$0xff]
  %v2525 = vld [vmem:[%s2518 + $0x30] sm:$0xff]
  %v2526 = vld [vmem:[%s2518 + $0x38] sm:$0xff]
  %v2527 = vld [vmem:[%s2518 + $0x40] sm:$0xff]
  %v2528 = vld [vmem:[%s2518 + $0x48] sm:$0xff]
  %v2529 = vld [vmem:[%s2518 + $0x50] sm:$0xff]
  %v2530 = vld [vmem:[%s2518 + $0x58] sm:$0xff]
  %v2531 = vld [vmem:[%s2518 + $0x60] sm:$0xff]
  %v2532 = vld [vmem:[%s2518 + $0x68] sm:$0xff]
  %v2533 = vld [vmem:[%s2518 + $0x70] sm:$0xff]
  %v2534 = vld [vmem:[%s2518 + $0x78] sm:$0xff]
  %v2551 = vunpack.c.l.b16 %v2519
  %v2552 = vunpack.c.h.b16 %v2519
  %v2553 = vunpack.c.l.b16 %v2520
  %v2554 = vunpack.c.h.b16 %v2520
  %v2555 = vunpack.c.l.b16 %v2521
  %v2556 = vunpack.c.h.b16 %v2521
  %v2557 = vunpack.c.l.b16 %v2522
  %v2558 = vunpack.c.h.b16 %v2522
  %v2559 = vunpack.c.l.b16 %v2523
  %v2560 = vunpack.c.h.b16 %v2523
  %v2561 = vunpack.c.l.b16 %v2524
  %v2562 = vunpack.c.h.b16 %v2524
  %v2563 = vunpack.c.l.b16 %v2525
  %v2564 = vunpack.c.h.b16 %v2525
  %v2565 = vunpack.c.l.b16 %v2526
  %v2566 = vunpack.c.h.b16 %v2526
  %v2567 = vunpack.c.l.b16 %v2527
  %v2568 = vunpack.c.h.b16 %v2527
  %v2569 = vunpack.c.l.b16 %v2528
  %v2570 = vunpack.c.h.b16 %v2528
  %v2571 = vunpack.c.l.b16 %v2529
  %v2572 = vunpack.c.h.b16 %v2529
  %v2573 = vunpack.c.l.b16 %v2530
  %v2574 = vunpack.c.h.b16 %v2530
  %v2575 = vunpack.c.l.b16 %v2531
  %v2576 = vunpack.c.h.b16 %v2531
  %v2577 = vunpack.c.l.b16 %v2532
  %v2578 = vunpack.c.h.b16 %v2532
  %v2579 = vunpack.c.l.b16 %v2533
  %v2580 = vunpack.c.h.b16 %v2533
  %v2581 = vunpack.c.l.b16 %v2534
  %v2582 = vunpack.c.h.b16 %v2534
  %v2583 = vpack.c.b16 %v2553, %v2551
  %v2584 = vpack.c.b16 %v2554, %v2552
  %v2585 = vpack.c.b16 %v2557, %v2555
  %v2586 = vpack.c.b16 %v2558, %v2556
  %v2587 = vpack.c.b16 %v2561, %v2559
  %v2588 = vpack.c.b16 %v2562, %v2560
  %v2589 = vpack.c.b16 %v2565, %v2563
  %v2590 = vpack.c.b16 %v2566, %v2564
  %v2591 = vpack.c.b16 %v2569, %v2567
  %v2592 = vpack.c.b16 %v2570, %v2568
  %v2593 = vpack.c.b16 %v2573, %v2571
  %v2594 = vpack.c.b16 %v2574, %v2572
  %v2595 = vpack.c.b16 %v2577, %v2575
  %v2596 = vpack.c.b16 %v2578, %v2576
  %v2597 = vpack.c.b16 %v2581, %v2579
  %v2598 = vpack.c.b16 %v2582, %v2580
  %2615 = vmatprep.subr.bf16.mxu0 %v2584
  %2616 = vmatpush1.bf16.msra.mxu0 %v2583
  %2617 = vmatprep.subr.bf16.mxu0 %v2586
  %2618 = vmatpush1.bf16.msra.mxu0 %v2585
  %2619 = vmatprep.subr.bf16.mxu0 %v2588
  %2620 = vmatpush1.bf16.msra.mxu0 %v2587
  %2621 = vmatprep.subr.bf16.mxu0 %v2590
  %2622 = vmatpush1.bf16.msra.mxu0 %v2589
  %2623 = vmatprep.subr.bf16.mxu0 %v2592
  %2624 = vmatpush1.bf16.msra.mxu0 %v2591
  %2625 = vmatprep.subr.bf16.mxu0 %v2594
  %2626 = vmatpush1.bf16.msra.mxu0 %v2593
  %2627 = vmatprep.subr.bf16.mxu0 %v2596
  %2628 = vmatpush1.bf16.msra.mxu0 %v2595
  %2629 = vmatprep.subr.bf16.mxu0 %v2598
  %2630 = vmatpush1.bf16.msra.mxu0 %v2597
  %2631 = vmatprep.subr.bf16.mxu0 0
  %2632 = vmatpush1.bf16.msra.mxu0 0
  %2633 = vmatprep.subr.bf16.mxu0 0
  %2634 = vmatpush1.bf16.msra.mxu0 0
  %2635 = vmatprep.subr.bf16.mxu0 0
  %2636 = vmatpush1.bf16.msra.mxu0 0
  %2637 = vmatprep.subr.bf16.mxu0 0
  %2638 = vmatpush1.bf16.msra.mxu0 0
  %2639 = vmatprep.subr.bf16.mxu0 0
  %2640 = vmatpush1.bf16.msra.mxu0 0
  %2641 = vmatprep.subr.bf16.mxu0 0
  %2642 = vmatpush1.bf16.msra.mxu0 0
  %2643 = vmatprep.subr.bf16.mxu0 0
  %2644 = vmatpush1.bf16.msra.mxu0 0
  %2645 = vmatprep.subr.bf16.mxu0 0
  %2646 = vmatpush1.bf16.msra.mxu0 0
  %2647 = vmatprep.mubr.bf16.mxu0 0
  %2648 = vmatmul.mubr.bf16.gmra.mrb[0].mxu0 %v1372
  %v2649 = vpop.f32.mrb[0].mxu0
  %v2650 = vadd.f32 0.0, %v2649
  %v2651 = vpop.f32.mrb[0].mxu0
  %v2652 = vadd.f32 0.0, %v2651
  %v2653 = vpop.f32.mrb[0].mxu0
  %v2654 = vpop.f32.mrb[0].mxu0
  %2655 = vdwg.mxu0
  %v2656 = vadd.f32 %v2516, %v2650
  %v2657 = vadd.f32 %v2517, %v2652
  %s2658 = scalar_lea.vmem %s2, 1152
  %v2659 = vld [vmem:[%s2658] sm:$0xff]
  %v2660 = vld [vmem:[%s2658 + $0x8] sm:$0xff]
  %v2661 = vld [vmem:[%s2658 + $0x10] sm:$0xff]
  %v2662 = vld [vmem:[%s2658 + $0x18] sm:$0xff]
  %v2663 = vld [vmem:[%s2658 + $0x20] sm:$0xff]
  %v2664 = vld [vmem:[%s2658 + $0x28] sm:$0xff]
  %v2665 = vld [vmem:[%s2658 + $0x30] sm:$0xff]
  %v2666 = vld [vmem:[%s2658 + $0x38] sm:$0xff]
  %v2667 = vld [vmem:[%s2658 + $0x40] sm:$0xff]
  %v2668 = vld [vmem:[%s2658 + $0x48] sm:$0xff]
  %v2669 = vld [vmem:[%s2658 + $0x50] sm:$0xff]
  %v2670 = vld [vmem:[%s2658 + $0x58] sm:$0xff]
  %v2671 = vld [vmem:[%s2658 + $0x60] sm:$0xff]
  %v2672 = vld [vmem:[%s2658 + $0x68] sm:$0xff]
  %v2673 = vld [vmem:[%s2658 + $0x70] sm:$0xff]
  %v2674 = vld [vmem:[%s2658 + $0x78] sm:$0xff]
  %v2676 = vrot.slane %v1372, 4
  %v2694 = vunpack.c.l.b16 %v2659
  %v2695 = vunpack.c.h.b16 %v2659
  %v2696 = vunpack.c.l.b16 %v2660
  %v2697 = vunpack.c.h.b16 %v2660
  %v2698 = vunpack.c.l.b16 %v2661
  %v2699 = vunpack.c.h.b16 %v2661
  %v2700 = vunpack.c.l.b16 %v2662
  %v2701 = vunpack.c.h.b16 %v2662
  %v2702 = vunpack.c.l.b16 %v2663
  %v2703 = vunpack.c.h.b16 %v2663
  %v2704 = vunpack.c.l.b16 %v2664
  %v2705 = vunpack.c.h.b16 %v2664
  %v2706 = vunpack.c.l.b16 %v2665
  %v2707 = vunpack.c.h.b16 %v2665
  %v2708 = vunpack.c.l.b16 %v2666
  %v2709 = vunpack.c.h.b16 %v2666
  %v2710 = vunpack.c.l.b16 %v2667
  %v2711 = vunpack.c.h.b16 %v2667
  %v2712 = vunpack.c.l.b16 %v2668
  %v2713 = vunpack.c.h.b16 %v2668
  %v2714 = vunpack.c.l.b16 %v2669
  %v2715 = vunpack.c.h.b16 %v2669
  %v2716 = vunpack.c.l.b16 %v2670
  %v2717 = vunpack.c.h.b16 %v2670
  %v2718 = vunpack.c.l.b16 %v2671
  %v2719 = vunpack.c.h.b16 %v2671
  %v2720 = vunpack.c.l.b16 %v2672
  %v2721 = vunpack.c.h.b16 %v2672
  %v2722 = vunpack.c.l.b16 %v2673
  %v2723 = vunpack.c.h.b16 %v2673
  %v2724 = vunpack.c.l.b16 %v2674
  %v2725 = vunpack.c.h.b16 %v2674
  %v2726 = vpack.c.b16 %v2696, %v2694
  %v2727 = vpack.c.b16 %v2697, %v2695
  %v2728 = vpack.c.b16 %v2700, %v2698
  %v2729 = vpack.c.b16 %v2701, %v2699
  %v2730 = vpack.c.b16 %v2704, %v2702
  %v2731 = vpack.c.b16 %v2705, %v2703
  %v2732 = vpack.c.b16 %v2708, %v2706
  %v2733 = vpack.c.b16 %v2709, %v2707
  %v2734 = vpack.c.b16 %v2712, %v2710
  %v2735 = vpack.c.b16 %v2713, %v2711
  %v2736 = vpack.c.b16 %v2716, %v2714
  %v2737 = vpack.c.b16 %v2717, %v2715
  %v2738 = vpack.c.b16 %v2720, %v2718
  %v2739 = vpack.c.b16 %v2721, %v2719
  %v2740 = vpack.c.b16 %v2724, %v2722
  %v2741 = vpack.c.b16 %v2725, %v2723
  %2758 = vmatprep.subr.bf16.mxu0 %v2727
  %2759 = vmatpush1.bf16.msra.mxu0 %v2726
  %2760 = vmatprep.subr.bf16.mxu0 %v2729
  %2761 = vmatpush1.bf16.msra.mxu0 %v2728
  %2762 = vmatprep.subr.bf16.mxu0 %v2731
  %2763 = vmatpush1.bf16.msra.mxu0 %v2730
  %2764 = vmatprep.subr.bf16.mxu0 %v2733
  %2765 = vmatpush1.bf16.msra.mxu0 %v2732
  %2766 = vmatprep.subr.bf16.mxu0 %v2735
  %2767 = vmatpush1.bf16.msra.mxu0 %v2734
  %2768 = vmatprep.subr.bf16.mxu0 %v2737
  %2769 = vmatpush1.bf16.msra.mxu0 %v2736
  %2770 = vmatprep.subr.bf16.mxu0 %v2739
  %2771 = vmatpush1.bf16.msra.mxu0 %v2738
  %2772 = vmatprep.subr.bf16.mxu0 %v2741
  %2773 = vmatpush1.bf16.msra.mxu0 %v2740
  %2774 = vmatprep.subr.bf16.mxu0 0
  %2775 = vmatpush1.bf16.msra.mxu0 0
  %2776 = vmatprep.subr.bf16.mxu0 0
  %2777 = vmatpush1.bf16.msra.mxu0 0
  %2778 = vmatprep.subr.bf16.mxu0 0
  %2779 = vmatpush1.bf16.msra.mxu0 0
  %2780 = vmatprep.subr.bf16.mxu0 0
  %2781 = vmatpush1.bf16.msra.mxu0 0
  %2782 = vmatprep.subr.bf16.mxu0 0
  %2783 = vmatpush1.bf16.msra.mxu0 0
  %2784 = vmatprep.subr.bf16.mxu0 0
  %2785 = vmatpush1.bf16.msra.mxu0 0
  %2786 = vmatprep.subr.bf16.mxu0 0
  %2787 = vmatpush1.bf16.msra.mxu0 0
  %2788 = vmatprep.subr.bf16.mxu0 0
  %2789 = vmatpush1.bf16.msra.mxu0 0
  %2790 = vmatprep.mubr.bf16.mxu0 0
  %2791 = vmatmul.mubr.bf16.gmra.mrb[0].mxu0 %v2676
  %v2792 = vpop.f32.mrb[0].mxu0
  %v2793 = vadd.f32 0.0, %v2792
  %v2794 = vpop.f32.mrb[0].mxu0
  %v2795 = vadd.f32 0.0, %v2794
  %v2796 = vpop.f32.mrb[0].mxu0
  %v2797 = vpop.f32.mrb[0].mxu0
  %2798 = vdwg.mxu0
  %v2799 = vadd.f32 %v2656, %v2793
  %v2800 = vadd.f32 %v2657, %v2795
  %s2801 = scalar_lea.vmem %s2, 1280
  %v2802 = vld [vmem:[%s2801] sm:$0xff]
  %v2803 = vld [vmem:[%s2801 + $0x8] sm:$0xff]
  %v2804 = vld [vmem:[%s2801 + $0x10] sm:$0xff]
  %v2805 = vld [vmem:[%s2801 + $0x18] sm:$0xff]
  %v2806 = vld [vmem:[%s2801 + $0x20] sm:$0xff]
  %v2807 = vld [vmem:[%s2801 + $0x28] sm:$0xff]
  %v2808 = vld [vmem:[%s2801 + $0x30] sm:$0xff]
  %v2809 = vld [vmem:[%s2801 + $0x38] sm:$0xff]
  %v2810 = vld [vmem:[%s2801 + $0x40] sm:$0xff]
  %v2811 = vld [vmem:[%s2801 + $0x48] sm:$0xff]
  %v2812 = vld [vmem:[%s2801 + $0x50] sm:$0xff]
  %v2813 = vld [vmem:[%s2801 + $0x58] sm:$0xff]
  %v2814 = vld [vmem:[%s2801 + $0x60] sm:$0xff]
  %v2815 = vld [vmem:[%s2801 + $0x68] sm:$0xff]
  %v2816 = vld [vmem:[%s2801 + $0x70] sm:$0xff]
  %v2817 = vld [vmem:[%s2801 + $0x78] sm:$0xff]
  %v2834 = vunpack.c.l.b16 %v2802
  %v2835 = vunpack.c.h.b16 %v2802
  %v2836 = vunpack.c.l.b16 %v2803
  %v2837 = vunpack.c.h.b16 %v2803
  %v2838 = vunpack.c.l.b16 %v2804
  %v2839 = vunpack.c.h.b16 %v2804
  %v2840 = vunpack.c.l.b16 %v2805
  %v2841 = vunpack.c.h.b16 %v2805
  %v2842 = vunpack.c.l.b16 %v2806
  %v2843 = vunpack.c.h.b16 %v2806
  %v2844 = vunpack.c.l.b16 %v2807
  %v2845 = vunpack.c.h.b16 %v2807
  %v2846 = vunpack.c.l.b16 %v2808
  %v2847 = vunpack.c.h.b16 %v2808
  %v2848 = vunpack.c.l.b16 %v2809
  %v2849 = vunpack.c.h.b16 %v2809
  %v2850 = vunpack.c.l.b16 %v2810
  %v2851 = vunpack.c.h.b16 %v2810
  %v2852 = vunpack.c.l.b16 %v2811
  %v2853 = vunpack.c.h.b16 %v2811
  %v2854 = vunpack.c.l.b16 %v2812
  %v2855 = vunpack.c.h.b16 %v2812
  %v2856 = vunpack.c.l.b16 %v2813
  %v2857 = vunpack.c.h.b16 %v2813
  %v2858 = vunpack.c.l.b16 %v2814
  %v2859 = vunpack.c.h.b16 %v2814
  %v2860 = vunpack.c.l.b16 %v2815
  %v2861 = vunpack.c.h.b16 %v2815
  %v2862 = vunpack.c.l.b16 %v2816
  %v2863 = vunpack.c.h.b16 %v2816
  %v2864 = vunpack.c.l.b16 %v2817
  %v2865 = vunpack.c.h.b16 %v2817
  %v2866 = vpack.c.b16 %v2836, %v2834
  %v2867 = vpack.c.b16 %v2837, %v2835
  %v2868 = vpack.c.b16 %v2840, %v2838
  %v2869 = vpack.c.b16 %v2841, %v2839
  %v2870 = vpack.c.b16 %v2844, %v2842
  %v2871 = vpack.c.b16 %v2845, %v2843
  %v2872 = vpack.c.b16 %v2848, %v2846
  %v2873 = vpack.c.b16 %v2849, %v2847
  %v2874 = vpack.c.b16 %v2852, %v2850
  %v2875 = vpack.c.b16 %v2853, %v2851
  %v2876 = vpack.c.b16 %v2856, %v2854
  %v2877 = vpack.c.b16 %v2857, %v2855
  %v2878 = vpack.c.b16 %v2860, %v2858
  %v2879 = vpack.c.b16 %v2861, %v2859
  %v2880 = vpack.c.b16 %v2864, %v2862
  %v2881 = vpack.c.b16 %v2865, %v2863
  %2898 = vmatprep.subr.bf16.mxu0 %v2867
  %2899 = vmatpush1.bf16.msra.mxu0 %v2866
  %2900 = vmatprep.subr.bf16.mxu0 %v2869
  %2901 = vmatpush1.bf16.msra.mxu0 %v2868
  %2902 = vmatprep.subr.bf16.mxu0 %v2871
  %2903 = vmatpush1.bf16.msra.mxu0 %v2870
  %2904 = vmatprep.subr.bf16.mxu0 %v2873
  %2905 = vmatpush1.bf16.msra.mxu0 %v2872
  %2906 = vmatprep.subr.bf16.mxu0 %v2875
  %2907 = vmatpush1.bf16.msra.mxu0 %v2874
  %2908 = vmatprep.subr.bf16.mxu0 %v2877
  %2909 = vmatpush1.bf16.msra.mxu0 %v2876
  %2910 = vmatprep.subr.bf16.mxu0 %v2879
  %2911 = vmatpush1.bf16.msra.mxu0 %v2878
  %2912 = vmatprep.subr.bf16.mxu0 %v2881
  %2913 = vmatpush1.bf16.msra.mxu0 %v2880
  %2914 = vmatprep.subr.bf16.mxu0 0
  %2915 = vmatpush1.bf16.msra.mxu0 0
  %2916 = vmatprep.subr.bf16.mxu0 0
  %2917 = vmatpush1.bf16.msra.mxu0 0
  %2918 = vmatprep.subr.bf16.mxu0 0
  %2919 = vmatpush1.bf16.msra.mxu0 0
  %2920 = vmatprep.subr.bf16.mxu0 0
  %2921 = vmatpush1.bf16.msra.mxu0 0
  %2922 = vmatprep.subr.bf16.mxu0 0
  %2923 = vmatpush1.bf16.msra.mxu0 0
  %2924 = vmatprep.subr.bf16.mxu0 0
  %2925 = vmatpush1.bf16.msra.mxu0 0
  %2926 = vmatprep.subr.bf16.mxu0 0
  %2927 = vmatpush1.bf16.msra.mxu0 0
  %2928 = vmatprep.subr.bf16.mxu0 0
  %2929 = vmatpush1.bf16.msra.mxu0 0
  %2930 = vmatprep.mubr.bf16.mxu0 0
  %2931 = vmatmul.mubr.bf16.gmra.mrb[0].mxu0 %v1373
  %v2932 = vpop.f32.mrb[0].mxu0
  %v2933 = vadd.f32 0.0, %v2932
  %v2934 = vpop.f32.mrb[0].mxu0
  %v2935 = vadd.f32 0.0, %v2934
  %v2936 = vpop.f32.mrb[0].mxu0
  %v2937 = vpop.f32.mrb[0].mxu0
  %2938 = vdwg.mxu0
  %v2939 = vadd.f32 %v2799, %v2933
  %v2940 = vadd.f32 %v2800, %v2935
  %s2941 = scalar_lea.vmem %s2, 1408
  %v2942 = vld [vmem:[%s2941] sm:$0xff]
  %v2943 = vld [vmem:[%s2941 + $0x8] sm:$0xff]
  %v2944 = vld [vmem:[%s2941 + $0x10] sm:$0xff]
  %v2945 = vld [vmem:[%s2941 + $0x18] sm:$0xff]
  %v2946 = vld [vmem:[%s2941 + $0x20] sm:$0xff]
  %v2947 = vld [vmem:[%s2941 + $0x28] sm:$0xff]
  %v2948 = vld [vmem:[%s2941 + $0x30] sm:$0xff]
  %v2949 = vld [vmem:[%s2941 + $0x38] sm:$0xff]
  %v2950 = vld [vmem:[%s2941 + $0x40] sm:$0xff]
  %v2951 = vld [vmem:[%s2941 + $0x48] sm:$0xff]
  %v2952 = vld [vmem:[%s2941 + $0x50] sm:$0xff]
  %v2953 = vld [vmem:[%s2941 + $0x58] sm:$0xff]
  %v2954 = vld [vmem:[%s2941 + $0x60] sm:$0xff]
  %v2955 = vld [vmem:[%s2941 + $0x68] sm:$0xff]
  %v2956 = vld [vmem:[%s2941 + $0x70] sm:$0xff]
  %v2957 = vld [vmem:[%s2941 + $0x78] sm:$0xff]
  %v2959 = vrot.slane %v1373, 4
  %v2977 = vunpack.c.l.b16 %v2942
  %v2978 = vunpack.c.h.b16 %v2942
  %v2979 = vunpack.c.l.b16 %v2943
  %v2980 = vunpack.c.h.b16 %v2943
  %v2981 = vunpack.c.l.b16 %v2944
  %v2982 = vunpack.c.h.b16 %v2944
  %v2983 = vunpack.c.l.b16 %v2945
  %v2984 = vunpack.c.h.b16 %v2945
  %v2985 = vunpack.c.l.b16 %v2946
  %v2986 = vunpack.c.h.b16 %v2946
  %v2987 = vunpack.c.l.b16 %v2947
  %v2988 = vunpack.c.h.b16 %v2947
  %v2989 = vunpack.c.l.b16 %v2948
  %v2990 = vunpack.c.h.b16 %v2948
  %v2991 = vunpack.c.l.b16 %v2949
  %v2992 = vunpack.c.h.b16 %v2949
  %v2993 = vunpack.c.l.b16 %v2950
  %v2994 = vunpack.c.h.b16 %v2950
  %v2995 = vunpack.c.l.b16 %v2951
  %v2996 = vunpack.c.h.b16 %v2951
  %v2997 = vunpack.c.l.b16 %v2952
  %v2998 = vunpack.c.h.b16 %v2952
  %v2999 = vunpack.c.l.b16 %v2953
  %v3000 = vunpack.c.h.b16 %v2953
  %v3001 = vunpack.c.l.b16 %v2954
  %v3002 = vunpack.c.h.b16 %v2954
  %v3003 = vunpack.c.l.b16 %v2955
  %v3004 = vunpack.c.h.b16 %v2955
  %v3005 = vunpack.c.l.b16 %v2956
  %v3006 = vunpack.c.h.b16 %v2956
  %v3007 = vunpack.c.l.b16 %v2957
  %v3008 = vunpack.c.h.b16 %v2957
  %v3009 = vpack.c.b16 %v2979, %v2977
  %v3010 = vpack.c.b16 %v2980, %v2978
  %v3011 = vpack.c.b16 %v2983, %v2981
  %v3012 = vpack.c.b16 %v2984, %v2982
  %v3013 = vpack.c.b16 %v2987, %v2985
  %v3014 = vpack.c.b16 %v2988, %v2986
  %v3015 = vpack.c.b16 %v2991, %v2989
  %v3016 = vpack.c.b16 %v2992, %v2990
  %v3017 = vpack.c.b16 %v2995, %v2993
  %v3018 = vpack.c.b16 %v2996, %v2994
  %v3019 = vpack.c.b16 %v2999, %v2997
  %v3020 = vpack.c.b16 %v3000, %v2998
  %v3021 = vpack.c.b16 %v3003, %v3001
  %v3022 = vpack.c.b16 %v3004, %v3002
  %v3023 = vpack.c.b16 %v3007, %v3005
  %v3024 = vpack.c.b16 %v3008, %v3006
  %3041 = vmatprep.subr.bf16.mxu0 %v3010
  %3042 = vmatpush1.bf16.msra.mxu0 %v3009
  %3043 = vmatprep.subr.bf16.mxu0 %v3012
  %3044 = vmatpush1.bf16.msra.mxu0 %v3011
  %3045 = vmatprep.subr.bf16.mxu0 %v3014
  %3046 = vmatpush1.bf16.msra.mxu0 %v3013
  %3047 = vmatprep.subr.bf16.mxu0 %v3016
  %3048 = vmatpush1.bf16.msra.mxu0 %v3015
  %3049 = vmatprep.subr.bf16.mxu0 %v3018
  %3050 = vmatpush1.bf16.msra.mxu0 %v3017
  %3051 = vmatprep.subr.bf16.mxu0 %v3020
  %3052 = vmatpush1.bf16.msra.mxu0 %v3019
  %3053 = vmatprep.subr.bf16.mxu0 %v3022
  %3054 = vmatpush1.bf16.msra.mxu0 %v3021
  %3055 = vmatprep.subr.bf16.mxu0 %v3024
  %3056 = vmatpush1.bf16.msra.mxu0 %v3023
  %3057 = vmatprep.subr.bf16.mxu0 0
  %3058 = vmatpush1.bf16.msra.mxu0 0
  %3059 = vmatprep.subr.bf16.mxu0 0
  %3060 = vmatpush1.bf16.msra.mxu0 0
  %3061 = vmatprep.subr.bf16.mxu0 0
  %3062 = vmatpush1.bf16.msra.mxu0 0
  %3063 = vmatprep.subr.bf16.mxu0 0
  %3064 = vmatpush1.bf16.msra.mxu0 0
  %3065 = vmatprep.subr.bf16.mxu0 0
  %3066 = vmatpush1.bf16.msra.mxu0 0
  %3067 = vmatprep.subr.bf16.mxu0 0
  %3068 = vmatpush1.bf16.msra.mxu0 0
  %3069 = vmatprep.subr.bf16.mxu0 0
  %3070 = vmatpush1.bf16.msra.mxu0 0
  %3071 = vmatprep.subr.bf16.mxu0 0
  %3072 = vmatpush1.bf16.msra.mxu0 0
  %3073 = vmatprep.mubr.bf16.mxu0 0
  %3074 = vmatmul.mubr.bf16.gmra.mrb[0].mxu0 %v2959
  %v3075 = vpop.f32.mrb[0].mxu0
  %v3076 = vadd.f32 0.0, %v3075
  %v3077 = vpop.f32.mrb[0].mxu0
  %v3078 = vadd.f32 0.0, %v3077
  %v3079 = vpop.f32.mrb[0].mxu0
  %v3080 = vpop.f32.mrb[0].mxu0
  %3081 = vdwg.mxu0
  %v3082 = vadd.f32 %v2939, %v3076
  %v3083 = vadd.f32 %v2940, %v3078
  %s3084 = scalar_lea.vmem %s2, 1536
  %v3085 = vld [vmem:[%s3084] sm:$0xff]
  %v3086 = vld [vmem:[%s3084 + $0x8] sm:$0xff]
  %v3087 = vld [vmem:[%s3084 + $0x10] sm:$0xff]
  %v3088 = vld [vmem:[%s3084 + $0x18] sm:$0xff]
  %v3089 = vld [vmem:[%s3084 + $0x20] sm:$0xff]
  %v3090 = vld [vmem:[%s3084 + $0x28] sm:$0xff]
  %v3091 = vld [vmem:[%s3084 + $0x30] sm:$0xff]
  %v3092 = vld [vmem:[%s3084 + $0x38] sm:$0xff]
  %v3093 = vld [vmem:[%s3084 + $0x40] sm:$0xff]
  %v3094 = vld [vmem:[%s3084 + $0x48] sm:$0xff]
  %v3095 = vld [vmem:[%s3084 + $0x50] sm:$0xff]
  %v3096 = vld [vmem:[%s3084 + $0x58] sm:$0xff]
  %v3097 = vld [vmem:[%s3084 + $0x60] sm:$0xff]
  %v3098 = vld [vmem:[%s3084 + $0x68] sm:$0xff]
  %v3099 = vld [vmem:[%s3084 + $0x70] sm:$0xff]
  %v3100 = vld [vmem:[%s3084 + $0x78] sm:$0xff]
  %v3117 = vunpack.c.l.b16 %v3085
  %v3118 = vunpack.c.h.b16 %v3085
  %v3119 = vunpack.c.l.b16 %v3086
  %v3120 = vunpack.c.h.b16 %v3086
  %v3121 = vunpack.c.l.b16 %v3087
  %v3122 = vunpack.c.h.b16 %v3087
  %v3123 = vunpack.c.l.b16 %v3088
  %v3124 = vunpack.c.h.b16 %v3088
  %v3125 = vunpack.c.l.b16 %v3089
  %v3126 = vunpack.c.h.b16 %v3089
  %v3127 = vunpack.c.l.b16 %v3090
  %v3128 = vunpack.c.h.b16 %v3090
  %v3129 = vunpack.c.l.b16 %v3091
  %v3130 = vunpack.c.h.b16 %v3091
  %v3131 = vunpack.c.l.b16 %v3092
  %v3132 = vunpack.c.h.b16 %v3092
  %v3133 = vunpack.c.l.b16 %v3093
  %v3134 = vunpack.c.h.b16 %v3093
  %v3135 = vunpack.c.l.b16 %v3094
  %v3136 = vunpack.c.h.b16 %v3094
  %v3137 = vunpack.c.l.b16 %v3095
  %v3138 = vunpack.c.h.b16 %v3095
  %v3139 = vunpack.c.l.b16 %v3096
  %v3140 = vunpack.c.h.b16 %v3096
  %v3141 = vunpack.c.l.b16 %v3097
  %v3142 = vunpack.c.h.b16 %v3097
  %v3143 = vunpack.c.l.b16 %v3098
  %v3144 = vunpack.c.h.b16 %v3098
  %v3145 = vunpack.c.l.b16 %v3099
  %v3146 = vunpack.c.h.b16 %v3099
  %v3147 = vunpack.c.l.b16 %v3100
  %v3148 = vunpack.c.h.b16 %v3100
  %v3149 = vpack.c.b16 %v3119, %v3117
  %v3150 = vpack.c.b16 %v3120, %v3118
  %v3151 = vpack.c.b16 %v3123, %v3121
  %v3152 = vpack.c.b16 %v3124, %v3122
  %v3153 = vpack.c.b16 %v3127, %v3125
  %v3154 = vpack.c.b16 %v3128, %v3126
  %v3155 = vpack.c.b16 %v3131, %v3129
  %v3156 = vpack.c.b16 %v3132, %v3130
  %v3157 = vpack.c.b16 %v3135, %v3133
  %v3158 = vpack.c.b16 %v3136, %v3134
  %v3159 = vpack.c.b16 %v3139, %v3137
  %v3160 = vpack.c.b16 %v3140, %v3138
  %v3161 = vpack.c.b16 %v3143, %v3141
  %v3162 = vpack.c.b16 %v3144, %v3142
  %v3163 = vpack.c.b16 %v3147, %v3145
  %v3164 = vpack.c.b16 %v3148, %v3146
  %3181 = vmatprep.subr.bf16.mxu0 %v3150
  %3182 = vmatpush1.bf16.msra.mxu0 %v3149
  %3183 = vmatprep.subr.bf16.mxu0 %v3152
  %3184 = vmatpush1.bf16.msra.mxu0 %v3151
  %3185 = vmatprep.subr.bf16.mxu0 %v3154
  %3186 = vmatpush1.bf16.msra.mxu0 %v3153
  %3187 = vmatprep.subr.bf16.mxu0 %v3156
  %3188 = vmatpush1.bf16.msra.mxu0 %v3155
  %3189 = vmatprep.subr.bf16.mxu0 %v3158
  %3190 = vmatpush1.bf16.msra.mxu0 %v3157
  %3191 = vmatprep.subr.bf16.mxu0 %v3160
  %3192 = vmatpush1.bf16.msra.mxu0 %v3159
  %3193 = vmatprep.subr.bf16.mxu0 %v3162
  %3194 = vmatpush1.bf16.msra.mxu0 %v3161
  %3195 = vmatprep.subr.bf16.mxu0 %v3164
  %3196 = vmatpush1.bf16.msra.mxu0 %v3163
  %3197 = vmatprep.subr.bf16.mxu0 0
  %3198 = vmatpush1.bf16.msra.mxu0 0
  %3199 = vmatprep.subr.bf16.mxu0 0
  %3200 = vmatpush1.bf16.msra.mxu0 0
  %3201 = vmatprep.subr.bf16.mxu0 0
  %3202 = vmatpush1.bf16.msra.mxu0 0
  %3203 = vmatprep.subr.bf16.mxu0 0
  %3204 = vmatpush1.bf16.msra.mxu0 0
  %3205 = vmatprep.subr.bf16.mxu0 0
  %3206 = vmatpush1.bf16.msra.mxu0 0
  %3207 = vmatprep.subr.bf16.mxu0 0
  %3208 = vmatpush1.bf16.msra.mxu0 0
  %3209 = vmatprep.subr.bf16.mxu0 0
  %3210 = vmatpush1.bf16.msra.mxu0 0
  %3211 = vmatprep.subr.bf16.mxu0 0
  %3212 = vmatpush1.bf16.msra.mxu0 0
  %3213 = vmatprep.mubr.bf16.mxu0 0
  %3214 = vmatmul.mubr.bf16.gmra.mrb[0].mxu0 %v1374
  %v3215 = vpop.f32.mrb[0].mxu0
  %v3216 = vadd.f32 0.0, %v3215
  %v3217 = vpop.f32.mrb[0].mxu0
  %v3218 = vadd.f32 0.0, %v3217
  %v3219 = vpop.f32.mrb[0].mxu0
  %v3220 = vpop.f32.mrb[0].mxu0
  %3221 = vdwg.mxu0
  %v3222 = vadd.f32 %v3082, %v3216
  %v3223 = vadd.f32 %v3083, %v3218
  %s3224 = scalar_lea.vmem %s2, 1664
  %v3225 = vld [vmem:[%s3224] sm:$0xff]
  %v3226 = vld [vmem:[%s3224 + $0x8] sm:$0xff]
  %v3227 = vld [vmem:[%s3224 + $0x10] sm:$0xff]
  %v3228 = vld [vmem:[%s3224 + $0x18] sm:$0xff]
  %v3229 = vld [vmem:[%s3224 + $0x20] sm:$0xff]
  %v3230 = vld [vmem:[%s3224 + $0x28] sm:$0xff]
  %v3231 = vld [vmem:[%s3224 + $0x30] sm:$0xff]
  %v3232 = vld [vmem:[%s3224 + $0x38] sm:$0xff]
  %v3233 = vld [vmem:[%s3224 + $0x40] sm:$0xff]
  %v3234 = vld [vmem:[%s3224 + $0x48] sm:$0xff]
  %v3235 = vld [vmem:[%s3224 + $0x50] sm:$0xff]
  %v3236 = vld [vmem:[%s3224 + $0x58] sm:$0xff]
  %v3237 = vld [vmem:[%s3224 + $0x60] sm:$0xff]
  %v3238 = vld [vmem:[%s3224 + $0x68] sm:$0xff]
  %v3239 = vld [vmem:[%s3224 + $0x70] sm:$0xff]
  %v3240 = vld [vmem:[%s3224 + $0x78] sm:$0xff]
  %v3242 = vrot.slane %v1374, 4
  %v3260 = vunpack.c.l.b16 %v3225
  %v3261 = vunpack.c.h.b16 %v3225
  %v3262 = vunpack.c.l.b16 %v3226
  %v3263 = vunpack.c.h.b16 %v3226
  %v3264 = vunpack.c.l.b16 %v3227
  %v3265 = vunpack.c.h.b16 %v3227
  %v3266 = vunpack.c.l.b16 %v3228
  %v3267 = vunpack.c.h.b16 %v3228
  %v3268 = vunpack.c.l.b16 %v3229
  %v3269 = vunpack.c.h.b16 %v3229
  %v3270 = vunpack.c.l.b16 %v3230
  %v3271 = vunpack.c.h.b16 %v3230
  %v3272 = vunpack.c.l.b16 %v3231
  %v3273 = vunpack.c.h.b16 %v3231
  %v3274 = vunpack.c.l.b16 %v3232
  %v3275 = vunpack.c.h.b16 %v3232
  %v3276 = vunpack.c.l.b16 %v3233
  %v3277 = vunpack.c.h.b16 %v3233
  %v3278 = vunpack.c.l.b16 %v3234
  %v3279 = vunpack.c.h.b16 %v3234
  %v3280 = vunpack.c.l.b16 %v3235
  %v3281 = vunpack.c.h.b16 %v3235
  %v3282 = vunpack.c.l.b16 %v3236
  %v3283 = vunpack.c.h.b16 %v3236
  %v3284 = vunpack.c.l.b16 %v3237
  %v3285 = vunpack.c.h.b16 %v3237
  %v3286 = vunpack.c.l.b16 %v3238
  %v3287 = vunpack.c.h.b16 %v3238
  %v3288 = vunpack.c.l.b16 %v3239
  %v3289 = vunpack.c.h.b16 %v3239
  %v3290 = vunpack.c.l.b16 %v3240
  %v3291 = vunpack.c.h.b16 %v3240
  %v3292 = vpack.c.b16 %v3262, %v3260
  %v3293 = vpack.c.b16 %v3263, %v3261
  %v3294 = vpack.c.b16 %v3266, %v3264
  %v3295 = vpack.c.b16 %v3267, %v3265
  %v3296 = vpack.c.b16 %v3270, %v3268
  %v3297 = vpack.c.b16 %v3271, %v3269
  %v3298 = vpack.c.b16 %v3274, %v3272
  %v3299 = vpack.c.b16 %v3275, %v3273
  %v3300 = vpack.c.b16 %v3278, %v3276
  %v3301 = vpack.c.b16 %v3279, %v3277
  %v3302 = vpack.c.b16 %v3282, %v3280
  %v3303 = vpack.c.b16 %v3283, %v3281
  %v3304 = vpack.c.b16 %v3286, %v3284
  %v3305 = vpack.c.b16 %v3287, %v3285
  %v3306 = vpack.c.b16 %v3290, %v3288
  %v3307 = vpack.c.b16 %v3291, %v3289
  %3324 = vmatprep.subr.bf16.mxu0 %v3293
  %3325 = vmatpush1.bf16.msra.mxu0 %v3292
  %3326 = vmatprep.subr.bf16.mxu0 %v3295
  %3327 = vmatpush1.bf16.msra.mxu0 %v3294
  %3328 = vmatprep.subr.bf16.mxu0 %v3297
  %3329 = vmatpush1.bf16.msra.mxu0 %v3296
  %3330 = vmatprep.subr.bf16.mxu0 %v3299
  %3331 = vmatpush1.bf16.msra.mxu0 %v3298
  %3332 = vmatprep.subr.bf16.mxu0 %v3301
  %3333 = vmatpush1.bf16.msra.mxu0 %v3300
  %3334 = vmatprep.subr.bf16.mxu0 %v3303
  %3335 = vmatpush1.bf16.msra.mxu0 %v3302
  %3336 = vmatprep.subr.bf16.mxu0 %v3305
  %3337 = vmatpush1.bf16.msra.mxu0 %v3304
  %3338 = vmatprep.subr.bf16.mxu0 %v3307
  %3339 = vmatpush1.bf16.msra.mxu0 %v3306
  %3340 = vmatprep.subr.bf16.mxu0 0
  %3341 = vmatpush1.bf16.msra.mxu0 0
  %3342 = vmatprep.subr.bf16.mxu0 0
  %3343 = vmatpush1.bf16.msra.mxu0 0
  %3344 = vmatprep.subr.bf16.mxu0 0
  %3345 = vmatpush1.bf16.msra.mxu0 0
  %3346 = vmatprep.subr.bf16.mxu0 0
  %3347 = vmatpush1.bf16.msra.mxu0 0
  %3348 = vmatprep.subr.bf16.mxu0 0
  %3349 = vmatpush1.bf16.msra.mxu0 0
  %3350 = vmatprep.subr.bf16.mxu0 0
  %3351 = vmatpush1.bf16.msra.mxu0 0
  %3352 = vmatprep.subr.bf16.mxu0 0
  %3353 = vmatpush1.bf16.msra.mxu0 0
  %3354 = vmatprep.subr.bf16.mxu0 0
  %3355 = vmatpush1.bf16.msra.mxu0 0
  %3356 = vmatprep.mubr.bf16.mxu0 0
  %3357 = vmatmul.mubr.bf16.gmra.mrb[0].mxu0 %v3242
  %v3358 = vpop.f32.mrb[0].mxu0
  %v3359 = vadd.f32 0.0, %v3358
  %v3360 = vpop.f32.mrb[0].mxu0
  %v3361 = vadd.f32 0.0, %v3360
  %v3362 = vpop.f32.mrb[0].mxu0
  %v3363 = vpop.f32.mrb[0].mxu0
  %3364 = vdwg.mxu0
  %v3365 = vadd.f32 %v3222, %v3359
  %v3366 = vadd.f32 %v3223, %v3361
  %s3367 = scalar_lea.vmem %s2, 1792
  %v3368 = vld [vmem:[%s3367] sm:$0xff]
  %v3369 = vld [vmem:[%s3367 + $0x8] sm:$0xff]
  %v3370 = vld [vmem:[%s3367 + $0x10] sm:$0xff]
  %v3371 = vld [vmem:[%s3367 + $0x18] sm:$0xff]
  %v3372 = vld [vmem:[%s3367 + $0x20] sm:$0xff]
  %v3373 = vld [vmem:[%s3367 + $0x28] sm:$0xff]
  %v3374 = vld [vmem:[%s3367 + $0x30] sm:$0xff]
  %v3375 = vld [vmem:[%s3367 + $0x38] sm:$0xff]
  %v3376 = vld [vmem:[%s3367 + $0x40] sm:$0xff]
  %v3377 = vld [vmem:[%s3367 + $0x48] sm:$0xff]
  %v3378 = vld [vmem:[%s3367 + $0x50] sm:$0xff]
  %v3379 = vld [vmem:[%s3367 + $0x58] sm:$0xff]
  %v3380 = vld [vmem:[%s3367 + $0x60] sm:$0xff]
  %v3381 = vld [vmem:[%s3367 + $0x68] sm:$0xff]
  %v3382 = vld [vmem:[%s3367 + $0x70] sm:$0xff]
  %v3383 = vld [vmem:[%s3367 + $0x78] sm:$0xff]
  %v3400 = vunpack.c.l.b16 %v3368
  %v3401 = vunpack.c.h.b16 %v3368
  %v3402 = vunpack.c.l.b16 %v3369
  %v3403 = vunpack.c.h.b16 %v3369
  %v3404 = vunpack.c.l.b16 %v3370
  %v3405 = vunpack.c.h.b16 %v3370
  %v3406 = vunpack.c.l.b16 %v3371
  %v3407 = vunpack.c.h.b16 %v3371
  %v3408 = vunpack.c.l.b16 %v3372
  %v3409 = vunpack.c.h.b16 %v3372
  %v3410 = vunpack.c.l.b16 %v3373
  %v3411 = vunpack.c.h.b16 %v3373
  %v3412 = vunpack.c.l.b16 %v3374
  %v3413 = vunpack.c.h.b16 %v3374
  %v3414 = vunpack.c.l.b16 %v3375
  %v3415 = vunpack.c.h.b16 %v3375
  %v3416 = vunpack.c.l.b16 %v3376
  %v3417 = vunpack.c.h.b16 %v3376
  %v3418 = vunpack.c.l.b16 %v3377
  %v3419 = vunpack.c.h.b16 %v3377
  %v3420 = vunpack.c.l.b16 %v3378
  %v3421 = vunpack.c.h.b16 %v3378
  %v3422 = vunpack.c.l.b16 %v3379
  %v3423 = vunpack.c.h.b16 %v3379
  %v3424 = vunpack.c.l.b16 %v3380
  %v3425 = vunpack.c.h.b16 %v3380
  %v3426 = vunpack.c.l.b16 %v3381
  %v3427 = vunpack.c.h.b16 %v3381
  %v3428 = vunpack.c.l.b16 %v3382
  %v3429 = vunpack.c.h.b16 %v3382
  %v3430 = vunpack.c.l.b16 %v3383
  %v3431 = vunpack.c.h.b16 %v3383
  %v3432 = vpack.c.b16 %v3402, %v3400
  %v3433 = vpack.c.b16 %v3403, %v3401
  %v3434 = vpack.c.b16 %v3406, %v3404
  %v3435 = vpack.c.b16 %v3407, %v3405
  %v3436 = vpack.c.b16 %v3410, %v3408
  %v3437 = vpack.c.b16 %v3411, %v3409
  %v3438 = vpack.c.b16 %v3414, %v3412
  %v3439 = vpack.c.b16 %v3415, %v3413
  %v3440 = vpack.c.b16 %v3418, %v3416
  %v3441 = vpack.c.b16 %v3419, %v3417
  %v3442 = vpack.c.b16 %v3422, %v3420
  %v3443 = vpack.c.b16 %v3423, %v3421
  %v3444 = vpack.c.b16 %v3426, %v3424
  %v3445 = vpack.c.b16 %v3427, %v3425
  %v3446 = vpack.c.b16 %v3430, %v3428
  %v3447 = vpack.c.b16 %v3431, %v3429
  %3464 = vmatprep.subr.bf16.mxu0 %v3433
  %3465 = vmatpush1.bf16.msra.mxu0 %v3432
  %3466 = vmatprep.subr.bf16.mxu0 %v3435
  %3467 = vmatpush1.bf16.msra.mxu0 %v3434
  %3468 = vmatprep.subr.bf16.mxu0 %v3437
  %3469 = vmatpush1.bf16.msra.mxu0 %v3436
  %3470 = vmatprep.subr.bf16.mxu0 %v3439
  %3471 = vmatpush1.bf16.msra.mxu0 %v3438
  %3472 = vmatprep.subr.bf16.mxu0 %v3441
  %3473 = vmatpush1.bf16.msra.mxu0 %v3440
  %3474 = vmatprep.subr.bf16.mxu0 %v3443
  %3475 = vmatpush1.bf16.msra.mxu0 %v3442
  %3476 = vmatprep.subr.bf16.mxu0 %v3445
  %3477 = vmatpush1.bf16.msra.mxu0 %v3444
  %3478 = vmatprep.subr.bf16.mxu0 %v3447
  %3479 = vmatpush1.bf16.msra.mxu0 %v3446
  %3480 = vmatprep.subr.bf16.mxu0 0
  %3481 = vmatpush1.bf16.msra.mxu0 0
  %3482 = vmatprep.subr.bf16.mxu0 0
  %3483 = vmatpush1.bf16.msra.mxu0 0
  %3484 = vmatprep.subr.bf16.mxu0 0
  %3485 = vmatpush1.bf16.msra.mxu0 0
  %3486 = vmatprep.subr.bf16.mxu0 0
  %3487 = vmatpush1.bf16.msra.mxu0 0
  %3488 = vmatprep.subr.bf16.mxu0 0
  %3489 = vmatpush1.bf16.msra.mxu0 0
  %3490 = vmatprep.subr.bf16.mxu0 0
  %3491 = vmatpush1.bf16.msra.mxu0 0
  %3492 = vmatprep.subr.bf16.mxu0 0
  %3493 = vmatpush1.bf16.msra.mxu0 0
  %3494 = vmatprep.subr.bf16.mxu0 0
  %3495 = vmatpush1.bf16.msra.mxu0 0
  %3496 = vmatprep.mubr.bf16.mxu0 0
  %3497 = vmatmul.mubr.bf16.gmra.mrb[0].mxu0 %v1375
  %v3498 = vpop.f32.mrb[0].mxu0
  %v3499 = vadd.f32 0.0, %v3498
  %v3500 = vpop.f32.mrb[0].mxu0
  %v3501 = vadd.f32 0.0, %v3500
  %v3502 = vpop.f32.mrb[0].mxu0
  %v3503 = vpop.f32.mrb[0].mxu0
  %3504 = vdwg.mxu0
  %v3505 = vadd.f32 %v3365, %v3499
  %v3506 = vadd.f32 %v3366, %v3501
  %s3507 = scalar_lea.vmem %s2, 1920
  %v3508 = vld [vmem:[%s3507] sm:$0xff]
  %v3509 = vld [vmem:[%s3507 + $0x8] sm:$0xff]
  %v3510 = vld [vmem:[%s3507 + $0x10] sm:$0xff]
  %v3511 = vld [vmem:[%s3507 + $0x18] sm:$0xff]
  %v3512 = vld [vmem:[%s3507 + $0x20] sm:$0xff]
  %v3513 = vld [vmem:[%s3507 + $0x28] sm:$0xff]
  %v3514 = vld [vmem:[%s3507 + $0x30] sm:$0xff]
  %v3515 = vld [vmem:[%s3507 + $0x38] sm:$0xff]
  %v3516 = vld [vmem:[%s3507 + $0x40] sm:$0xff]
  %v3517 = vld [vmem:[%s3507 + $0x48] sm:$0xff]
  %v3518 = vld [vmem:[%s3507 + $0x50] sm:$0xff]
  %v3519 = vld [vmem:[%s3507 + $0x58] sm:$0xff]
  %v3520 = vld [vmem:[%s3507 + $0x60] sm:$0xff]
  %v3521 = vld [vmem:[%s3507 + $0x68] sm:$0xff]
  %v3522 = vld [vmem:[%s3507 + $0x70] sm:$0xff]
  %v3523 = vld [vmem:[%s3507 + $0x78] sm:$0xff]
  %v3525 = vrot.slane %v1375, 4
  %v3543 = vunpack.c.l.b16 %v3508
  %v3544 = vunpack.c.h.b16 %v3508
  %v3545 = vunpack.c.l.b16 %v3509
  %v3546 = vunpack.c.h.b16 %v3509
  %v3547 = vunpack.c.l.b16 %v3510
  %v3548 = vunpack.c.h.b16 %v3510
  %v3549 = vunpack.c.l.b16 %v3511
  %v3550 = vunpack.c.h.b16 %v3511
  %v3551 = vunpack.c.l.b16 %v3512
  %v3552 = vunpack.c.h.b16 %v3512
  %v3553 = vunpack.c.l.b16 %v3513
  %v3554 = vunpack.c.h.b16 %v3513
  %v3555 = vunpack.c.l.b16 %v3514
  %v3556 = vunpack.c.h.b16 %v3514
  %v3557 = vunpack.c.l.b16 %v3515
  %v3558 = vunpack.c.h.b16 %v3515
  %v3559 = vunpack.c.l.b16 %v3516
  %v3560 = vunpack.c.h.b16 %v3516
  %v3561 = vunpack.c.l.b16 %v3517
  %v3562 = vunpack.c.h.b16 %v3517
  %v3563 = vunpack.c.l.b16 %v3518
  %v3564 = vunpack.c.h.b16 %v3518
  %v3565 = vunpack.c.l.b16 %v3519
  %v3566 = vunpack.c.h.b16 %v3519
  %v3567 = vunpack.c.l.b16 %v3520
  %v3568 = vunpack.c.h.b16 %v3520
  %v3569 = vunpack.c.l.b16 %v3521
  %v3570 = vunpack.c.h.b16 %v3521
  %v3571 = vunpack.c.l.b16 %v3522
  %v3572 = vunpack.c.h.b16 %v3522
  %v3573 = vunpack.c.l.b16 %v3523
  %v3574 = vunpack.c.h.b16 %v3523
  %v3575 = vpack.c.b16 %v3545, %v3543
  %v3576 = vpack.c.b16 %v3546, %v3544
  %v3577 = vpack.c.b16 %v3549, %v3547
  %v3578 = vpack.c.b16 %v3550, %v3548
  %v3579 = vpack.c.b16 %v3553, %v3551
  %v3580 = vpack.c.b16 %v3554, %v3552
  %v3581 = vpack.c.b16 %v3557, %v3555
  %v3582 = vpack.c.b16 %v3558, %v3556
  %v3583 = vpack.c.b16 %v3561, %v3559
  %v3584 = vpack.c.b16 %v3562, %v3560
  %v3585 = vpack.c.b16 %v3565, %v3563
  %v3586 = vpack.c.b16 %v3566, %v3564
  %v3587 = vpack.c.b16 %v3569, %v3567
  %v3588 = vpack.c.b16 %v3570, %v3568
  %v3589 = vpack.c.b16 %v3573, %v3571
  %v3590 = vpack.c.b16 %v3574, %v3572
  %3607 = vmatprep.subr.bf16.mxu0 %v3576
  %3608 = vmatpush1.bf16.msra.mxu0 %v3575
  %3609 = vmatprep.subr.bf16.mxu0 %v3578
  %3610 = vmatpush1.bf16.msra.mxu0 %v3577
  %3611 = vmatprep.subr.bf16.mxu0 %v3580
  %3612 = vmatpush1.bf16.msra.mxu0 %v3579
  %3613 = vmatprep.subr.bf16.mxu0 %v3582
  %3614 = vmatpush1.bf16.msra.mxu0 %v3581
  %3615 = vmatprep.subr.bf16.mxu0 %v3584
  %3616 = vmatpush1.bf16.msra.mxu0 %v3583
  %3617 = vmatprep.subr.bf16.mxu0 %v3586
  %3618 = vmatpush1.bf16.msra.mxu0 %v3585
  %3619 = vmatprep.subr.bf16.mxu0 %v3588
  %3620 = vmatpush1.bf16.msra.mxu0 %v3587
  %3621 = vmatprep.subr.bf16.mxu0 %v3590
  %3622 = vmatpush1.bf16.msra.mxu0 %v3589
  %3623 = vmatprep.subr.bf16.mxu0 0
  %3624 = vmatpush1.bf16.msra.mxu0 0
  %3625 = vmatprep.subr.bf16.mxu0 0
  %3626 = vmatpush1.bf16.msra.mxu0 0
  %3627 = vmatprep.subr.bf16.mxu0 0
  %3628 = vmatpush1.bf16.msra.mxu0 0
  %3629 = vmatprep.subr.bf16.mxu0 0
  %3630 = vmatpush1.bf16.msra.mxu0 0
  %3631 = vmatprep.subr.bf16.mxu0 0
  %3632 = vmatpush1.bf16.msra.mxu0 0
  %3633 = vmatprep.subr.bf16.mxu0 0
  %3634 = vmatpush1.bf16.msra.mxu0 0
  %3635 = vmatprep.subr.bf16.mxu0 0
  %3636 = vmatpush1.bf16.msra.mxu0 0
  %3637 = vmatprep.subr.bf16.mxu0 0
  %3638 = vmatpush1.bf16.msra.mxu0 0
  %3639 = vmatprep.mubr.bf16.mxu0 0
  %3640 = vmatmul.mubr.bf16.gmra.mrb[0].mxu0 %v3525
  %v3641 = vpop.f32.mrb[0].mxu0
  %v3642 = vadd.f32 0.0, %v3641
  %v3643 = vpop.f32.mrb[0].mxu0
  %v3644 = vadd.f32 0.0, %v3643
  %v3645 = vpop.f32.mrb[0].mxu0
  %v3646 = vpop.f32.mrb[0].mxu0
  %3647 = vdwg.mxu0
  %v3648 = vadd.f32 %v3505, %v3642
  %v3649 = vadd.f32 %v3506, %v3644
  %s3650 = scalar_lea.vmem %s2, 2048
  %v3651 = vld [vmem:[%s3650] sm:$0xff]
  %v3652 = vld [vmem:[%s3650 + $0x8] sm:$0xff]
  %v3653 = vld [vmem:[%s3650 + $0x10] sm:$0xff]
  %v3654 = vld [vmem:[%s3650 + $0x18] sm:$0xff]
  %v3655 = vld [vmem:[%s3650 + $0x20] sm:$0xff]
  %v3656 = vld [vmem:[%s3650 + $0x28] sm:$0xff]
  %v3657 = vld [vmem:[%s3650 + $0x30] sm:$0xff]
  %v3658 = vld [vmem:[%s3650 + $0x38] sm:$0xff]
  %v3659 = vld [vmem:[%s3650 + $0x40] sm:$0xff]
  %v3660 = vld [vmem:[%s3650 + $0x48] sm:$0xff]
  %v3661 = vld [vmem:[%s3650 + $0x50] sm:$0xff]
  %v3662 = vld [vmem:[%s3650 + $0x58] sm:$0xff]
  %v3663 = vld [vmem:[%s3650 + $0x60] sm:$0xff]
  %v3664 = vld [vmem:[%s3650 + $0x68] sm:$0xff]
  %v3665 = vld [vmem:[%s3650 + $0x70] sm:$0xff]
  %v3666 = vld [vmem:[%s3650 + $0x78] sm:$0xff]
  %v3683 = vunpack.c.l.b16 %v3651
  %v3684 = vunpack.c.h.b16 %v3651
  %v3685 = vunpack.c.l.b16 %v3652
  %v3686 = vunpack.c.h.b16 %v3652
  %v3687 = vunpack.c.l.b16 %v3653
  %v3688 = vunpack.c.h.b16 %v3653
  %v3689 = vunpack.c.l.b16 %v3654
  %v3690 = vunpack.c.h.b16 %v3654
  %v3691 = vunpack.c.l.b16 %v3655
  %v3692 = vunpack.c.h.b16 %v3655
  %v3693 = vunpack.c.l.b16 %v3656
  %v3694 = vunpack.c.h.b16 %v3656
  %v3695 = vunpack.c.l.b16 %v3657
  %v3696 = vunpack.c.h.b16 %v3657
  %v3697 = vunpack.c.l.b16 %v3658
  %v3698 = vunpack.c.h.b16 %v3658
  %v3699 = vunpack.c.l.b16 %v3659
  %v3700 = vunpack.c.h.b16 %v3659
  %v3701 = vunpack.c.l.b16 %v3660
  %v3702 = vunpack.c.h.b16 %v3660
  %v3703 = vunpack.c.l.b16 %v3661
  %v3704 = vunpack.c.h.b16 %v3661
  %v3705 = vunpack.c.l.b16 %v3662
  %v3706 = vunpack.c.h.b16 %v3662
  %v3707 = vunpack.c.l.b16 %v3663
  %v3708 = vunpack.c.h.b16 %v3663
  %v3709 = vunpack.c.l.b16 %v3664
  %v3710 = vunpack.c.h.b16 %v3664
  %v3711 = vunpack.c.l.b16 %v3665
  %v3712 = vunpack.c.h.b16 %v3665
  %v3713 = vunpack.c.l.b16 %v3666
  %v3714 = vunpack.c.h.b16 %v3666
  %v3715 = vpack.c.b16 %v3685, %v3683
  %v3716 = vpack.c.b16 %v3686, %v3684
  %v3717 = vpack.c.b16 %v3689, %v3687
  %v3718 = vpack.c.b16 %v3690, %v3688
  %v3719 = vpack.c.b16 %v3693, %v3691
  %v3720 = vpack.c.b16 %v3694, %v3692
  %v3721 = vpack.c.b16 %v3697, %v3695
  %v3722 = vpack.c.b16 %v3698, %v3696
  %v3723 = vpack.c.b16 %v3701, %v3699
  %v3724 = vpack.c.b16 %v3702, %v3700
  %v3725 = vpack.c.b16 %v3705, %v3703
  %v3726 = vpack.c.b16 %v3706, %v3704
  %v3727 = vpack.c.b16 %v3709, %v3707
  %v3728 = vpack.c.b16 %v3710, %v3708
  %v3729 = vpack.c.b16 %v3713, %v3711
  %v3730 = vpack.c.b16 %v3714, %v3712
  %3747 = vmatprep.subr.bf16.mxu0 %v3716
  %3748 = vmatpush1.bf16.msra.mxu0 %v3715
  %3749 = vmatprep.subr.bf16.mxu0 %v3718
  %3750 = vmatpush1.bf16.msra.mxu0 %v3717
  %3751 = vmatprep.subr.bf16.mxu0 %v3720
  %3752 = vmatpush1.bf16.msra.mxu0 %v3719
  %3753 = vmatprep.subr.bf16.mxu0 %v3722
  %3754 = vmatpush1.bf16.msra.mxu0 %v3721
  %3755 = vmatprep.subr.bf16.mxu0 %v3724
  %3756 = vmatpush1.bf16.msra.mxu0 %v3723
  %3757 = vmatprep.subr.bf16.mxu0 %v3726
  %3758 = vmatpush1.bf16.msra.mxu0 %v3725
  %3759 = vmatprep.subr.bf16.mxu0 %v3728
  %3760 = vmatpush1.bf16.msra.mxu0 %v3727
  %3761 = vmatprep.subr.bf16.mxu0 %v3730
  %3762 = vmatpush1.bf16.msra.mxu0 %v3729
  %3763 = vmatprep.subr.bf16.mxu0 0
  %3764 = vmatpush1.bf16.msra.mxu0 0
  %3765 = vmatprep.subr.bf16.mxu0 0
  %3766 = vmatpush1.bf16.msra.mxu0 0
  %3767 = vmatprep.subr.bf16.mxu0 0
  %3768 = vmatpush1.bf16.msra.mxu0 0
  %3769 = vmatprep.subr.bf16.mxu0 0
  %3770 = vmatpush1.bf16.msra.mxu0 0
  %3771 = vmatprep.subr.bf16.mxu0 0
  %3772 = vmatpush1.bf16.msra.mxu0 0
  %3773 = vmatprep.subr.bf16.mxu0 0
  %3774 = vmatpush1.bf16.msra.mxu0 0
  %3775 = vmatprep.subr.bf16.mxu0 0
  %3776 = vmatpush1.bf16.msra.mxu0 0
  %3777 = vmatprep.subr.bf16.mxu0 0
  %3778 = vmatpush1.bf16.msra.mxu0 0
  %3779 = vmatprep.mubr.bf16.mxu0 0
  %3780 = vmatmul.mubr.bf16.gmra.mrb[0].mxu0 %v1376
  %v3781 = vpop.f32.mrb[0].mxu0
  %v3782 = vadd.f32 0.0, %v3781
  %v3783 = vpop.f32.mrb[0].mxu0
  %v3784 = vadd.f32 0.0, %v3783
  %v3785 = vpop.f32.mrb[0].mxu0
  %v3786 = vpop.f32.mrb[0].mxu0
  %3787 = vdwg.mxu0
  %v3788 = vadd.f32 %v3648, %v3782
  %v3789 = vadd.f32 %v3649, %v3784
  %v3790 = vmax.f32 %v3788, 0.0
  %v3791 = vmax.f32 %v3789, 0.0
  %v3792 = vpack.c.bf16 %v3790, %v3790
  %v3793 = vpack.c.bf16 %v3791, %v3791
  %v3794 = vld [vmem:[%s4] sm:$0xf]
  %v3795 = vld [vmem:[%s4 + $0x4] sm:$0xf]
  %v3796 = vld [vmem:[%s4 + $0x8] sm:$0xf]
  %v3797 = vld [vmem:[%s4 + $0xc] sm:$0xf]
  %v3798 = vld [vmem:[%s4 + $0x10] sm:$0xf]
  %v3799 = vld [vmem:[%s4 + $0x14] sm:$0xf]
  %v3800 = vld [vmem:[%s4 + $0x18] sm:$0xf]
  %v3801 = vld [vmem:[%s4 + $0x1c] sm:$0xf]
  %v3802 = vld [vmem:[%s4 + $0x20] sm:$0xf]
  %v3803 = vld [vmem:[%s4 + $0x24] sm:$0xf]
  %v3804 = vld [vmem:[%s4 + $0x28] sm:$0xf]
  %v3805 = vld [vmem:[%s4 + $0x2c] sm:$0xf]
  %v3806 = vld [vmem:[%s4 + $0x30] sm:$0xf]
  %v3807 = vld [vmem:[%s4 + $0x34] sm:$0xf]
  %v3808 = vld [vmem:[%s4 + $0x38] sm:$0xf]
  %v3809 = vld [vmem:[%s4 + $0x3c] sm:$0xf]
  %v3810 = vld [vmem:[%s4 + $0x40] sm:$0xf]
  %v3811 = vld [vmem:[%s4 + $0x44] sm:$0xf]
  %v3812 = vld [vmem:[%s4 + $0x48] sm:$0xf]
  %v3813 = vld [vmem:[%s4 + $0x4c] sm:$0xf]
  %v3814 = vld [vmem:[%s4 + $0x50] sm:$0xf]
  %v3815 = vld [vmem:[%s4 + $0x54] sm:$0xf]
  %v3816 = vld [vmem:[%s4 + $0x58] sm:$0xf]
  %v3817 = vld [vmem:[%s4 + $0x5c] sm:$0xf]
  %v3818 = vld [vmem:[%s4 + $0x60] sm:$0xf]
  %v3819 = vld [vmem:[%s4 + $0x64] sm:$0xf]
  %v3820 = vld [vmem:[%s4 + $0x68] sm:$0xf]
  %v3821 = vld [vmem:[%s4 + $0x6c] sm:$0xf]
  %v3822 = vld [vmem:[%s4 + $0x70] sm:$0xf]
  %v3823 = vld [vmem:[%s4 + $0x74] sm:$0xf]
  %v3824 = vld [vmem:[%s4 + $0x78] sm:$0xf]
  %v3825 = vld [vmem:[%s4 + $0x7c] sm:$0xf]
  %v3826 = vld [vmem:[%s5] sm:$0x1]
  %v3828 = vlaneseq
  %v3829 = vshrl.u32 %v3828, 7
  %v3830 = vsub.s32 0, %v3829
  %v3831 = vrot.slane %v3826, %v3830
  %v3865 = vunpack.c.l.b16 %v3794
  %v3866 = vunpack.c.l.b16 %v3795
  %v3867 = vunpack.c.l.b16 %v3796
  %v3868 = vunpack.c.l.b16 %v3797
  %v3869 = vunpack.c.l.b16 %v3798
  %v3870 = vunpack.c.l.b16 %v3799
  %v3871 = vunpack.c.l.b16 %v3800
  %v3872 = vunpack.c.l.b16 %v3801
  %v3873 = vunpack.c.l.b16 %v3802
  %v3874 = vunpack.c.l.b16 %v3803
  %v3875 = vunpack.c.l.b16 %v3804
  %v3876 = vunpack.c.l.b16 %v3805
  %v3877 = vunpack.c.l.b16 %v3806
  %v3878 = vunpack.c.l.b16 %v3807
  %v3879 = vunpack.c.l.b16 %v3808
  %v3880 = vunpack.c.l.b16 %v3809
  %v3881 = vunpack.c.l.b16 %v3810
  %v3882 = vunpack.c.l.b16 %v3811
  %v3883 = vunpack.c.l.b16 %v3812
  %v3884 = vunpack.c.l.b16 %v3813
  %v3885 = vunpack.c.l.b16 %v3814
  %v3886 = vunpack.c.l.b16 %v3815
  %v3887 = vunpack.c.l.b16 %v3816
  %v3888 = vunpack.c.l.b16 %v3817
  %v3889 = vunpack.c.l.b16 %v3818
  %v3890 = vunpack.c.l.b16 %v3819
  %v3891 = vunpack.c.l.b16 %v3820
  %v3892 = vunpack.c.l.b16 %v3821
  %v3893 = vunpack.c.l.b16 %v3822
  %v3894 = vunpack.c.l.b16 %v3823
  %v3895 = vunpack.c.l.b16 %v3824
  %v3896 = vunpack.c.l.b16 %v3825
  %v3897 = vpack.c.b16 %v3866, %v3865
  %v3898 = vpack.c.b16 %v3868, %v3867
  %v3899 = vpack.c.b16 %v3870, %v3869
  %v3900 = vpack.c.b16 %v3872, %v3871
  %v3901 = vpack.c.b16 %v3874, %v3873
  %v3902 = vpack.c.b16 %v3876, %v3875
  %v3903 = vpack.c.b16 %v3878, %v3877
  %v3904 = vpack.c.b16 %v3880, %v3879
  %v3905 = vpack.c.b16 %v3882, %v3881
  %v3906 = vpack.c.b16 %v3884, %v3883
  %v3907 = vpack.c.b16 %v3886, %v3885
  %v3908 = vpack.c.b16 %v3888, %v3887
  %v3909 = vpack.c.b16 %v3890, %v3889
  %v3910 = vpack.c.b16 %v3892, %v3891
  %v3911 = vpack.c.b16 %v3894, %v3893
  %v3912 = vpack.c.b16 %v3896, %v3895
  %3929 = vmatprep.subr.bf16.mxu0 0
  %3930 = vmatpush1.bf16.msra.mxu0 %v3897
  %3931 = vmatprep.subr.bf16.mxu0 0
  %3932 = vmatpush1.bf16.msra.mxu0 %v3898
  %3933 = vmatprep.subr.bf16.mxu0 0
  %3934 = vmatpush1.bf16.msra.mxu0 %v3899
  %3935 = vmatprep.subr.bf16.mxu0 0
  %3936 = vmatpush1.bf16.msra.mxu0 %v3900
  %3937 = vmatprep.subr.bf16.mxu0 0
  %3938 = vmatpush1.bf16.msra.mxu0 %v3901
  %3939 = vmatprep.subr.bf16.mxu0 0
  %3940 = vmatpush1.bf16.msra.mxu0 %v3902
  %3941 = vmatprep.subr.bf16.mxu0 0
  %3942 = vmatpush1.bf16.msra.mxu0 %v3903
  %3943 = vmatprep.subr.bf16.mxu0 0
  %3944 = vmatpush1.bf16.msra.mxu0 %v3904
  %3945 = vmatprep.subr.bf16.mxu0 0
  %3946 = vmatpush1.bf16.msra.mxu0 %v3905
  %3947 = vmatprep.subr.bf16.mxu0 0
  %3948 = vmatpush1.bf16.msra.mxu0 %v3906
  %3949 = vmatprep.subr.bf16.mxu0 0
  %3950 = vmatpush1.bf16.msra.mxu0 %v3907
  %3951 = vmatprep.subr.bf16.mxu0 0
  %3952 = vmatpush1.bf16.msra.mxu0 %v3908
  %3953 = vmatprep.subr.bf16.mxu0 0
  %3954 = vmatpush1.bf16.msra.mxu0 %v3909
  %3955 = vmatprep.subr.bf16.mxu0 0
  %3956 = vmatpush1.bf16.msra.mxu0 %v3910
  %3957 = vmatprep.subr.bf16.mxu0 0
  %3958 = vmatpush1.bf16.msra.mxu0 %v3911
  %3959 = vmatprep.subr.bf16.mxu0 0
  %3960 = vmatpush1.bf16.msra.mxu0 %v3912
  %3961 = vmatprep.mubr.bf16.mxu0 %v3793
  %3962 = vmatmul.mubr.bf16.gmra.mrb[0].mxu0 %v3792
  %v3963 = vpop.f32.mrb[0].mxu0
  %v3964 = vadd.f32 %v3831, %v3963
  %v3965 = vpop.f32.mrb[0].mxu0
  %v3966 = vpop.f32.mrb[0].mxu0
  %v3967 = vpop.f32.mrb[0].mxu0
  %3968 = vdwg.mxu0
  %3969 = vst [vmem:[%s6] sm:$0xff] %v3964
  // Predicated region
  $region26: #{wsplin_ip_forward.1} parent=0 // pred_check
    _
  $region27: #{wsplin_ip_forward.1} parent=0 // pred_check_branch
    %3971 = sbr.rel (0) target = $region29
  $region28: #{wsplin_ip_forward.1} parent=0 // pred_region
    _
  $region29: #{wsplin_ip_forward.1} parent=0 // pred_fallthru
    _
  // Predicated region
  $region30: #{wsplin_ip_forward.1} parent=0 // pred_check
    _
  $region31: #{wsplin_ip_forward.1} parent=0 // pred_check_branch
    %3973 = sbr.rel (0) target = $region33
  $region32: #{wsplin_ip_forward.1} parent=0 // pred_region
    _
  $region33: #{wsplin_ip_forward.1} parent=0 // pred_fallthru
    _

</llo_original>
